<compile_context>
chip_gen: v6e
topology: v6e:2x2x1
jax: 0.10.0
libtpu: 0.0.40
codegen_flags: <defaults>
</compile_context>

<pallas_src>
import jax
import jax.numpy as jnp
from jax.experimental import pallas as pl
from jax.experimental.pallas import tpu as pltpu

HIDDEN_SIZE = 64
INPUT_SIZE = 1
OUTPUT_SIZE = 1
NUM_LAYERS = 3


# ----------------------------- Fused Pallas kernel -------------------------- #

def gru_forward_kernel(x_ref,
                       w_ih0_rz_ref, w_ih0_n_ref,
                       w_ih_rz_ref, w_ih_n_ref,
                       w_hh_rz_ref, w_hh_n_ref,
                       b_rz_ref, b_in_ref, b_hn_ref,
                       w_fc_ref, b_fc_ref,
                       out_ref):
    """Fused 3-layer GRU + fc head.

    x_ref       : (S*Bp, 1)      f32   layer-0 input column, time-major rows
    w_ih0_rz_ref: (1, 2H)        f32   layer-0 input weights, r|z lane-concat
    w_ih0_n_ref : (1, H)         f32   layer-0 input weights, n gate
    w_ih_rz_ref : (L-1, H, 2H)   bf16  layers 1.. input weights, r|z lane-concat
    w_ih_n_ref  : (L-1, H, H)    bf16  layers 1.. input weights, n gate
    w_hh_rz_ref : (L, H, 2H)     bf16  recurrent weights, r|z lane-concat
    w_hh_n_ref  : (L, H, H)      bf16  recurrent weights, n gate
    b_rz_ref    : (L, 1, 2H)     f32   b_ih_rz + b_hh_rz (folded)
    b_in_ref    : (L, 1, H)      f32   b_ih_n
    b_hn_ref    : (L, 1, H)      f32   b_hh_n (stays inside r*(...))
    w_fc_ref    : (1, H)         f32
    b_fc_ref    : (1, 1)         f32
    out_ref     : (Bp, 1)        f32   fc(h_last_layer_final)
    """
    sb = x_ref.shape[0]                       # S * Bp
    bp = out_ref.shape[0]
    seq = sb // bp
    hidden = w_hh_n_ref.shape[1]
    num_layers = w_hh_n_ref.shape[0]

    h = None
    xin_b = None                              # bf16 (S*Bp, H) input for layers >= 1

    for layer in range(num_layers):
        last = layer == num_layers - 1

        # ---- hoisted, sequence-wide input projection (biases folded in) ----
        if layer == 0:
            # in_dim == 1 -> outer-product broadcast on the VPU, no MXU pass.
            xcol = x_ref[...]                                           # (S*Bp, 1)
            gi_rz = xcol * w_ih0_rz_ref[...] + b_rz_ref[layer]          # (S*Bp, 2H)
            gi_n = xcol * w_ih0_n_ref[...] + b_in_ref[layer]            # (S*Bp, H)
        else:
            gi_rz = jnp.dot(xin_b, w_ih_rz_ref[layer - 1],
                            preferred_element_type=jnp.float32) + b_rz_ref[layer]
            gi_n = jnp.dot(xin_b, w_ih_n_ref[layer - 1],
                           preferred_element_type=jnp.float32) + b_in_ref[layer]

        # recurrent weights / remaining bias hoisted out of the time loop
        whh_rz = w_hh_rz_ref[layer]                                     # (H, 2H) bf16
        whh_n = w_hh_n_ref[layer]                                       # (H, H)  bf16
        bhn = jnp.broadcast_to(b_hn_ref[layer], (bp, hidden))           # (Bp, H) f32

        h = jnp.zeros((bp, hidden), jnp.float32)
        hs = []

        # seq=8 is small & static -> fully unrolled in-kernel time loop.
        # TODO(synk): for long sequences switch to lax.fori_loop + dynamic pl.ds,
        #             stage gate projections in bf16 and tile the time axis with
        #             pltpu.emit_pipeline (v7x VMEM is 64 MiB, not 128).
        for t in range(seq):
            row = t * bp
            hb = h.astype(jnp.bfloat16)
            # fused r|z recurrent matmul -> sigmoid on one full (8,128) vreg
            g_rz = gi_rz[row:row + bp, :] + jnp.dot(
                hb, whh_rz, preferred_element_type=jnp.float32)
            rz = jax.nn.sigmoid(g_rz)
            r = rz[:, :hidden]
            z = rz[:, hidden:]
            ghn = jnp.dot(hb, whh_n, preferred_element_type=jnp.float32) + bhn
            n = jnp.tanh(gi_n[row:row + bp, :] + r * ghn)
            h = n + z * (h - n)               # == (1 - z) * n + z * h
            if not last:
                hs.append(h)

        if not last:
            # inter-layer sequence kept in registers (4 vregs), tile-aligned concat
            xin_b = jnp.concatenate(hs, axis=0).astype(jnp.bfloat16)

    # ---- fc epilogue: O == 1 -> elementwise mult + cross-lane reduce (XLU) ----
    out_ref[...] = (jnp.sum(h * w_fc_ref[...], axis=-1, keepdims=True)
                    + b_fc_ref[...])


# --------------------------------- Wrapper ---------------------------------- #

@jax.jit
def gru_model_forward(x_bsd, kparams):
    """Equivalent of GRUModel.forward (eval mode): fc(h[-1])."""
    batch, seq, in_dim = x_bsd.shape
    assert in_dim == 1 and OUTPUT_SIZE == 1
    bp = max(8, -(-batch // 8) * 8)           # pad batch to a sublane multiple

    # (B, S, 1) -> time-major column (S*Bp, 1); padded batch rows are zero (inert).
    x = jnp.transpose(x_bsd.astype(jnp.float32), (1, 0, 2))
    x = jnp.pad(x, ((0, 0), (0, bp - batch), (0, 0)))
    xcol = x.reshape(seq * bp, in_dim)

    out = pl.pallas_call(
        gru_forward_kernel,
        out_shape=jax.ShapeDtypeStruct((bp, OUTPUT_SIZE), jnp.float32),
        compiler_params=pltpu.CompilerParams(
            vmem_limit_bytes=32 * 1024 * 1024),   # explicit budget; safe on v5e/v6e/v7x
    )(xcol,
      kparams["w_ih0_rz"], kparams["w_ih0_n"],
      kparams["w_ih_rz"], kparams["w_ih_n"],
      kparams["w_hh_rz"], kparams["w_hh_n"],
      kparams["b_rz"], kparams["b_in"], kparams["b_hn"],
      kparams["w_fc"], kparams["b_fc"])

    # Deliberately NOT sharding across v7x's two TensorCores: the recurrence is
    # serial and the padded batch is 8 rows, so a split would only add sync cost.
    return out[:batch]


# --------------------------- Parameter creation ----------------------------- #

def init_params(key):
    """PyTorch-layout parameters (uniform(-1/sqrt(H), 1/sqrt(H)) like nn.GRU)."""
    params = {}
    k = 1.0 / jnp.sqrt(jnp.float32(HIDDEN_SIZE))
    for l in range(NUM_LAYERS):
        in_dim = INPUT_SIZE if l == 0 else HIDDEN_SIZE
        key, k1, k2, k3, k4 = jax.random.split(key, 5)
        params[f"layer{l}"] = {
            "w_ih": jax.random.uniform(k1, (3 * HIDDEN_SIZE, in_dim), jnp.float32, -k, k),
            "w_hh": jax.random.uniform(k2, (3 * HIDDEN_SIZE, HIDDEN_SIZE), jnp.float32, -k, k),
            "b_ih": jax.random.uniform(k3, (3 * HIDDEN_SIZE,), jnp.float32, -k, k),
            "b_hh": jax.random.uniform(k4, (3 * HIDDEN_SIZE,), jnp.float32, -k, k),
        }
    key, k5, k6 = jax.random.split(key, 3)
    params["fc"] = {
        "w": jax.random.uniform(k5, (OUTPUT_SIZE, HIDDEN_SIZE), jnp.float32, -k, k),
        "b": jax.random.uniform(k6, (OUTPUT_SIZE,), jnp.float32, -k, k),
    }
    return params


def pack_params(torch_params):
    """Repack PyTorch-layout weights into the fused kernel's layout.

    r|z blocks lane-concatenated into (in_dim, 2H); n gate kept separate (H wide)
    so every MXU RHS is <= 128 lanes (v5e-friendly, single pass on v6e/v7x).
    b_ih_rz + b_hh_rz folded together; b_ih_n folded into gi_n; b_hn kept apart.
    MXU weights in bf16, layer-0 (VPU broadcast) weights and biases in f32.
    """
    H = HIDDEN_SIZE
    w_ih_rz, w_ih_n, w_hh_rz, w_hh_n = [], [], [], []
    b_rz, b_in, b_hn = [], [], []
    w_ih0_rz = w_ih0_n = None
    for l in range(NUM_LAYERS):
        p = torch_params[f"layer{l}"]
        wi, wh, bi, bh = p["w_ih"], p["w_hh"], p["b_ih"], p["b_hh"]
        wi_r, wi_z, wi_n = wi[0:H].T, wi[H:2 * H].T, wi[2 * H:3 * H].T   # (in_dim, H)
        wh_r, wh_z, wh_n = wh[0:H].T, wh[H:2 * H].T, wh[2 * H:3 * H].T   # (H, H)
        if l == 0:
            w_ih0_rz = jnp.concatenate([wi_r, wi_z], axis=1)             # (1, 2H)
            w_ih0_n = wi_n                                               # (1, H)
        else:
            w_ih_rz.append(jnp.concatenate([wi_r, wi_z], axis=1))        # (H, 2H)
            w_ih_n.append(wi_n)                                          # (H, H)
        w_hh_rz.append(jnp.concatenate([wh_r, wh_z], axis=1))            # (H, 2H)
        w_hh_n.append(wh_n)                                              # (H, H)
        b_rz.append(jnp.concatenate([bi[0:H] + bh[0:H],
                                     bi[H:2 * H] + bh[H:2 * H]]).reshape(1, 2 * H))
        b_in.append(bi[2 * H:3 * H].reshape(1, H))
        b_hn.append(bh[2 * H:3 * H].reshape(1, H))
    return {
        "w_ih0_rz": w_ih0_rz.astype(jnp.float32),
        "w_ih0_n": w_ih0_n.astype(jnp.float32),
        "w_ih_rz": jnp.stack(w_ih_rz).astype(jnp.bfloat16),   # (L-1, H, 2H)
        "w_ih_n": jnp.stack(w_ih_n).astype(jnp.bfloat16),     # (L-1, H, H)
        "w_hh_rz": jnp.stack(w_hh_rz).astype(jnp.bfloat16),   # (L, H, 2H)
        "w_hh_n": jnp.stack(w_hh_n).astype(jnp.bfloat16),     # (L, H, H)
        "b_rz": jnp.stack(b_rz).astype(jnp.float32),          # (L, 1, 2H)
        "b_in": jnp.stack(b_in).astype(jnp.float32),          # (L, 1, H)
        "b_hn": jnp.stack(b_hn).astype(jnp.float32),          # (L, 1, H)
        "w_fc": torch_params["fc"]["w"].astype(jnp.float32),  # (O, H) = (1, H)
        "b_fc": torch_params["fc"]["b"].reshape(1, -1).astype(jnp.float32),  # (1, 1)
    }


# ----------------------------- Pure-JAX reference --------------------------- #

def gru_model_reference(x_bsd, torch_params):
    """Reference mirroring the kernel's arithmetic: f32 layer-0 input projection
    (in_dim=1 broadcast), bf16 operands / f32 accumulation for every MXU matmul,
    f32 gate math, elementwise fc reduce."""
    H = HIDDEN_SIZE
    x = jnp.transpose(x_bsd.astype(jnp.float32), (1, 0, 2))   # (S, B, D)
    S, B, _ = x.shape
    for l in range(NUM_LAYERS):
        p = torch_params[f"layer{l}"]
        w_hh_t = p["w_hh"].T.astype(jnp.bfloat16)              # (H, 3H)
        b_ih = p["b_ih"].reshape(1, -1)
        b_hh = p["b_hh"].reshape(1, -1)
        if l == 0:
            w_ih_row = p["w_ih"].T.astype(jnp.float32)         # (1, 3H)
            gi_all = x * w_ih_row + b_ih                       # (S, B, 3H), f32
        else:
            gi_all = (jnp.dot(x.reshape(S * B, H).astype(jnp.bfloat16),
                              p["w_ih"].T.astype(jnp.bfloat16),
                              preferred_element_type=jnp.float32)
                      .reshape(S, B, 3 * H) + b_ih)

        def step(h, gi, w_hh_t=w_hh_t, b_hh=b_hh):
            gh = jnp.dot(h.astype(jnp.bfloat16), w_hh_t,
                         preferred_element_type=jnp.float32) + b_hh
            r = jax.nn.sigmoid(gi[:, 0:H] + gh[:, 0:H])
            z = jax.nn.sigmoid(gi[:, H:2 * H] + gh[:, H:2 * H])
            n = jnp.tanh(gi[:, 2 * H:] + r * gh[:, 2 * H:])
            h_new = (1.0 - z) * n + z * h
            return h_new, h_new

        h0 = jnp.zeros((B, H), jnp.float32)
        _, x = jax.lax.scan(step, h0, gi_all)
    h_last = x[-1]
    return (jnp.sum(h_last * torch_params["fc"]["w"].astype(jnp.float32),
                    axis=-1, keepdims=True)
            + torch_params["fc"]["b"].reshape(1, -1))


# ---------------------------------- Main ------------------------------------ #

if __name__ == "__main__":
    key = jax.random.PRNGKey(0)
    key, pkey, xkey = jax.random.split(key, 3)

    torch_params = init_params(pkey)
    kernel_params = pack_params(torch_params)

    batch, seq = 2, 8
    x = jax.random.normal(xkey, (batch, seq, INPUT_SIZE), jnp.float32)

    out = gru_model_forward(x, kernel_params)
    out = jax.block_until_ready(out)
    assert out.shape == (batch, OUTPUT_SIZE), out.shape

    ref = gru_model_reference(x, torch_params)
    assert jnp.allclose(out, ref, atol=1e-3, rtol=1e-3), (out, ref)

    print("KERNEL_OK")
</pallas_src>

<mosaic_0001>
module attributes {stable_mosaic.version = 11 : i64} {
  func.func @gru_forward_kernel(%arg0: memref<64x1xf32, #tpu.memory_space<vmem>>, %arg1: memref<1x128xf32, #tpu.memory_space<vmem>>, %arg2: memref<1x64xf32, #tpu.memory_space<vmem>>, %arg3: memref<2x64x128xbf16, #tpu.memory_space<vmem>>, %arg4: memref<2x64x64xbf16, #tpu.memory_space<vmem>>, %arg5: memref<3x64x128xbf16, #tpu.memory_space<vmem>>, %arg6: memref<3x64x64xbf16, #tpu.memory_space<vmem>>, %arg7: memref<3x1x128xf32, #tpu.memory_space<vmem>>, %arg8: memref<3x1x64xf32, #tpu.memory_space<vmem>>, %arg9: memref<3x1x64xf32, #tpu.memory_space<vmem>>, %arg10: memref<1x64xf32, #tpu.memory_space<vmem>>, %arg11: memref<1x1xf32, #tpu.memory_space<vmem>>, %arg12: memref<8x1xf32, #tpu.memory_space<vmem>>) attributes {dimension_semantics = [], scalar_prefetch = 0 : i64, scratch_operands = 0 : i64, tpu.core_type = #tpu.core_type<tc>} {
    %c0 = arith.constant 0 : index
    %c0_0 = arith.constant 0 : index
    %0 = vector.load %arg0[%c0, %c0_0] : memref<64x1xf32, #tpu.memory_space<vmem>>, vector<64x1xf32>
    %c0_1 = arith.constant 0 : index
    %c0_2 = arith.constant 0 : index
    %1 = vector.load %arg1[%c0_1, %c0_2] : memref<1x128xf32, #tpu.memory_space<vmem>>, vector<1x128xf32>
    %2 = vector.broadcast %0 : vector<64x1xf32> to vector<64x128xf32>
    %3 = vector.broadcast %1 : vector<1x128xf32> to vector<64x128xf32>
    %4 = arith.mulf %2, %3 : vector<64x128xf32>
    %c0_3 = arith.constant 0 : index
    %c0_4 = arith.constant 0 : index
    %c0_5 = arith.constant 0 : index
    %5 = vector.load %arg7[%c0_3, %c0_4, %c0_5] : memref<3x1x128xf32, #tpu.memory_space<vmem>>, vector<1x1x128xf32>
    %6 = vector.shape_cast %5 : vector<1x1x128xf32> to vector<1x128xf32>
    %7 = vector.broadcast %6 : vector<1x128xf32> to vector<64x128xf32>
    %8 = arith.addf %4, %7 : vector<64x128xf32>
    %c0_6 = arith.constant 0 : index
    %c0_7 = arith.constant 0 : index
    %9 = vector.load %arg2[%c0_6, %c0_7] : memref<1x64xf32, #tpu.memory_space<vmem>>, vector<1x64xf32>
    %10 = vector.broadcast %0 : vector<64x1xf32> to vector<64x64xf32>
    %11 = vector.broadcast %9 : vector<1x64xf32> to vector<64x64xf32>
    %12 = arith.mulf %10, %11 : vector<64x64xf32>
    %c0_8 = arith.constant 0 : index
    %c0_9 = arith.constant 0 : index
    %c0_10 = arith.constant 0 : index
    %13 = vector.load %arg8[%c0_8, %c0_9, %c0_10] : memref<3x1x64xf32, #tpu.memory_space<vmem>>, vector<1x1x64xf32>
    %14 = vector.shape_cast %13 : vector<1x1x64xf32> to vector<1x64xf32>
    %15 = vector.broadcast %14 : vector<1x64xf32> to vector<64x64xf32>
    %16 = arith.addf %12, %15 : vector<64x64xf32>
    %c0_11 = arith.constant 0 : index
    %c0_12 = arith.constant 0 : index
    %c0_13 = arith.constant 0 : index
    %17 = vector.load %arg5[%c0_11, %c0_12, %c0_13] : memref<3x64x128xbf16, #tpu.memory_space<vmem>>, vector<1x64x128xbf16>
    %18 = vector.shape_cast %17 : vector<1x64x128xbf16> to vector<64x128xbf16>
    %c0_14 = arith.constant 0 : index
    %c0_15 = arith.constant 0 : index
    %c0_16 = arith.constant 0 : index
    %19 = vector.load %arg6[%c0_14, %c0_15, %c0_16] : memref<3x64x64xbf16, #tpu.memory_space<vmem>>, vector<1x64x64xbf16>
    %20 = vector.shape_cast %19 : vector<1x64x64xbf16> to vector<64x64xbf16>
    %c0_17 = arith.constant 0 : index
    %c0_18 = arith.constant 0 : index
    %c0_19 = arith.constant 0 : index
    %21 = vector.load %arg9[%c0_17, %c0_18, %c0_19] : memref<3x1x64xf32, #tpu.memory_space<vmem>>, vector<1x1x64xf32>
    %22 = vector.shape_cast %21 : vector<1x1x64xf32> to vector<1x64xf32>
    %23 = vector.shape_cast %22 : vector<1x64xf32> to vector<1x64xf32>
    %24 = vector.broadcast %23 : vector<1x64xf32> to vector<8x64xf32>
    %cst = arith.constant 0.000000e+00 : f32
    %25 = vector.broadcast %cst : f32 to vector<8x64xf32>
    %26 = arith.truncf %25 : vector<8x64xf32> to vector<8x64xbf16>
    %27 = vector.extract_strided_slice %8 {offsets = [0, 0], sizes = [8, 128], strides = [1, 1]} : vector<64x128xf32> to vector<8x128xf32>
    %cst_20 = arith.constant dense<0.000000e+00> : vector<8x128xf32>
    %28 = tpu.matmul %26, %18, %cst_20 {dimension_numbers = #tpu.dot_dimension_numbers<[1], [0], [0], [1], [0, 0, 1, 1], [], []>} : vector<8x64xbf16>, vector<64x128xbf16>, vector<8x128xf32> -> vector<8x128xf32>
    %29 = arith.addf %27, %28 : vector<8x128xf32>
    %30 = arith.negf %29 : vector<8x128xf32>
    %31 = math.exp %30 : vector<8x128xf32>
    %cst_21 = arith.constant 1.000000e+00 : f32
    %32 = vector.broadcast %cst_21 : f32 to vector<8x128xf32>
    %33 = arith.addf %32, %31 : vector<8x128xf32>
    %34 = arith.divf %32, %33 : vector<8x128xf32>
    %35 = vector.extract_strided_slice %34 {offsets = [0, 0], sizes = [8, 64], strides = [1, 1]} : vector<8x128xf32> to vector<8x64xf32>
    %36 = vector.extract_strided_slice %34 {offsets = [0, 64], sizes = [8, 64], strides = [1, 1]} : vector<8x128xf32> to vector<8x64xf32>
    %cst_22 = arith.constant dense<0.000000e+00> : vector<8x64xf32>
    %37 = tpu.matmul %26, %20, %cst_22 {dimension_numbers = #tpu.dot_dimension_numbers<[1], [0], [0], [1], [0, 0, 1, 1], [], []>} : vector<8x64xbf16>, vector<64x64xbf16>, vector<8x64xf32> -> vector<8x64xf32>
    %38 = arith.addf %37, %24 : vector<8x64xf32>
    %39 = vector.extract_strided_slice %16 {offsets = [0, 0], sizes = [8, 64], strides = [1, 1]} : vector<64x64xf32> to vector<8x64xf32>
    %40 = arith.mulf %35, %38 : vector<8x64xf32>
    %41 = arith.addf %39, %40 : vector<8x64xf32>
    %42 = math.tanh %41 : vector<8x64xf32>
    %43 = arith.subf %25, %42 : vector<8x64xf32>
    %44 = arith.mulf %36, %43 : vector<8x64xf32>
    %45 = arith.addf %42, %44 : vector<8x64xf32>
    %46 = arith.truncf %45 : vector<8x64xf32> to vector<8x64xbf16>
    %47 = vector.extract_strided_slice %8 {offsets = [8, 0], sizes = [8, 128], strides = [1, 1]} : vector<64x128xf32> to vector<8x128xf32>
    %cst_23 = arith.constant dense<0.000000e+00> : vector<8x128xf32>
    %48 = tpu.matmul %46, %18, %cst_23 {dimension_numbers = #tpu.dot_dimension_numbers<[1], [0], [0], [1], [0, 0, 1, 1], [], []>} : vector<8x64xbf16>, vector<64x128xbf16>, vector<8x128xf32> -> vector<8x128xf32>
    %49 = arith.addf %47, %48 : vector<8x128xf32>
    %50 = arith.negf %49 : vector<8x128xf32>
    %51 = math.exp %50 : vector<8x128xf32>
    %cst_24 = arith.constant 1.000000e+00 : f32
    %52 = vector.broadcast %cst_24 : f32 to vector<8x128xf32>
    %53 = arith.addf %52, %51 : vector<8x128xf32>
    %54 = arith.divf %52, %53 : vector<8x128xf32>
    %55 = vector.extract_strided_slice %54 {offsets = [0, 0], sizes = [8, 64], strides = [1, 1]} : vector<8x128xf32> to vector<8x64xf32>
    %56 = vector.extract_strided_slice %54 {offsets = [0, 64], sizes = [8, 64], strides = [1, 1]} : vector<8x128xf32> to vector<8x64xf32>
    %cst_25 = arith.constant dense<0.000000e+00> : vector<8x64xf32>
    %57 = tpu.matmul %46, %20, %cst_25 {dimension_numbers = #tpu.dot_dimension_numbers<[1], [0], [0], [1], [0, 0, 1, 1], [], []>} : vector<8x64xbf16>, vector<64x64xbf16>, vector<8x64xf32> -> vector<8x64xf32>
    %58 = arith.addf %57, %24 : vector<8x64xf32>
    %59 = vector.extract_strided_slice %16 {offsets = [8, 0], sizes = [8, 64], strides = [1, 1]} : vector<64x64xf32> to vector<8x64xf32>
    %60 = arith.mulf %55, %58 : vector<8x64xf32>
    %61 = arith.addf %59, %60 : vector<8x64xf32>
    %62 = math.tanh %61 : vector<8x64xf32>
    %63 = arith.subf %45, %62 : vector<8x64xf32>
    %64 = arith.mulf %56, %63 : vector<8x64xf32>
    %65 = arith.addf %62, %64 : vector<8x64xf32>
    %66 = arith.truncf %65 : vector<8x64xf32> to vector<8x64xbf16>
    %67 = vector.extract_strided_slice %8 {offsets = [16, 0], sizes = [8, 128], strides = [1, 1]} : vector<64x128xf32> to vector<8x128xf32>
    %cst_26 = arith.constant dense<0.000000e+00> : vector<8x128xf32>
    %68 = tpu.matmul %66, %18, %cst_26 {dimension_numbers = #tpu.dot_dimension_numbers<[1], [0], [0], [1], [0, 0, 1, 1], [], []>} : vector<8x64xbf16>, vector<64x128xbf16>, vector<8x128xf32> -> vector<8x128xf32>
    %69 = arith.addf %67, %68 : vector<8x128xf32>
    %70 = arith.negf %69 : vector<8x128xf32>
    %71 = math.exp %70 : vector<8x128xf32>
    %cst_27 = arith.constant 1.000000e+00 : f32
    %72 = vector.broadcast %cst_27 : f32 to vector<8x128xf32>
    %73 = arith.addf %72, %71 : vector<8x128xf32>
    %74 = arith.divf %72, %73 : vector<8x128xf32>
    %75 = vector.extract_strided_slice %74 {offsets = [0, 0], sizes = [8, 64], strides = [1, 1]} : vector<8x128xf32> to vector<8x64xf32>
    %76 = vector.extract_strided_slice %74 {offsets = [0, 64], sizes = [8, 64], strides = [1, 1]} : vector<8x128xf32> to vector<8x64xf32>
    %cst_28 = arith.constant dense<0.000000e+00> : vector<8x64xf32>
    %77 = tpu.matmul %66, %20, %cst_28 {dimension_numbers = #tpu.dot_dimension_numbers<[1], [0], [0], [1], [0, 0, 1, 1], [], []>} : vector<8x64xbf16>, vector<64x64xbf16>, vector<8x64xf32> -> vector<8x64xf32>
    %78 = arith.addf %77, %24 : vector<8x64xf32>
    %79 = vector.extract_strided_slice %16 {offsets = [16, 0], sizes = [8, 64], strides = [1, 1]} : vector<64x64xf32> to vector<8x64xf32>
    %80 = arith.mulf %75, %78 : vector<8x64xf32>
    %81 = arith.addf %79, %80 : vector<8x64xf32>
    %82 = math.tanh %81 : vector<8x64xf32>
    %83 = arith.subf %65, %82 : vector<8x64xf32>
    %84 = arith.mulf %76, %83 : vector<8x64xf32>
    %85 = arith.addf %82, %84 : vector<8x64xf32>
    %86 = arith.truncf %85 : vector<8x64xf32> to vector<8x64xbf16>
    %87 = vector.extract_strided_slice %8 {offsets = [24, 0], sizes = [8, 128], strides = [1, 1]} : vector<64x128xf32> to vector<8x128xf32>
    %cst_29 = arith.constant dense<0.000000e+00> : vector<8x128xf32>
    %88 = tpu.matmul %86, %18, %cst_29 {dimension_numbers = #tpu.dot_dimension_numbers<[1], [0], [0], [1], [0, 0, 1, 1], [], []>} : vector<8x64xbf16>, vector<64x128xbf16>, vector<8x128xf32> -> vector<8x128xf32>
    %89 = arith.addf %87, %88 : vector<8x128xf32>
    %90 = arith.negf %89 : vector<8x128xf32>
    %91 = math.exp %90 : vector<8x128xf32>
    %cst_30 = arith.constant 1.000000e+00 : f32
    %92 = vector.broadcast %cst_30 : f32 to vector<8x128xf32>
    %93 = arith.addf %92, %91 : vector<8x128xf32>
    %94 = arith.divf %92, %93 : vector<8x128xf32>
    %95 = vector.extract_strided_slice %94 {offsets = [0, 0], sizes = [8, 64], strides = [1, 1]} : vector<8x128xf32> to vector<8x64xf32>
    %96 = vector.extract_strided_slice %94 {offsets = [0, 64], sizes = [8, 64], strides = [1, 1]} : vector<8x128xf32> to vector<8x64xf32>
    %cst_31 = arith.constant dense<0.000000e+00> : vector<8x64xf32>
    %97 = tpu.matmul %86, %20, %cst_31 {dimension_numbers = #tpu.dot_dimension_numbers<[1], [0], [0], [1], [0, 0, 1, 1], [], []>} : vector<8x64xbf16>, vector<64x64xbf16>, vector<8x64xf32> -> vector<8x64xf32>
    %98 = arith.addf %97, %24 : vector<8x64xf32>
    %99 = vector.extract_strided_slice %16 {offsets = [24, 0], sizes = [8, 64], strides = [1, 1]} : vector<64x64xf32> to vector<8x64xf32>
    %100 = arith.mulf %95, %98 : vector<8x64xf32>
    %101 = arith.addf %99, %100 : vector<8x64xf32>
    %102 = math.tanh %101 : vector<8x64xf32>
    %103 = arith.subf %85, %102 : vector<8x64xf32>
    %104 = arith.mulf %96, %103 : vector<8x64xf32>
    %105 = arith.addf %102, %104 : vector<8x64xf32>
    %106 = arith.truncf %105 : vector<8x64xf32> to vector<8x64xbf16>
    %107 = vector.extract_strided_slice %8 {offsets = [32, 0], sizes = [8, 128], strides = [1, 1]} : vector<64x128xf32> to vector<8x128xf32>
    %cst_32 = arith.constant dense<0.000000e+00> : vector<8x128xf32>
    %108 = tpu.matmul %106, %18, %cst_32 {dimension_numbers = #tpu.dot_dimension_numbers<[1], [0], [0], [1], [0, 0, 1, 1], [], []>} : vector<8x64xbf16>, vector<64x128xbf16>, vector<8x128xf32> -> vector<8x128xf32>
    %109 = arith.addf %107, %108 : vector<8x128xf32>
    %110 = arith.negf %109 : vector<8x128xf32>
    %111 = math.exp %110 : vector<8x128xf32>
    %cst_33 = arith.constant 1.000000e+00 : f32
    %112 = vector.broadcast %cst_33 : f32 to vector<8x128xf32>
    %113 = arith.addf %112, %111 : vector<8x128xf32>
    %114 = arith.divf %112, %113 : vector<8x128xf32>
    %115 = vector.extract_strided_slice %114 {offsets = [0, 0], sizes = [8, 64], strides = [1, 1]} : vector<8x128xf32> to vector<8x64xf32>
    %116 = vector.extract_strided_slice %114 {offsets = [0, 64], sizes = [8, 64], strides = [1, 1]} : vector<8x128xf32> to vector<8x64xf32>
    %cst_34 = arith.constant dense<0.000000e+00> : vector<8x64xf32>
    %117 = tpu.matmul %106, %20, %cst_34 {dimension_numbers = #tpu.dot_dimension_numbers<[1], [0], [0], [1], [0, 0, 1, 1], [], []>} : vector<8x64xbf16>, vector<64x64xbf16>, vector<8x64xf32> -> vector<8x64xf32>
    %118 = arith.addf %117, %24 : vector<8x64xf32>
    %119 = vector.extract_strided_slice %16 {offsets = [32, 0], sizes = [8, 64], strides = [1, 1]} : vector<64x64xf32> to vector<8x64xf32>
    %120 = arith.mulf %115, %118 : vector<8x64xf32>
    %121 = arith.addf %119, %120 : vector<8x64xf32>
    %122 = math.tanh %121 : vector<8x64xf32>
    %123 = arith.subf %105, %122 : vector<8x64xf32>
    %124 = arith.mulf %116, %123 : vector<8x64xf32>
    %125 = arith.addf %122, %124 : vector<8x64xf32>
    %126 = arith.truncf %125 : vector<8x64xf32> to vector<8x64xbf16>
    %127 = vector.extract_strided_slice %8 {offsets = [40, 0], sizes = [8, 128], strides = [1, 1]} : vector<64x128xf32> to vector<8x128xf32>
    %cst_35 = arith.constant dense<0.000000e+00> : vector<8x128xf32>
    %128 = tpu.matmul %126, %18, %cst_35 {dimension_numbers = #tpu.dot_dimension_numbers<[1], [0], [0], [1], [0, 0, 1, 1], [], []>} : vector<8x64xbf16>, vector<64x128xbf16>, vector<8x128xf32> -> vector<8x128xf32>
    %129 = arith.addf %127, %128 : vector<8x128xf32>
    %130 = arith.negf %129 : vector<8x128xf32>
    %131 = math.exp %130 : vector<8x128xf32>
    %cst_36 = arith.constant 1.000000e+00 : f32
    %132 = vector.broadcast %cst_36 : f32 to vector<8x128xf32>
    %133 = arith.addf %132, %131 : vector<8x128xf32>
    %134 = arith.divf %132, %133 : vector<8x128xf32>
    %135 = vector.extract_strided_slice %134 {offsets = [0, 0], sizes = [8, 64], strides = [1, 1]} : vector<8x128xf32> to vector<8x64xf32>
    %136 = vector.extract_strided_slice %134 {offsets = [0, 64], sizes = [8, 64], strides = [1, 1]} : vector<8x128xf32> to vector<8x64xf32>
    %cst_37 = arith.constant dense<0.000000e+00> : vector<8x64xf32>
    %137 = tpu.matmul %126, %20, %cst_37 {dimension_numbers = #tpu.dot_dimension_numbers<[1], [0], [0], [1], [0, 0, 1, 1], [], []>} : vector<8x64xbf16>, vector<64x64xbf16>, vector<8x64xf32> -> vector<8x64xf32>
    %138 = arith.addf %137, %24 : vector<8x64xf32>
    %139 = vector.extract_strided_slice %16 {offsets = [40, 0], sizes = [8, 64], strides = [1, 1]} : vector<64x64xf32> to vector<8x64xf32>
    %140 = arith.mulf %135, %138 : vector<8x64xf32>
    %141 = arith.addf %139, %140 : vector<8x64xf32>
    %142 = math.tanh %141 : vector<8x64xf32>
    %143 = arith.subf %125, %142 : vector<8x64xf32>
    %144 = arith.mulf %136, %143 : vector<8x64xf32>
    %145 = arith.addf %142, %144 : vector<8x64xf32>
    %146 = arith.truncf %145 : vector<8x64xf32> to vector<8x64xbf16>
    %147 = vector.extract_strided_slice %8 {offsets = [48, 0], sizes = [8, 128], strides = [1, 1]} : vector<64x128xf32> to vector<8x128xf32>
    %cst_38 = arith.constant dense<0.000000e+00> : vector<8x128xf32>
    %148 = tpu.matmul %146, %18, %cst_38 {dimension_numbers = #tpu.dot_dimension_numbers<[1], [0], [0], [1], [0, 0, 1, 1], [], []>} : vector<8x64xbf16>, vector<64x128xbf16>, vector<8x128xf32> -> vector<8x128xf32>
    %149 = arith.addf %147, %148 : vector<8x128xf32>
    %150 = arith.negf %149 : vector<8x128xf32>
    %151 = math.exp %150 : vector<8x128xf32>
    %cst_39 = arith.constant 1.000000e+00 : f32
    %152 = vector.broadcast %cst_39 : f32 to vector<8x128xf32>
    %153 = arith.addf %152, %151 : vector<8x128xf32>
    %154 = arith.divf %152, %153 : vector<8x128xf32>
    %155 = vector.extract_strided_slice %154 {offsets = [0, 0], sizes = [8, 64], strides = [1, 1]} : vector<8x128xf32> to vector<8x64xf32>
    %156 = vector.extract_strided_slice %154 {offsets = [0, 64], sizes = [8, 64], strides = [1, 1]} : vector<8x128xf32> to vector<8x64xf32>
    %cst_40 = arith.constant dense<0.000000e+00> : vector<8x64xf32>
    %157 = tpu.matmul %146, %20, %cst_40 {dimension_numbers = #tpu.dot_dimension_numbers<[1], [0], [0], [1], [0, 0, 1, 1], [], []>} : vector<8x64xbf16>, vector<64x64xbf16>, vector<8x64xf32> -> vector<8x64xf32>
    %158 = arith.addf %157, %24 : vector<8x64xf32>
    %159 = vector.extract_strided_slice %16 {offsets = [48, 0], sizes = [8, 64], strides = [1, 1]} : vector<64x64xf32> to vector<8x64xf32>
    %160 = arith.mulf %155, %158 : vector<8x64xf32>
    %161 = arith.addf %159, %160 : vector<8x64xf32>
    %162 = math.tanh %161 : vector<8x64xf32>
    %163 = arith.subf %145, %162 : vector<8x64xf32>
    %164 = arith.mulf %156, %163 : vector<8x64xf32>
    %165 = arith.addf %162, %164 : vector<8x64xf32>
    %166 = arith.truncf %165 : vector<8x64xf32> to vector<8x64xbf16>
    %167 = vector.extract_strided_slice %8 {offsets = [56, 0], sizes = [8, 128], strides = [1, 1]} : vector<64x128xf32> to vector<8x128xf32>
    %cst_41 = arith.constant dense<0.000000e+00> : vector<8x128xf32>
    %168 = tpu.matmul %166, %18, %cst_41 {dimension_numbers = #tpu.dot_dimension_numbers<[1], [0], [0], [1], [0, 0, 1, 1], [], []>} : vector<8x64xbf16>, vector<64x128xbf16>, vector<8x128xf32> -> vector<8x128xf32>
    %169 = arith.addf %167, %168 : vector<8x128xf32>
    %170 = arith.negf %169 : vector<8x128xf32>
    %171 = math.exp %170 : vector<8x128xf32>
    %cst_42 = arith.constant 1.000000e+00 : f32
    %172 = vector.broadcast %cst_42 : f32 to vector<8x128xf32>
    %173 = arith.addf %172, %171 : vector<8x128xf32>
    %174 = arith.divf %172, %173 : vector<8x128xf32>
    %175 = vector.extract_strided_slice %174 {offsets = [0, 0], sizes = [8, 64], strides = [1, 1]} : vector<8x128xf32> to vector<8x64xf32>
    %176 = vector.extract_strided_slice %174 {offsets = [0, 64], sizes = [8, 64], strides = [1, 1]} : vector<8x128xf32> to vector<8x64xf32>
    %cst_43 = arith.constant dense<0.000000e+00> : vector<8x64xf32>
    %177 = tpu.matmul %166, %20, %cst_43 {dimension_numbers = #tpu.dot_dimension_numbers<[1], [0], [0], [1], [0, 0, 1, 1], [], []>} : vector<8x64xbf16>, vector<64x64xbf16>, vector<8x64xf32> -> vector<8x64xf32>
    %178 = arith.addf %177, %24 : vector<8x64xf32>
    %179 = vector.extract_strided_slice %16 {offsets = [56, 0], sizes = [8, 64], strides = [1, 1]} : vector<64x64xf32> to vector<8x64xf32>
    %180 = arith.mulf %175, %178 : vector<8x64xf32>
    %181 = arith.addf %179, %180 : vector<8x64xf32>
    %182 = math.tanh %181 : vector<8x64xf32>
    %183 = arith.subf %165, %182 : vector<8x64xf32>
    %184 = arith.mulf %176, %183 : vector<8x64xf32>
    %185 = arith.addf %182, %184 : vector<8x64xf32>
    %186 = tpu.concatenate %45, %65, %85, %105, %125, %145, %165, %185 in 0 : vector<8x64xf32>, vector<8x64xf32>, vector<8x64xf32>, vector<8x64xf32>, vector<8x64xf32>, vector<8x64xf32>, vector<8x64xf32>, vector<8x64xf32> -> vector<64x64xf32>
    %187 = arith.truncf %186 : vector<64x64xf32> to vector<64x64xbf16>
    %c0_44 = arith.constant 0 : index
    %c0_45 = arith.constant 0 : index
    %c0_46 = arith.constant 0 : index
    %188 = vector.load %arg3[%c0_44, %c0_45, %c0_46] : memref<2x64x128xbf16, #tpu.memory_space<vmem>>, vector<1x64x128xbf16>
    %189 = vector.shape_cast %188 : vector<1x64x128xbf16> to vector<64x128xbf16>
    %cst_47 = arith.constant dense<0.000000e+00> : vector<64x128xf32>
    %190 = tpu.matmul %187, %189, %cst_47 {dimension_numbers = #tpu.dot_dimension_numbers<[1], [0], [0], [1], [0, 0, 1, 1], [], []>} : vector<64x64xbf16>, vector<64x128xbf16>, vector<64x128xf32> -> vector<64x128xf32>
    %c1 = arith.constant 1 : index
    %c0_48 = arith.constant 0 : index
    %c0_49 = arith.constant 0 : index
    %191 = vector.load %arg7[%c1, %c0_48, %c0_49] : memref<3x1x128xf32, #tpu.memory_space<vmem>>, vector<1x1x128xf32>
    %192 = vector.shape_cast %191 : vector<1x1x128xf32> to vector<1x128xf32>
    %193 = vector.broadcast %192 : vector<1x128xf32> to vector<64x128xf32>
    %194 = arith.addf %190, %193 : vector<64x128xf32>
    %c0_50 = arith.constant 0 : index
    %c0_51 = arith.constant 0 : index
    %c0_52 = arith.constant 0 : index
    %195 = vector.load %arg4[%c0_50, %c0_51, %c0_52] : memref<2x64x64xbf16, #tpu.memory_space<vmem>>, vector<1x64x64xbf16>
    %196 = vector.shape_cast %195 : vector<1x64x64xbf16> to vector<64x64xbf16>
    %cst_53 = arith.constant dense<0.000000e+00> : vector<64x64xf32>
    %197 = tpu.matmul %187, %196, %cst_53 {dimension_numbers = #tpu.dot_dimension_numbers<[1], [0], [0], [1], [0, 0, 1, 1], [], []>} : vector<64x64xbf16>, vector<64x64xbf16>, vector<64x64xf32> -> vector<64x64xf32>
    %c1_54 = arith.constant 1 : index
    %c0_55 = arith.constant 0 : index
    %c0_56 = arith.constant 0 : index
    %198 = vector.load %arg8[%c1_54, %c0_55, %c0_56] : memref<3x1x64xf32, #tpu.memory_space<vmem>>, vector<1x1x64xf32>
    %199 = vector.shape_cast %198 : vector<1x1x64xf32> to vector<1x64xf32>
    %200 = vector.broadcast %199 : vector<1x64xf32> to vector<64x64xf32>
    %201 = arith.addf %197, %200 : vector<64x64xf32>
    %c1_57 = arith.constant 1 : index
    %c0_58 = arith.constant 0 : index
    %c0_59 = arith.constant 0 : index
    %202 = vector.load %arg5[%c1_57, %c0_58, %c0_59] : memref<3x64x128xbf16, #tpu.memory_space<vmem>>, vector<1x64x128xbf16>
    %203 = vector.shape_cast %202 : vector<1x64x128xbf16> to vector<64x128xbf16>
    %c1_60 = arith.constant 1 : index
    %c0_61 = arith.constant 0 : index
    %c0_62 = arith.constant 0 : index
    %204 = vector.load %arg6[%c1_60, %c0_61, %c0_62] : memref<3x64x64xbf16, #tpu.memory_space<vmem>>, vector<1x64x64xbf16>
    %205 = vector.shape_cast %204 : vector<1x64x64xbf16> to vector<64x64xbf16>
    %c1_63 = arith.constant 1 : index
    %c0_64 = arith.constant 0 : index
    %c0_65 = arith.constant 0 : index
    %206 = vector.load %arg9[%c1_63, %c0_64, %c0_65] : memref<3x1x64xf32, #tpu.memory_space<vmem>>, vector<1x1x64xf32>
    %207 = vector.shape_cast %206 : vector<1x1x64xf32> to vector<1x64xf32>
    %208 = vector.shape_cast %207 : vector<1x64xf32> to vector<1x64xf32>
    %209 = vector.broadcast %208 : vector<1x64xf32> to vector<8x64xf32>
    %cst_66 = arith.constant 0.000000e+00 : f32
    %210 = vector.broadcast %cst_66 : f32 to vector<8x64xf32>
    %211 = arith.truncf %210 : vector<8x64xf32> to vector<8x64xbf16>
    %212 = vector.extract_strided_slice %194 {offsets = [0, 0], sizes = [8, 128], strides = [1, 1]} : vector<64x128xf32> to vector<8x128xf32>
    %cst_67 = arith.constant dense<0.000000e+00> : vector<8x128xf32>
    %213 = tpu.matmul %211, %203, %cst_67 {dimension_numbers = #tpu.dot_dimension_numbers<[1], [0], [0], [1], [0, 0, 1, 1], [], []>} : vector<8x64xbf16>, vector<64x128xbf16>, vector<8x128xf32> -> vector<8x128xf32>
    %214 = arith.addf %212, %213 : vector<8x128xf32>
    %215 = arith.negf %214 : vector<8x128xf32>
    %216 = math.exp %215 : vector<8x128xf32>
    %cst_68 = arith.constant 1.000000e+00 : f32
    %217 = vector.broadcast %cst_68 : f32 to vector<8x128xf32>
    %218 = arith.addf %217, %216 : vector<8x128xf32>
    %219 = arith.divf %217, %218 : vector<8x128xf32>
    %220 = vector.extract_strided_slice %219 {offsets = [0, 0], sizes = [8, 64], strides = [1, 1]} : vector<8x128xf32> to vector<8x64xf32>
    %221 = vector.extract_strided_slice %219 {offsets = [0, 64], sizes = [8, 64], strides = [1, 1]} : vector<8x128xf32> to vector<8x64xf32>
    %cst_69 = arith.constant dense<0.000000e+00> : vector<8x64xf32>
    %222 = tpu.matmul %211, %205, %cst_69 {dimension_numbers = #tpu.dot_dimension_numbers<[1], [0], [0], [1], [0, 0, 1, 1], [], []>} : vector<8x64xbf16>, vector<64x64xbf16>, vector<8x64xf32> -> vector<8x64xf32>
    %223 = arith.addf %222, %209 : vector<8x64xf32>
    %224 = vector.extract_strided_slice %201 {offsets = [0, 0], sizes = [8, 64], strides = [1, 1]} : vector<64x64xf32> to vector<8x64xf32>
    %225 = arith.mulf %220, %223 : vector<8x64xf32>
    %226 = arith.addf %224, %225 : vector<8x64xf32>
    %227 = math.tanh %226 : vector<8x64xf32>
    %228 = arith.subf %210, %227 : vector<8x64xf32>
    %229 = arith.mulf %221, %228 : vector<8x64xf32>
    %230 = arith.addf %227, %229 : vector<8x64xf32>
    %231 = arith.truncf %230 : vector<8x64xf32> to vector<8x64xbf16>
    %232 = vector.extract_strided_slice %194 {offsets = [8, 0], sizes = [8, 128], strides = [1, 1]} : vector<64x128xf32> to vector<8x128xf32>
    %cst_70 = arith.constant dense<0.000000e+00> : vector<8x128xf32>
    %233 = tpu.matmul %231, %203, %cst_70 {dimension_numbers = #tpu.dot_dimension_numbers<[1], [0], [0], [1], [0, 0, 1, 1], [], []>} : vector<8x64xbf16>, vector<64x128xbf16>, vector<8x128xf32> -> vector<8x128xf32>
    %234 = arith.addf %232, %233 : vector<8x128xf32>
    %235 = arith.negf %234 : vector<8x128xf32>
    %236 = math.exp %235 : vector<8x128xf32>
    %cst_71 = arith.constant 1.000000e+00 : f32
    %237 = vector.broadcast %cst_71 : f32 to vector<8x128xf32>
    %238 = arith.addf %237, %236 : vector<8x128xf32>
    %239 = arith.divf %237, %238 : vector<8x128xf32>
    %240 = vector.extract_strided_slice %239 {offsets = [0, 0], sizes = [8, 64], strides = [1, 1]} : vector<8x128xf32> to vector<8x64xf32>
    %241 = vector.extract_strided_slice %239 {offsets = [0, 64], sizes = [8, 64], strides = [1, 1]} : vector<8x128xf32> to vector<8x64xf32>
    %cst_72 = arith.constant dense<0.000000e+00> : vector<8x64xf32>
    %242 = tpu.matmul %231, %205, %cst_72 {dimension_numbers = #tpu.dot_dimension_numbers<[1], [0], [0], [1], [0, 0, 1, 1], [], []>} : vector<8x64xbf16>, vector<64x64xbf16>, vector<8x64xf32> -> vector<8x64xf32>
    %243 = arith.addf %242, %209 : vector<8x64xf32>
    %244 = vector.extract_strided_slice %201 {offsets = [8, 0], sizes = [8, 64], strides = [1, 1]} : vector<64x64xf32> to vector<8x64xf32>
    %245 = arith.mulf %240, %243 : vector<8x64xf32>
    %246 = arith.addf %244, %245 : vector<8x64xf32>
    %247 = math.tanh %246 : vector<8x64xf32>
    %248 = arith.subf %230, %247 : vector<8x64xf32>
    %249 = arith.mulf %241, %248 : vector<8x64xf32>
    %250 = arith.addf %247, %249 : vector<8x64xf32>
    %251 = arith.truncf %250 : vector<8x64xf32> to vector<8x64xbf16>
    %252 = vector.extract_strided_slice %194 {offsets = [16, 0], sizes = [8, 128], strides = [1, 1]} : vector<64x128xf32> to vector<8x128xf32>
    %cst_73 = arith.constant dense<0.000000e+00> : vector<8x128xf32>
    %253 = tpu.matmul %251, %203, %cst_73 {dimension_numbers = #tpu.dot_dimension_numbers<[1], [0], [0], [1], [0, 0, 1, 1], [], []>} : vector<8x64xbf16>, vector<64x128xbf16>, vector<8x128xf32> -> vector<8x128xf32>
    %254 = arith.addf %252, %253 : vector<8x128xf32>
    %255 = arith.negf %254 : vector<8x128xf32>
    %256 = math.exp %255 : vector<8x128xf32>
    %cst_74 = arith.constant 1.000000e+00 : f32
    %257 = vector.broadcast %cst_74 : f32 to vector<8x128xf32>
    %258 = arith.addf %257, %256 : vector<8x128xf32>
    %259 = arith.divf %257, %258 : vector<8x128xf32>
    %260 = vector.extract_strided_slice %259 {offsets = [0, 0], sizes = [8, 64], strides = [1, 1]} : vector<8x128xf32> to vector<8x64xf32>
    %261 = vector.extract_strided_slice %259 {offsets = [0, 64], sizes = [8, 64], strides = [1, 1]} : vector<8x128xf32> to vector<8x64xf32>
    %cst_75 = arith.constant dense<0.000000e+00> : vector<8x64xf32>
    %262 = tpu.matmul %251, %205, %cst_75 {dimension_numbers = #tpu.dot_dimension_numbers<[1], [0], [0], [1], [0, 0, 1, 1], [], []>} : vector<8x64xbf16>, vector<64x64xbf16>, vector<8x64xf32> -> vector<8x64xf32>
    %263 = arith.addf %262, %209 : vector<8x64xf32>
    %264 = vector.extract_strided_slice %201 {offsets = [16, 0], sizes = [8, 64], strides = [1, 1]} : vector<64x64xf32> to vector<8x64xf32>
    %265 = arith.mulf %260, %263 : vector<8x64xf32>
    %266 = arith.addf %264, %265 : vector<8x64xf32>
    %267 = math.tanh %266 : vector<8x64xf32>
    %268 = arith.subf %250, %267 : vector<8x64xf32>
    %269 = arith.mulf %261, %268 : vector<8x64xf32>
    %270 = arith.addf %267, %269 : vector<8x64xf32>
    %271 = arith.truncf %270 : vector<8x64xf32> to vector<8x64xbf16>
    %272 = vector.extract_strided_slice %194 {offsets = [24, 0], sizes = [8, 128], strides = [1, 1]} : vector<64x128xf32> to vector<8x128xf32>
    %cst_76 = arith.constant dense<0.000000e+00> : vector<8x128xf32>
    %273 = tpu.matmul %271, %203, %cst_76 {dimension_numbers = #tpu.dot_dimension_numbers<[1], [0], [0], [1], [0, 0, 1, 1], [], []>} : vector<8x64xbf16>, vector<64x128xbf16>, vector<8x128xf32> -> vector<8x128xf32>
    %274 = arith.addf %272, %273 : vector<8x128xf32>
    %275 = arith.negf %274 : vector<8x128xf32>
    %276 = math.exp %275 : vector<8x128xf32>
    %cst_77 = arith.constant 1.000000e+00 : f32
    %277 = vector.broadcast %cst_77 : f32 to vector<8x128xf32>
    %278 = arith.addf %277, %276 : vector<8x128xf32>
    %279 = arith.divf %277, %278 : vector<8x128xf32>
    %280 = vector.extract_strided_slice %279 {offsets = [0, 0], sizes = [8, 64], strides = [1, 1]} : vector<8x128xf32> to vector<8x64xf32>
    %281 = vector.extract_strided_slice %279 {offsets = [0, 64], sizes = [8, 64], strides = [1, 1]} : vector<8x128xf32> to vector<8x64xf32>
    %cst_78 = arith.constant dense<0.000000e+00> : vector<8x64xf32>
    %282 = tpu.matmul %271, %205, %cst_78 {dimension_numbers = #tpu.dot_dimension_numbers<[1], [0], [0], [1], [0, 0, 1, 1], [], []>} : vector<8x64xbf16>, vector<64x64xbf16>, vector<8x64xf32> -> vector<8x64xf32>
    %283 = arith.addf %282, %209 : vector<8x64xf32>
    %284 = vector.extract_strided_slice %201 {offsets = [24, 0], sizes = [8, 64], strides = [1, 1]} : vector<64x64xf32> to vector<8x64xf32>
    %285 = arith.mulf %280, %283 : vector<8x64xf32>
    %286 = arith.addf %284, %285 : vector<8x64xf32>
    %287 = math.tanh %286 : vector<8x64xf32>
    %288 = arith.subf %270, %287 : vector<8x64xf32>
    %289 = arith.mulf %281, %288 : vector<8x64xf32>
    %290 = arith.addf %287, %289 : vector<8x64xf32>
    %291 = arith.truncf %290 : vector<8x64xf32> to vector<8x64xbf16>
    %292 = vector.extract_strided_slice %194 {offsets = [32, 0], sizes = [8, 128], strides = [1, 1]} : vector<64x128xf32> to vector<8x128xf32>
    %cst_79 = arith.constant dense<0.000000e+00> : vector<8x128xf32>
    %293 = tpu.matmul %291, %203, %cst_79 {dimension_numbers = #tpu.dot_dimension_numbers<[1], [0], [0], [1], [0, 0, 1, 1], [], []>} : vector<8x64xbf16>, vector<64x128xbf16>, vector<8x128xf32> -> vector<8x128xf32>
    %294 = arith.addf %292, %293 : vector<8x128xf32>
    %295 = arith.negf %294 : vector<8x128xf32>
    %296 = math.exp %295 : vector<8x128xf32>
    %cst_80 = arith.constant 1.000000e+00 : f32
    %297 = vector.broadcast %cst_80 : f32 to vector<8x128xf32>
    %298 = arith.addf %297, %296 : vector<8x128xf32>
    %299 = arith.divf %297, %298 : vector<8x128xf32>
    %300 = vector.extract_strided_slice %299 {offsets = [0, 0], sizes = [8, 64], strides = [1, 1]} : vector<8x128xf32> to vector<8x64xf32>
    %301 = vector.extract_strided_slice %299 {offsets = [0, 64], sizes = [8, 64], strides = [1, 1]} : vector<8x128xf32> to vector<8x64xf32>
    %cst_81 = arith.constant dense<0.000000e+00> : vector<8x64xf32>
    %302 = tpu.matmul %291, %205, %cst_81 {dimension_numbers = #tpu.dot_dimension_numbers<[1], [0], [0], [1], [0, 0, 1, 1], [], []>} : vector<8x64xbf16>, vector<64x64xbf16>, vector<8x64xf32> -> vector<8x64xf32>
    %303 = arith.addf %302, %209 : vector<8x64xf32>
    %304 = vector.extract_strided_slice %201 {offsets = [32, 0], sizes = [8, 64], strides = [1, 1]} : vector<64x64xf32> to vector<8x64xf32>
    %305 = arith.mulf %300, %303 : vector<8x64xf32>
    %306 = arith.addf %304, %305 : vector<8x64xf32>
    %307 = math.tanh %306 : vector<8x64xf32>
    %308 = arith.subf %290, %307 : vector<8x64xf32>
    %309 = arith.mulf %301, %308 : vector<8x64xf32>
    %310 = arith.addf %307, %309 : vector<8x64xf32>
    %311 = arith.truncf %310 : vector<8x64xf32> to vector<8x64xbf16>
    %312 = vector.extract_strided_slice %194 {offsets = [40, 0], sizes = [8, 128], strides = [1, 1]} : vector<64x128xf32> to vector<8x128xf32>
    %cst_82 = arith.constant dense<0.000000e+00> : vector<8x128xf32>
    %313 = tpu.matmul %311, %203, %cst_82 {dimension_numbers = #tpu.dot_dimension_numbers<[1], [0], [0], [1], [0, 0, 1, 1], [], []>} : vector<8x64xbf16>, vector<64x128xbf16>, vector<8x128xf32> -> vector<8x128xf32>
    %314 = arith.addf %312, %313 : vector<8x128xf32>
    %315 = arith.negf %314 : vector<8x128xf32>
    %316 = math.exp %315 : vector<8x128xf32>
    %cst_83 = arith.constant 1.000000e+00 : f32
    %317 = vector.broadcast %cst_83 : f32 to vector<8x128xf32>
    %318 = arith.addf %317, %316 : vector<8x128xf32>
    %319 = arith.divf %317, %318 : vector<8x128xf32>
    %320 = vector.extract_strided_slice %319 {offsets = [0, 0], sizes = [8, 64], strides = [1, 1]} : vector<8x128xf32> to vector<8x64xf32>
    %321 = vector.extract_strided_slice %319 {offsets = [0, 64], sizes = [8, 64], strides = [1, 1]} : vector<8x128xf32> to vector<8x64xf32>
    %cst_84 = arith.constant dense<0.000000e+00> : vector<8x64xf32>
    %322 = tpu.matmul %311, %205, %cst_84 {dimension_numbers = #tpu.dot_dimension_numbers<[1], [0], [0], [1], [0, 0, 1, 1], [], []>} : vector<8x64xbf16>, vector<64x64xbf16>, vector<8x64xf32> -> vector<8x64xf32>
    %323 = arith.addf %322, %209 : vector<8x64xf32>
    %324 = vector.extract_strided_slice %201 {offsets = [40, 0], sizes = [8, 64], strides = [1, 1]} : vector<64x64xf32> to vector<8x64xf32>
    %325 = arith.mulf %320, %323 : vector<8x64xf32>
    %326 = arith.addf %324, %325 : vector<8x64xf32>
    %327 = math.tanh %326 : vector<8x64xf32>
    %328 = arith.subf %310, %327 : vector<8x64xf32>
    %329 = arith.mulf %321, %328 : vector<8x64xf32>
    %330 = arith.addf %327, %329 : vector<8x64xf32>
    %331 = arith.truncf %330 : vector<8x64xf32> to vector<8x64xbf16>
    %332 = vector.extract_strided_slice %194 {offsets = [48, 0], sizes = [8, 128], strides = [1, 1]} : vector<64x128xf32> to vector<8x128xf32>
    %cst_85 = arith.constant dense<0.000000e+00> : vector<8x128xf32>
    %333 = tpu.matmul %331, %203, %cst_85 {dimension_numbers = #tpu.dot_dimension_numbers<[1], [0], [0], [1], [0, 0, 1, 1], [], []>} : vector<8x64xbf16>, vector<64x128xbf16>, vector<8x128xf32> -> vector<8x128xf32>
    %334 = arith.addf %332, %333 : vector<8x128xf32>
    %335 = arith.negf %334 : vector<8x128xf32>
    %336 = math.exp %335 : vector<8x128xf32>
    %cst_86 = arith.constant 1.000000e+00 : f32
    %337 = vector.broadcast %cst_86 : f32 to vector<8x128xf32>
    %338 = arith.addf %337, %336 : vector<8x128xf32>
    %339 = arith.divf %337, %338 : vector<8x128xf32>
    %340 = vector.extract_strided_slice %339 {offsets = [0, 0], sizes = [8, 64], strides = [1, 1]} : vector<8x128xf32> to vector<8x64xf32>
    %341 = vector.extract_strided_slice %339 {offsets = [0, 64], sizes = [8, 64], strides = [1, 1]} : vector<8x128xf32> to vector<8x64xf32>
    %cst_87 = arith.constant dense<0.000000e+00> : vector<8x64xf32>
    %342 = tpu.matmul %331, %205, %cst_87 {dimension_numbers = #tpu.dot_dimension_numbers<[1], [0], [0], [1], [0, 0, 1, 1], [], []>} : vector<8x64xbf16>, vector<64x64xbf16>, vector<8x64xf32> -> vector<8x64xf32>
    %343 = arith.addf %342, %209 : vector<8x64xf32>
    %344 = vector.extract_strided_slice %201 {offsets = [48, 0], sizes = [8, 64], strides = [1, 1]} : vector<64x64xf32> to vector<8x64xf32>
    %345 = arith.mulf %340, %343 : vector<8x64xf32>
    %346 = arith.addf %344, %345 : vector<8x64xf32>
    %347 = math.tanh %346 : vector<8x64xf32>
    %348 = arith.subf %330, %347 : vector<8x64xf32>
    %349 = arith.mulf %341, %348 : vector<8x64xf32>
    %350 = arith.addf %347, %349 : vector<8x64xf32>
    %351 = arith.truncf %350 : vector<8x64xf32> to vector<8x64xbf16>
    %352 = vector.extract_strided_slice %194 {offsets = [56, 0], sizes = [8, 128], strides = [1, 1]} : vector<64x128xf32> to vector<8x128xf32>
    %cst_88 = arith.constant dense<0.000000e+00> : vector<8x128xf32>
    %353 = tpu.matmul %351, %203, %cst_88 {dimension_numbers = #tpu.dot_dimension_numbers<[1], [0], [0], [1], [0, 0, 1, 1], [], []>} : vector<8x64xbf16>, vector<64x128xbf16>, vector<8x128xf32> -> vector<8x128xf32>
    %354 = arith.addf %352, %353 : vector<8x128xf32>
    %355 = arith.negf %354 : vector<8x128xf32>
    %356 = math.exp %355 : vector<8x128xf32>
    %cst_89 = arith.constant 1.000000e+00 : f32
    %357 = vector.broadcast %cst_89 : f32 to vector<8x128xf32>
    %358 = arith.addf %357, %356 : vector<8x128xf32>
    %359 = arith.divf %357, %358 : vector<8x128xf32>
    %360 = vector.extract_strided_slice %359 {offsets = [0, 0], sizes = [8, 64], strides = [1, 1]} : vector<8x128xf32> to vector<8x64xf32>
    %361 = vector.extract_strided_slice %359 {offsets = [0, 64], sizes = [8, 64], strides = [1, 1]} : vector<8x128xf32> to vector<8x64xf32>
    %cst_90 = arith.constant dense<0.000000e+00> : vector<8x64xf32>
    %362 = tpu.matmul %351, %205, %cst_90 {dimension_numbers = #tpu.dot_dimension_numbers<[1], [0], [0], [1], [0, 0, 1, 1], [], []>} : vector<8x64xbf16>, vector<64x64xbf16>, vector<8x64xf32> -> vector<8x64xf32>
    %363 = arith.addf %362, %209 : vector<8x64xf32>
    %364 = vector.extract_strided_slice %201 {offsets = [56, 0], sizes = [8, 64], strides = [1, 1]} : vector<64x64xf32> to vector<8x64xf32>
    %365 = arith.mulf %360, %363 : vector<8x64xf32>
    %366 = arith.addf %364, %365 : vector<8x64xf32>
    %367 = math.tanh %366 : vector<8x64xf32>
    %368 = arith.subf %350, %367 : vector<8x64xf32>
    %369 = arith.mulf %361, %368 : vector<8x64xf32>
    %370 = arith.addf %367, %369 : vector<8x64xf32>
    %371 = tpu.concatenate %230, %250, %270, %290, %310, %330, %350, %370 in 0 : vector<8x64xf32>, vector<8x64xf32>, vector<8x64xf32>, vector<8x64xf32>, vector<8x64xf32>, vector<8x64xf32>, vector<8x64xf32>, vector<8x64xf32> -> vector<64x64xf32>
    %372 = arith.truncf %371 : vector<64x64xf32> to vector<64x64xbf16>
    %c1_91 = arith.constant 1 : index
    %c0_92 = arith.constant 0 : index
    %c0_93 = arith.constant 0 : index
    %373 = vector.load %arg3[%c1_91, %c0_92, %c0_93] : memref<2x64x128xbf16, #tpu.memory_space<vmem>>, vector<1x64x128xbf16>
    %374 = vector.shape_cast %373 : vector<1x64x128xbf16> to vector<64x128xbf16>
    %cst_94 = arith.constant dense<0.000000e+00> : vector<64x128xf32>
    %375 = tpu.matmul %372, %374, %cst_94 {dimension_numbers = #tpu.dot_dimension_numbers<[1], [0], [0], [1], [0, 0, 1, 1], [], []>} : vector<64x64xbf16>, vector<64x128xbf16>, vector<64x128xf32> -> vector<64x128xf32>
    %c2 = arith.constant 2 : index
    %c0_95 = arith.constant 0 : index
    %c0_96 = arith.constant 0 : index
    %376 = vector.load %arg7[%c2, %c0_95, %c0_96] : memref<3x1x128xf32, #tpu.memory_space<vmem>>, vector<1x1x128xf32>
    %377 = vector.shape_cast %376 : vector<1x1x128xf32> to vector<1x128xf32>
    %378 = vector.broadcast %377 : vector<1x128xf32> to vector<64x128xf32>
    %379 = arith.addf %375, %378 : vector<64x128xf32>
    %c1_97 = arith.constant 1 : index
    %c0_98 = arith.constant 0 : index
    %c0_99 = arith.constant 0 : index
    %380 = vector.load %arg4[%c1_97, %c0_98, %c0_99] : memref<2x64x64xbf16, #tpu.memory_space<vmem>>, vector<1x64x64xbf16>
    %381 = vector.shape_cast %380 : vector<1x64x64xbf16> to vector<64x64xbf16>
    %cst_100 = arith.constant dense<0.000000e+00> : vector<64x64xf32>
    %382 = tpu.matmul %372, %381, %cst_100 {dimension_numbers = #tpu.dot_dimension_numbers<[1], [0], [0], [1], [0, 0, 1, 1], [], []>} : vector<64x64xbf16>, vector<64x64xbf16>, vector<64x64xf32> -> vector<64x64xf32>
    %c2_101 = arith.constant 2 : index
    %c0_102 = arith.constant 0 : index
    %c0_103 = arith.constant 0 : index
    %383 = vector.load %arg8[%c2_101, %c0_102, %c0_103] : memref<3x1x64xf32, #tpu.memory_space<vmem>>, vector<1x1x64xf32>
    %384 = vector.shape_cast %383 : vector<1x1x64xf32> to vector<1x64xf32>
    %385 = vector.broadcast %384 : vector<1x64xf32> to vector<64x64xf32>
    %386 = arith.addf %382, %385 : vector<64x64xf32>
    %c2_104 = arith.constant 2 : index
    %c0_105 = arith.constant 0 : index
    %c0_106 = arith.constant 0 : index
    %387 = vector.load %arg5[%c2_104, %c0_105, %c0_106] : memref<3x64x128xbf16, #tpu.memory_space<vmem>>, vector<1x64x128xbf16>
    %388 = vector.shape_cast %387 : vector<1x64x128xbf16> to vector<64x128xbf16>
    %c2_107 = arith.constant 2 : index
    %c0_108 = arith.constant 0 : index
    %c0_109 = arith.constant 0 : index
    %389 = vector.load %arg6[%c2_107, %c0_108, %c0_109] : memref<3x64x64xbf16, #tpu.memory_space<vmem>>, vector<1x64x64xbf16>
    %390 = vector.shape_cast %389 : vector<1x64x64xbf16> to vector<64x64xbf16>
    %c2_110 = arith.constant 2 : index
    %c0_111 = arith.constant 0 : index
    %c0_112 = arith.constant 0 : index
    %391 = vector.load %arg9[%c2_110, %c0_111, %c0_112] : memref<3x1x64xf32, #tpu.memory_space<vmem>>, vector<1x1x64xf32>
    %392 = vector.shape_cast %391 : vector<1x1x64xf32> to vector<1x64xf32>
    %393 = vector.shape_cast %392 : vector<1x64xf32> to vector<1x64xf32>
    %394 = vector.broadcast %393 : vector<1x64xf32> to vector<8x64xf32>
    %cst_113 = arith.constant 0.000000e+00 : f32
    %395 = vector.broadcast %cst_113 : f32 to vector<8x64xf32>
    %396 = arith.truncf %395 : vector<8x64xf32> to vector<8x64xbf16>
    %397 = vector.extract_strided_slice %379 {offsets = [0, 0], sizes = [8, 128], strides = [1, 1]} : vector<64x128xf32> to vector<8x128xf32>
    %cst_114 = arith.constant dense<0.000000e+00> : vector<8x128xf32>
    %398 = tpu.matmul %396, %388, %cst_114 {dimension_numbers = #tpu.dot_dimension_numbers<[1], [0], [0], [1], [0, 0, 1, 1], [], []>} : vector<8x64xbf16>, vector<64x128xbf16>, vector<8x128xf32> -> vector<8x128xf32>
    %399 = arith.addf %397, %398 : vector<8x128xf32>
    %400 = arith.negf %399 : vector<8x128xf32>
    %401 = math.exp %400 : vector<8x128xf32>
    %cst_115 = arith.constant 1.000000e+00 : f32
    %402 = vector.broadcast %cst_115 : f32 to vector<8x128xf32>
    %403 = arith.addf %402, %401 : vector<8x128xf32>
    %404 = arith.divf %402, %403 : vector<8x128xf32>
    %405 = vector.extract_strided_slice %404 {offsets = [0, 0], sizes = [8, 64], strides = [1, 1]} : vector<8x128xf32> to vector<8x64xf32>
    %406 = vector.extract_strided_slice %404 {offsets = [0, 64], sizes = [8, 64], strides = [1, 1]} : vector<8x128xf32> to vector<8x64xf32>
    %cst_116 = arith.constant dense<0.000000e+00> : vector<8x64xf32>
    %407 = tpu.matmul %396, %390, %cst_116 {dimension_numbers = #tpu.dot_dimension_numbers<[1], [0], [0], [1], [0, 0, 1, 1], [], []>} : vector<8x64xbf16>, vector<64x64xbf16>, vector<8x64xf32> -> vector<8x64xf32>
    %408 = arith.addf %407, %394 : vector<8x64xf32>
    %409 = vector.extract_strided_slice %386 {offsets = [0, 0], sizes = [8, 64], strides = [1, 1]} : vector<64x64xf32> to vector<8x64xf32>
    %410 = arith.mulf %405, %408 : vector<8x64xf32>
    %411 = arith.addf %409, %410 : vector<8x64xf32>
    %412 = math.tanh %411 : vector<8x64xf32>
    %413 = arith.subf %395, %412 : vector<8x64xf32>
    %414 = arith.mulf %406, %413 : vector<8x64xf32>
    %415 = arith.addf %412, %414 : vector<8x64xf32>
    %416 = arith.truncf %415 : vector<8x64xf32> to vector<8x64xbf16>
    %417 = vector.extract_strided_slice %379 {offsets = [8, 0], sizes = [8, 128], strides = [1, 1]} : vector<64x128xf32> to vector<8x128xf32>
    %cst_117 = arith.constant dense<0.000000e+00> : vector<8x128xf32>
    %418 = tpu.matmul %416, %388, %cst_117 {dimension_numbers = #tpu.dot_dimension_numbers<[1], [0], [0], [1], [0, 0, 1, 1], [], []>} : vector<8x64xbf16>, vector<64x128xbf16>, vector<8x128xf32> -> vector<8x128xf32>
    %419 = arith.addf %417, %418 : vector<8x128xf32>
    %420 = arith.negf %419 : vector<8x128xf32>
    %421 = math.exp %420 : vector<8x128xf32>
    %cst_118 = arith.constant 1.000000e+00 : f32
    %422 = vector.broadcast %cst_118 : f32 to vector<8x128xf32>
    %423 = arith.addf %422, %421 : vector<8x128xf32>
    %424 = arith.divf %422, %423 : vector<8x128xf32>
    %425 = vector.extract_strided_slice %424 {offsets = [0, 0], sizes = [8, 64], strides = [1, 1]} : vector<8x128xf32> to vector<8x64xf32>
    %426 = vector.extract_strided_slice %424 {offsets = [0, 64], sizes = [8, 64], strides = [1, 1]} : vector<8x128xf32> to vector<8x64xf32>
    %cst_119 = arith.constant dense<0.000000e+00> : vector<8x64xf32>
    %427 = tpu.matmul %416, %390, %cst_119 {dimension_numbers = #tpu.dot_dimension_numbers<[1], [0], [0], [1], [0, 0, 1, 1], [], []>} : vector<8x64xbf16>, vector<64x64xbf16>, vector<8x64xf32> -> vector<8x64xf32>
    %428 = arith.addf %427, %394 : vector<8x64xf32>
    %429 = vector.extract_strided_slice %386 {offsets = [8, 0], sizes = [8, 64], strides = [1, 1]} : vector<64x64xf32> to vector<8x64xf32>
    %430 = arith.mulf %425, %428 : vector<8x64xf32>
    %431 = arith.addf %429, %430 : vector<8x64xf32>
    %432 = math.tanh %431 : vector<8x64xf32>
    %433 = arith.subf %415, %432 : vector<8x64xf32>
    %434 = arith.mulf %426, %433 : vector<8x64xf32>
    %435 = arith.addf %432, %434 : vector<8x64xf32>
    %436 = arith.truncf %435 : vector<8x64xf32> to vector<8x64xbf16>
    %437 = vector.extract_strided_slice %379 {offsets = [16, 0], sizes = [8, 128], strides = [1, 1]} : vector<64x128xf32> to vector<8x128xf32>
    %cst_120 = arith.constant dense<0.000000e+00> : vector<8x128xf32>
    %438 = tpu.matmul %436, %388, %cst_120 {dimension_numbers = #tpu.dot_dimension_numbers<[1], [0], [0], [1], [0, 0, 1, 1], [], []>} : vector<8x64xbf16>, vector<64x128xbf16>, vector<8x128xf32> -> vector<8x128xf32>
    %439 = arith.addf %437, %438 : vector<8x128xf32>
    %440 = arith.negf %439 : vector<8x128xf32>
    %441 = math.exp %440 : vector<8x128xf32>
    %cst_121 = arith.constant 1.000000e+00 : f32
    %442 = vector.broadcast %cst_121 : f32 to vector<8x128xf32>
    %443 = arith.addf %442, %441 : vector<8x128xf32>
    %444 = arith.divf %442, %443 : vector<8x128xf32>
    %445 = vector.extract_strided_slice %444 {offsets = [0, 0], sizes = [8, 64], strides = [1, 1]} : vector<8x128xf32> to vector<8x64xf32>
    %446 = vector.extract_strided_slice %444 {offsets = [0, 64], sizes = [8, 64], strides = [1, 1]} : vector<8x128xf32> to vector<8x64xf32>
    %cst_122 = arith.constant dense<0.000000e+00> : vector<8x64xf32>
    %447 = tpu.matmul %436, %390, %cst_122 {dimension_numbers = #tpu.dot_dimension_numbers<[1], [0], [0], [1], [0, 0, 1, 1], [], []>} : vector<8x64xbf16>, vector<64x64xbf16>, vector<8x64xf32> -> vector<8x64xf32>
    %448 = arith.addf %447, %394 : vector<8x64xf32>
    %449 = vector.extract_strided_slice %386 {offsets = [16, 0], sizes = [8, 64], strides = [1, 1]} : vector<64x64xf32> to vector<8x64xf32>
    %450 = arith.mulf %445, %448 : vector<8x64xf32>
    %451 = arith.addf %449, %450 : vector<8x64xf32>
    %452 = math.tanh %451 : vector<8x64xf32>
    %453 = arith.subf %435, %452 : vector<8x64xf32>
    %454 = arith.mulf %446, %453 : vector<8x64xf32>
    %455 = arith.addf %452, %454 : vector<8x64xf32>
    %456 = arith.truncf %455 : vector<8x64xf32> to vector<8x64xbf16>
    %457 = vector.extract_strided_slice %379 {offsets = [24, 0], sizes = [8, 128], strides = [1, 1]} : vector<64x128xf32> to vector<8x128xf32>
    %cst_123 = arith.constant dense<0.000000e+00> : vector<8x128xf32>
    %458 = tpu.matmul %456, %388, %cst_123 {dimension_numbers = #tpu.dot_dimension_numbers<[1], [0], [0], [1], [0, 0, 1, 1], [], []>} : vector<8x64xbf16>, vector<64x128xbf16>, vector<8x128xf32> -> vector<8x128xf32>
    %459 = arith.addf %457, %458 : vector<8x128xf32>
    %460 = arith.negf %459 : vector<8x128xf32>
    %461 = math.exp %460 : vector<8x128xf32>
    %cst_124 = arith.constant 1.000000e+00 : f32
    %462 = vector.broadcast %cst_124 : f32 to vector<8x128xf32>
    %463 = arith.addf %462, %461 : vector<8x128xf32>
    %464 = arith.divf %462, %463 : vector<8x128xf32>
    %465 = vector.extract_strided_slice %464 {offsets = [0, 0], sizes = [8, 64], strides = [1, 1]} : vector<8x128xf32> to vector<8x64xf32>
    %466 = vector.extract_strided_slice %464 {offsets = [0, 64], sizes = [8, 64], strides = [1, 1]} : vector<8x128xf32> to vector<8x64xf32>
    %cst_125 = arith.constant dense<0.000000e+00> : vector<8x64xf32>
    %467 = tpu.matmul %456, %390, %cst_125 {dimension_numbers = #tpu.dot_dimension_numbers<[1], [0], [0], [1], [0, 0, 1, 1], [], []>} : vector<8x64xbf16>, vector<64x64xbf16>, vector<8x64xf32> -> vector<8x64xf32>
    %468 = arith.addf %467, %394 : vector<8x64xf32>
    %469 = vector.extract_strided_slice %386 {offsets = [24, 0], sizes = [8, 64], strides = [1, 1]} : vector<64x64xf32> to vector<8x64xf32>
    %470 = arith.mulf %465, %468 : vector<8x64xf32>
    %471 = arith.addf %469, %470 : vector<8x64xf32>
    %472 = math.tanh %471 : vector<8x64xf32>
    %473 = arith.subf %455, %472 : vector<8x64xf32>
    %474 = arith.mulf %466, %473 : vector<8x64xf32>
    %475 = arith.addf %472, %474 : vector<8x64xf32>
    %476 = arith.truncf %475 : vector<8x64xf32> to vector<8x64xbf16>
    %477 = vector.extract_strided_slice %379 {offsets = [32, 0], sizes = [8, 128], strides = [1, 1]} : vector<64x128xf32> to vector<8x128xf32>
    %cst_126 = arith.constant dense<0.000000e+00> : vector<8x128xf32>
    %478 = tpu.matmul %476, %388, %cst_126 {dimension_numbers = #tpu.dot_dimension_numbers<[1], [0], [0], [1], [0, 0, 1, 1], [], []>} : vector<8x64xbf16>, vector<64x128xbf16>, vector<8x128xf32> -> vector<8x128xf32>
    %479 = arith.addf %477, %478 : vector<8x128xf32>
    %480 = arith.negf %479 : vector<8x128xf32>
    %481 = math.exp %480 : vector<8x128xf32>
    %cst_127 = arith.constant 1.000000e+00 : f32
    %482 = vector.broadcast %cst_127 : f32 to vector<8x128xf32>
    %483 = arith.addf %482, %481 : vector<8x128xf32>
    %484 = arith.divf %482, %483 : vector<8x128xf32>
    %485 = vector.extract_strided_slice %484 {offsets = [0, 0], sizes = [8, 64], strides = [1, 1]} : vector<8x128xf32> to vector<8x64xf32>
    %486 = vector.extract_strided_slice %484 {offsets = [0, 64], sizes = [8, 64], strides = [1, 1]} : vector<8x128xf32> to vector<8x64xf32>
    %cst_128 = arith.constant dense<0.000000e+00> : vector<8x64xf32>
    %487 = tpu.matmul %476, %390, %cst_128 {dimension_numbers = #tpu.dot_dimension_numbers<[1], [0], [0], [1], [0, 0, 1, 1], [], []>} : vector<8x64xbf16>, vector<64x64xbf16>, vector<8x64xf32> -> vector<8x64xf32>
    %488 = arith.addf %487, %394 : vector<8x64xf32>
    %489 = vector.extract_strided_slice %386 {offsets = [32, 0], sizes = [8, 64], strides = [1, 1]} : vector<64x64xf32> to vector<8x64xf32>
    %490 = arith.mulf %485, %488 : vector<8x64xf32>
    %491 = arith.addf %489, %490 : vector<8x64xf32>
    %492 = math.tanh %491 : vector<8x64xf32>
    %493 = arith.subf %475, %492 : vector<8x64xf32>
    %494 = arith.mulf %486, %493 : vector<8x64xf32>
    %495 = arith.addf %492, %494 : vector<8x64xf32>
    %496 = arith.truncf %495 : vector<8x64xf32> to vector<8x64xbf16>
    %497 = vector.extract_strided_slice %379 {offsets = [40, 0], sizes = [8, 128], strides = [1, 1]} : vector<64x128xf32> to vector<8x128xf32>
    %cst_129 = arith.constant dense<0.000000e+00> : vector<8x128xf32>
    %498 = tpu.matmul %496, %388, %cst_129 {dimension_numbers = #tpu.dot_dimension_numbers<[1], [0], [0], [1], [0, 0, 1, 1], [], []>} : vector<8x64xbf16>, vector<64x128xbf16>, vector<8x128xf32> -> vector<8x128xf32>
    %499 = arith.addf %497, %498 : vector<8x128xf32>
    %500 = arith.negf %499 : vector<8x128xf32>
    %501 = math.exp %500 : vector<8x128xf32>
    %cst_130 = arith.constant 1.000000e+00 : f32
    %502 = vector.broadcast %cst_130 : f32 to vector<8x128xf32>
    %503 = arith.addf %502, %501 : vector<8x128xf32>
    %504 = arith.divf %502, %503 : vector<8x128xf32>
    %505 = vector.extract_strided_slice %504 {offsets = [0, 0], sizes = [8, 64], strides = [1, 1]} : vector<8x128xf32> to vector<8x64xf32>
    %506 = vector.extract_strided_slice %504 {offsets = [0, 64], sizes = [8, 64], strides = [1, 1]} : vector<8x128xf32> to vector<8x64xf32>
    %cst_131 = arith.constant dense<0.000000e+00> : vector<8x64xf32>
    %507 = tpu.matmul %496, %390, %cst_131 {dimension_numbers = #tpu.dot_dimension_numbers<[1], [0], [0], [1], [0, 0, 1, 1], [], []>} : vector<8x64xbf16>, vector<64x64xbf16>, vector<8x64xf32> -> vector<8x64xf32>
    %508 = arith.addf %507, %394 : vector<8x64xf32>
    %509 = vector.extract_strided_slice %386 {offsets = [40, 0], sizes = [8, 64], strides = [1, 1]} : vector<64x64xf32> to vector<8x64xf32>
    %510 = arith.mulf %505, %508 : vector<8x64xf32>
    %511 = arith.addf %509, %510 : vector<8x64xf32>
    %512 = math.tanh %511 : vector<8x64xf32>
    %513 = arith.subf %495, %512 : vector<8x64xf32>
    %514 = arith.mulf %506, %513 : vector<8x64xf32>
    %515 = arith.addf %512, %514 : vector<8x64xf32>
    %516 = arith.truncf %515 : vector<8x64xf32> to vector<8x64xbf16>
    %517 = vector.extract_strided_slice %379 {offsets = [48, 0], sizes = [8, 128], strides = [1, 1]} : vector<64x128xf32> to vector<8x128xf32>
    %cst_132 = arith.constant dense<0.000000e+00> : vector<8x128xf32>
    %518 = tpu.matmul %516, %388, %cst_132 {dimension_numbers = #tpu.dot_dimension_numbers<[1], [0], [0], [1], [0, 0, 1, 1], [], []>} : vector<8x64xbf16>, vector<64x128xbf16>, vector<8x128xf32> -> vector<8x128xf32>
    %519 = arith.addf %517, %518 : vector<8x128xf32>
    %520 = arith.negf %519 : vector<8x128xf32>
    %521 = math.exp %520 : vector<8x128xf32>
    %cst_133 = arith.constant 1.000000e+00 : f32
    %522 = vector.broadcast %cst_133 : f32 to vector<8x128xf32>
    %523 = arith.addf %522, %521 : vector<8x128xf32>
    %524 = arith.divf %522, %523 : vector<8x128xf32>
    %525 = vector.extract_strided_slice %524 {offsets = [0, 0], sizes = [8, 64], strides = [1, 1]} : vector<8x128xf32> to vector<8x64xf32>
    %526 = vector.extract_strided_slice %524 {offsets = [0, 64], sizes = [8, 64], strides = [1, 1]} : vector<8x128xf32> to vector<8x64xf32>
    %cst_134 = arith.constant dense<0.000000e+00> : vector<8x64xf32>
    %527 = tpu.matmul %516, %390, %cst_134 {dimension_numbers = #tpu.dot_dimension_numbers<[1], [0], [0], [1], [0, 0, 1, 1], [], []>} : vector<8x64xbf16>, vector<64x64xbf16>, vector<8x64xf32> -> vector<8x64xf32>
    %528 = arith.addf %527, %394 : vector<8x64xf32>
    %529 = vector.extract_strided_slice %386 {offsets = [48, 0], sizes = [8, 64], strides = [1, 1]} : vector<64x64xf32> to vector<8x64xf32>
    %530 = arith.mulf %525, %528 : vector<8x64xf32>
    %531 = arith.addf %529, %530 : vector<8x64xf32>
    %532 = math.tanh %531 : vector<8x64xf32>
    %533 = arith.subf %515, %532 : vector<8x64xf32>
    %534 = arith.mulf %526, %533 : vector<8x64xf32>
    %535 = arith.addf %532, %534 : vector<8x64xf32>
    %536 = arith.truncf %535 : vector<8x64xf32> to vector<8x64xbf16>
    %537 = vector.extract_strided_slice %379 {offsets = [56, 0], sizes = [8, 128], strides = [1, 1]} : vector<64x128xf32> to vector<8x128xf32>
    %cst_135 = arith.constant dense<0.000000e+00> : vector<8x128xf32>
    %538 = tpu.matmul %536, %388, %cst_135 {dimension_numbers = #tpu.dot_dimension_numbers<[1], [0], [0], [1], [0, 0, 1, 1], [], []>} : vector<8x64xbf16>, vector<64x128xbf16>, vector<8x128xf32> -> vector<8x128xf32>
    %539 = arith.addf %537, %538 : vector<8x128xf32>
    %540 = arith.negf %539 : vector<8x128xf32>
    %541 = math.exp %540 : vector<8x128xf32>
    %cst_136 = arith.constant 1.000000e+00 : f32
    %542 = vector.broadcast %cst_136 : f32 to vector<8x128xf32>
    %543 = arith.addf %542, %541 : vector<8x128xf32>
    %544 = arith.divf %542, %543 : vector<8x128xf32>
    %545 = vector.extract_strided_slice %544 {offsets = [0, 0], sizes = [8, 64], strides = [1, 1]} : vector<8x128xf32> to vector<8x64xf32>
    %546 = vector.extract_strided_slice %544 {offsets = [0, 64], sizes = [8, 64], strides = [1, 1]} : vector<8x128xf32> to vector<8x64xf32>
    %cst_137 = arith.constant dense<0.000000e+00> : vector<8x64xf32>
    %547 = tpu.matmul %536, %390, %cst_137 {dimension_numbers = #tpu.dot_dimension_numbers<[1], [0], [0], [1], [0, 0, 1, 1], [], []>} : vector<8x64xbf16>, vector<64x64xbf16>, vector<8x64xf32> -> vector<8x64xf32>
    %548 = arith.addf %547, %394 : vector<8x64xf32>
    %549 = vector.extract_strided_slice %386 {offsets = [56, 0], sizes = [8, 64], strides = [1, 1]} : vector<64x64xf32> to vector<8x64xf32>
    %550 = arith.mulf %545, %548 : vector<8x64xf32>
    %551 = arith.addf %549, %550 : vector<8x64xf32>
    %552 = math.tanh %551 : vector<8x64xf32>
    %553 = arith.subf %535, %552 : vector<8x64xf32>
    %554 = arith.mulf %546, %553 : vector<8x64xf32>
    %555 = arith.addf %552, %554 : vector<8x64xf32>
    %c0_138 = arith.constant 0 : index
    %c0_139 = arith.constant 0 : index
    %556 = vector.load %arg10[%c0_138, %c0_139] : memref<1x64xf32, #tpu.memory_space<vmem>>, vector<1x64xf32>
    %557 = vector.broadcast %556 : vector<1x64xf32> to vector<8x64xf32>
    %558 = arith.mulf %555, %557 : vector<8x64xf32>
    %cst_140 = arith.constant dense<0.000000e+00> : vector<8xf32>
    %559 = vector.multi_reduction <add>, %558, %cst_140 [1] : vector<8x64xf32> to vector<8xf32>
    %560 = vector.shape_cast %559 : vector<8xf32> to vector<8x1xf32>
    %c0_141 = arith.constant 0 : index
    %c0_142 = arith.constant 0 : index
    %561 = vector.load %arg11[%c0_141, %c0_142] : memref<1x1xf32, #tpu.memory_space<vmem>>, vector<1x1xf32>
    %562 = vector.broadcast %561 : vector<1x1xf32> to vector<8x1xf32>
    %563 = arith.addf %560, %562 : vector<8x1xf32>
    %c0_143 = arith.constant 0 : index
    %c0_144 = arith.constant 0 : index
    %564 = vector.load %arg12[%c0_143, %c0_144] : memref<8x1xf32, #tpu.memory_space<vmem>>, vector<8x1xf32>
    tpu.vector_store %arg12[%c0_143, %c0_144], %563 {strides = array<i32>} : memref<8x1xf32, #tpu.memory_space<vmem>>, vector<8x1xf32>,
    return
  }
}

</mosaic_0001>

<llo_original>
// kernel: gru_model_forward.1
$region0: #{gru_model_forward.1}
  #allocation0 [shape = 'u32[]', space=smem, size = 0x4, offset = 0x4, fixed_abs, tag = 'smem constant byte address 0x4 - core index']
  #allocation1 [shape = 'u32[144,128]{1,0:T(1,128)}', space=vmem, size = 0x12000, scoped, tag = 'internal scratch']
  #allocation2 [shape = 'f32[1,1]{1,0:T(1,128)S(1)}', space=vmem, size = 0x200, scoped, tag = 'scoped memory for gru_model_forward.1']
  %s0 = inlined_call_operand.vmem [shape: f32[64,1], index: 0, kind: input, shape index: {}]
  %s1 = inlined_call_operand.vmem [shape: f32[1,128], index: 1, kind: input, shape index: {}]
  %s2 = inlined_call_operand.vmem [shape: f32[1,64], index: 2, kind: input, shape index: {}]
  %s3 = inlined_call_operand.hbm [shape: bf16[2,64,128], index: 3, kind: input, shape index: {}]
  %s4 = inlined_call_operand.hbm [shape: bf16[2,64,64], index: 4, kind: input, shape index: {}]
  %s5 = inlined_call_operand.vmem [shape: bf16[3,64,128], index: 5, kind: input, shape index: {}]
  %s6 = inlined_call_operand.hbm [shape: bf16[3,64,64], index: 6, kind: input, shape index: {}]
  %s7 = inlined_call_operand.vmem [shape: f32[3,1,128], index: 7, kind: input, shape index: {}]
  %s8 = inlined_call_operand.vmem [shape: f32[3,1,64], index: 8, kind: input, shape index: {}]
  %s9 = inlined_call_operand.vmem [shape: f32[3,1,64], index: 9, kind: input, shape index: {}]
  %s10 = inlined_call_operand.vmem [shape: f32[1,64], index: 10, kind: input, shape index: {}]
  %s11 = inlined_call_operand.<no memory space> [shape: f32[1,1], index: 11, kind: input, shape index: {}]
  %s12 = inlined_call_operand.vmem [shape: f32[8,1], index: 12, kind: output, shape index: {}]
  %s13 = sld [smem:[#allocation0]]
  $region70: #{gru_model_forward.1} parent=0
    _
  %s15 = ssub.s32 1, %s13
  %s16 = scalar_select 0, %s15, %s13
  %v17 = vstv %s11
  %18 = vst [vmem:[#allocation2] sm:$0x1] %v17
  $region1: #{gru_model_forward.1} parent=0
    #allocation3 [shape = 'u8[32768]{0}', space=vmem, size = 0x8000, scoped, tag = 'input window, operand 3, single buffered']
    #allocation4 [shape = 's32[1]{0}', space=sflag, size = 0x4, scoped, tag = 'scoped memory for gru_model_forward.1']
    #allocation5 [shape = 'u8[32768]{0}', space=vmem, size = 0x8000, scoped, tag = 'input window, operand 4, single buffered']
    #allocation6 [shape = 's32[1]{0}', space=sflag, size = 0x4, scoped, tag = 'scoped memory for gru_model_forward.1']
    #allocation7 [shape = 'u8[49152]{0}', space=vmem, size = 0xc000, scoped, tag = 'input window, operand 6, single buffered']
    %19 = vsyncpa [#allocation4], 0
    %20 = vsyncpa [#allocation6], 0
    // Predicated region
    $region2: #{gru_model_forward.1} parent=1 // pred_check
      _
    $region3: #{gru_model_forward.1} parent=1 // pred_check_branch
      %22 = sbr.rel (0) target = $region5
    $region4: #{gru_model_forward.1} parent=1 // pred_region
      _
    $region5: #{gru_model_forward.1} parent=1 // pred_fallthru
      _
    // Predicated region
    $region6: #{gru_model_forward.1} parent=1 // pred_check
      _
    $region7: #{gru_model_forward.1} parent=1 // pred_check_branch
      %24 = sbr.rel (0) target = $region9
    $region8: #{gru_model_forward.1} parent=1 // pred_region
      _
    $region9: #{gru_model_forward.1} parent=1 // pred_fallthru
      _
    // Predicated region
    $region10: #{gru_model_forward.1} parent=1 // pred_check
      _
    $region11: #{gru_model_forward.1} parent=1 // pred_check_branch
      %26 = sbr.rel (0) target = $region13
    $region12: #{gru_model_forward.1} parent=1 // pred_region
      _
    $region13: #{gru_model_forward.1} parent=1 // pred_fallthru
      _
    // Predicated region
    $region14: #{gru_model_forward.1} parent=1 // pred_check
      _
    $region15: #{gru_model_forward.1} parent=1 // pred_check_branch
      %28 = sbr.rel (0) target = $region17
    $region16: #{gru_model_forward.1} parent=1 // pred_region
      %s30 = ssub.s32 1024, 1024
      %31 = vsyncadd [#allocation4], %s30
      %s32 = sshll.u32 [#allocation3], 4
      %s33 = int_to_ptr.vmem [resolvable:$true] %s32
      %38 = dma.hbm_to_vmem [thread:$0]  %s3, 1024, %s33, [#allocation4], 64, 64, 4
    $region17: #{gru_model_forward.1} parent=1 // pred_fallthru
      _
    // Predicated region
    $region18: #{gru_model_forward.1} parent=1 // pred_check
      _
    $region19: #{gru_model_forward.1} parent=1 // pred_check_branch
      %40 = sbr.rel (0) target = $region21
    $region20: #{gru_model_forward.1} parent=1 // pred_region
      %s42 = ssub.s32 1024, 1024
      %43 = vsyncadd [#allocation6], %s42
      %s44 = sshll.u32 [#allocation5], 4
      %s45 = int_to_ptr.vmem [resolvable:$true] %s44
      %50 = dma.hbm_to_vmem [thread:$0]  %s4, 1024, %s45, [#allocation6], 64, 64, 4
    $region21: #{gru_model_forward.1} parent=1 // pred_fallthru
      _
    // Predicated region
    $region22: #{gru_model_forward.1} parent=1 // pred_check
      _
    $region23: #{gru_model_forward.1} parent=1 // pred_check_branch
      %52 = sbr.rel (0) target = $region25
    $region24: #{gru_model_forward.1} parent=1 // pred_region
      _
    $region25: #{gru_model_forward.1} parent=1 // pred_fallthru
      _
    // Predicated region
    $region26: #{gru_model_forward.1} parent=1 // pred_check
      _
    $region27: #{gru_model_forward.1} parent=1 // pred_check_branch
      %54 = sbr.rel (0) target = $region29
    $region28: #{gru_model_forward.1} parent=1 // pred_region
      %s56 = ssub.s32 1536, 1536
      %57 = vsyncadd [#allocation6], %s56
      %s58 = sshll.u32 [#allocation7], 4
      %s59 = int_to_ptr.vmem [resolvable:$true] %s58
      %64 = dma.hbm_to_vmem [thread:$0]  %s6, 1536, %s59, [#allocation6], 64, 64, 4
    $region29: #{gru_model_forward.1} parent=1 // pred_fallthru
      _
    // Predicated region
    $region30: #{gru_model_forward.1} parent=1 // pred_check
      _
    $region31: #{gru_model_forward.1} parent=1 // pred_check_branch
      %66 = sbr.rel (0) target = $region33
    $region32: #{gru_model_forward.1} parent=1 // pred_region
      _
    $region33: #{gru_model_forward.1} parent=1 // pred_fallthru
      _
    // Predicated region
    $region34: #{gru_model_forward.1} parent=1 // pred_check
      _
    $region35: #{gru_model_forward.1} parent=1 // pred_check_branch
      %68 = sbr.rel (0) target = $region37
    $region36: #{gru_model_forward.1} parent=1 // pred_region
      _
    $region37: #{gru_model_forward.1} parent=1 // pred_fallthru
      _
    // Predicated region
    $region38: #{gru_model_forward.1} parent=1 // pred_check
      _
    $region39: #{gru_model_forward.1} parent=1 // pred_check_branch
      %70 = sbr.rel (0) target = $region41
    $region40: #{gru_model_forward.1} parent=1 // pred_region
      _
    $region41: #{gru_model_forward.1} parent=1 // pred_fallthru
      _
    // Predicated region
    $region42: #{gru_model_forward.1} parent=1 // pred_check
      _
    $region43: #{gru_model_forward.1} parent=1 // pred_check_branch
      %72 = sbr.rel (0) target = $region45
    $region44: #{gru_model_forward.1} parent=1 // pred_region
      _
    $region45: #{gru_model_forward.1} parent=1 // pred_fallthru
      _
    // Predicated region
    $region46: #{gru_model_forward.1} parent=1 // pred_check
      _
    $region47: #{gru_model_forward.1} parent=1 // pred_check_branch
      %74 = sbr.rel (0) target = $region49
    $region48: #{gru_model_forward.1} parent=1 // pred_region
      _
    $region49: #{gru_model_forward.1} parent=1 // pred_fallthru
      _
    // Predicated region
    $region50: #{gru_model_forward.1} parent=1 // pred_check
      _
    $region51: #{gru_model_forward.1} parent=1 // pred_check_branch
      %76 = sbr.rel (0) target = $region53
    $region52: #{gru_model_forward.1} parent=1 // pred_region
      %77 = dma.done [#allocation4], 1024
    $region53: #{gru_model_forward.1} parent=1 // pred_fallthru
      _
    // Predicated region
    $region54: #{gru_model_forward.1} parent=1 // pred_check
      _
    $region55: #{gru_model_forward.1} parent=1 // pred_check_branch
      %79 = sbr.rel (0) target = $region57
    $region56: #{gru_model_forward.1} parent=1 // pred_region
      %80 = dma.done [#allocation6], 1024
    $region57: #{gru_model_forward.1} parent=1 // pred_fallthru
      _
    // Predicated region
    $region58: #{gru_model_forward.1} parent=1 // pred_check
      _
    $region59: #{gru_model_forward.1} parent=1 // pred_check_branch
      %82 = sbr.rel (0) target = $region61
    $region60: #{gru_model_forward.1} parent=1 // pred_region
      %83 = dma.done [#allocation6], 1536
    $region61: #{gru_model_forward.1} parent=1 // pred_fallthru
      _
    %v85 = vld [vmem:[%s0] sm:$0xff]
    %v86 = vld [vmem:[%s0 + $0x8] sm:$0xff]
    %v87 = vld [vmem:[%s0 + $0x10] sm:$0xff]
    %v88 = vld [vmem:[%s0 + $0x18] sm:$0xff]
    %v89 = vld [vmem:[%s0 + $0x20] sm:$0xff]
    %v90 = vld [vmem:[%s0 + $0x28] sm:$0xff]
    %v91 = vld [vmem:[%s0 + $0x30] sm:$0xff]
    %v92 = vld [vmem:[%s0 + $0x38] sm:$0xff]
    %v93 = vld [vmem:[%s1] sm:$0x1]
    %95 = vset.pattern.permute.xlu0 0
    %96 = vperm.xlu0 %95, %v85
    %v97 = vpop.permute.xlu0 %96
    %100 = vset.pattern.permute.xlu0 0
    %101 = vperm.xlu0 %100, %v86
    %v102 = vpop.permute.xlu0 %101
    %105 = vset.pattern.permute.xlu0 0
    %106 = vperm.xlu0 %105, %v87
    %v107 = vpop.permute.xlu0 %106
    %110 = vset.pattern.permute.xlu0 0
    %111 = vperm.xlu0 %110, %v88
    %v112 = vpop.permute.xlu0 %111
    %115 = vset.pattern.permute.xlu0 0
    %116 = vperm.xlu0 %115, %v89
    %v117 = vpop.permute.xlu0 %116
    %120 = vset.pattern.permute.xlu0 0
    %121 = vperm.xlu0 %120, %v90
    %v122 = vpop.permute.xlu0 %121
    %125 = vset.pattern.permute.xlu0 0
    %126 = vperm.xlu0 %125, %v91
    %v127 = vpop.permute.xlu0 %126
    %130 = vset.pattern.permute.xlu0 0
    %131 = vperm.xlu0 %130, %v92
    %v132 = vpop.permute.xlu0 %131
    %v135 = vlaneseq
    %v136 = vshrl.u32 %v135, 7
    %v137 = vsub.s32 0, %v136
    %v138 = vrot.slane %v93, %v137
    %v140 = vmul.f32 %v97, %v138
    %v141 = vmul.f32 %v102, %v138
    %v142 = vmul.f32 %v107, %v138
    %v143 = vmul.f32 %v112, %v138
    %v144 = vmul.f32 %v117, %v138
    %v145 = vmul.f32 %v122, %v138
    %v146 = vmul.f32 %v127, %v138
    %v147 = vmul.f32 %v132, %v138
    %v148 = vld [vmem:[%s7] sm:$0x1]
    %v150 = vlaneseq
    %v151 = vshrl.u32 %v150, 7
    %v152 = vsub.s32 0, %v151
    %v153 = vrot.slane %v148, %v152
    %v155 = vadd.f32 %v140, %v153
    %v156 = vadd.f32 %v141, %v153
    %v157 = vadd.f32 %v142, %v153
    %v158 = vadd.f32 %v143, %v153
    %v159 = vadd.f32 %v144, %v153
    %v160 = vadd.f32 %v145, %v153
    %v161 = vadd.f32 %v146, %v153
    %v162 = vadd.f32 %v147, %v153
    %v163 = vld [vmem:[%s2] sm:$0x1]
    %v165 = vlaneseq
    %v166 = vshrl.u32 %v165, 7
    %v167 = vsub.s32 0, %v166
    %v168 = vrot.slane %v163, %v167
    %v170 = vmul.f32 %v97, %v168
    %v171 = vmul.f32 %v102, %v168
    %v172 = vmul.f32 %v107, %v168
    %v173 = vmul.f32 %v112, %v168
    %v174 = vmul.f32 %v117, %v168
    %v175 = vmul.f32 %v122, %v168
    %v176 = vmul.f32 %v127, %v168
    %v177 = vmul.f32 %v132, %v168
    %v178 = vld [vmem:[%s8] sm:$0x1]
    %v180 = vlaneseq
    %v181 = vshrl.u32 %v180, 7
    %v182 = vsub.s32 0, %v181
    %v183 = vrot.slane %v178, %v182
    %v185 = vadd.f32 %v170, %v183
    %v186 = vadd.f32 %v171, %v183
    %v187 = vadd.f32 %v172, %v183
    %v188 = vadd.f32 %v173, %v183
    %v189 = vadd.f32 %v174, %v183
    %v190 = vadd.f32 %v175, %v183
    %v191 = vadd.f32 %v176, %v183
    %v192 = vadd.f32 %v177, %v183
    %v193 = vld [vmem:[%s5] sm:$0xf]
    %v194 = vld [vmem:[%s5 + $0x4] sm:$0xf]
    %v195 = vld [vmem:[%s5 + $0x8] sm:$0xf]
    %v196 = vld [vmem:[%s5 + $0xc] sm:$0xf]
    %v197 = vld [vmem:[%s5 + $0x10] sm:$0xf]
    %v198 = vld [vmem:[%s5 + $0x14] sm:$0xf]
    %v199 = vld [vmem:[%s5 + $0x18] sm:$0xf]
    %v200 = vld [vmem:[%s5 + $0x1c] sm:$0xf]
    %v201 = vld [vmem:[#allocation7] sm:$0xf]
    %v202 = vld [vmem:[#allocation7 + $0x4] sm:$0xf]
    %v203 = vld [vmem:[#allocation7 + $0x8] sm:$0xf]
    %v204 = vld [vmem:[#allocation7 + $0xc] sm:$0xf]
    %v205 = vld [vmem:[#allocation7 + $0x10] sm:$0xf]
    %v206 = vld [vmem:[#allocation7 + $0x14] sm:$0xf]
    %v207 = vld [vmem:[#allocation7 + $0x18] sm:$0xf]
    %v208 = vld [vmem:[#allocation7 + $0x1c] sm:$0xf]
    %v209 = vld [vmem:[%s9] sm:$0x1]
    %v211 = vlaneseq
    %v212 = vshrl.u32 %v211, 7
    %v213 = vsub.s32 0, %v212
    %v214 = vrot.slane %v209, %v213
    %v224 = vunpack.c.l.b16 %v193
    %v225 = vunpack.c.l.b16 %v194
    %v226 = vunpack.c.l.b16 %v195
    %v227 = vunpack.c.l.b16 %v196
    %v228 = vunpack.c.l.b16 %v197
    %v229 = vunpack.c.l.b16 %v198
    %v230 = vunpack.c.l.b16 %v199
    %v231 = vunpack.c.l.b16 %v200
    %v232 = vpack.c.b16 %v225, %v224
    %v233 = vpack.c.b16 %v227, %v226
    %v234 = vpack.c.b16 %v229, %v228
    %v235 = vpack.c.b16 %v231, %v230
    %vm240 = vcmask 523264
    %v242 = vsel %vm240, 0, 0
    %244 = vmatprep.subr.bf16.mxu0 0
    %245 = vmatpush1.bf16.msra.mxu0 0
    %246 = vmatprep.subr.bf16.mxu0 0
    %247 = vmatpush1.bf16.msra.mxu0 0
    %248 = vmatprep.subr.bf16.mxu0 0
    %249 = vmatpush1.bf16.msra.mxu0 0
    %250 = vmatprep.subr.bf16.mxu0 0
    %251 = vmatpush1.bf16.msra.mxu0 0
    %252 = vmatprep.subr.bf16.mxu0 0
    %253 = vmatpush1.bf16.msra.mxu0 %v235
    %254 = vmatprep.subr.bf16.mxu0 0
    %255 = vmatpush1.bf16.msra.mxu0 %v234
    %256 = vmatprep.subr.bf16.mxu0 0
    %257 = vmatpush1.bf16.msra.mxu0 %v233
    %258 = vmatprep.subr.bf16.mxu0 0
    %259 = vmatpush1.bf16.msra.mxu0 %v232
    %260 = vmatprep.subr.bf16.mxu0 0
    %261 = vmatpush2.bf16.msra.mxu0 0
    %262 = vmatprep.subr.bf16.mxu0 0
    %263 = vmatpush2.bf16.msra.mxu0 0
    %264 = vmatprep.subr.bf16.mxu0 0
    %265 = vmatpush2.bf16.msra.mxu0 0
    %266 = vmatprep.subr.bf16.mxu0 0
    %267 = vmatpush2.bf16.msra.mxu0 0
    %268 = vmatprep.subr.bf16.mxu0 0
    %269 = vmatpush2.bf16.msra.mxu0 0
    %270 = vmatprep.subr.bf16.mxu0 0
    %271 = vmatpush2.bf16.msra.mxu0 0
    %272 = vmatprep.subr.bf16.mxu0 0
    %273 = vmatpush2.bf16.msra.mxu0 0
    %274 = vmatprep.subr.bf16.mxu0 0
    %275 = vmatpush2.bf16.msra.mxu0 0
    %276 = vmatprep.mubr.bf16.mxu0 0
    %277 = vmatmul.mubr.bf16.gmra.mxu0 %v242
    %v278 = vpop.f32.mrf.mxu0
    %v279 = vadd.f32 0.0, %v278
    %v280 = vpop.f32.mrf.mxu0
    %v281 = vpop.f32.mrf.mxu0
    %v282 = vpop.f32.mrf.mxu0
    %283 = vdwg.mxu0
    %v284 = vadd.f32 %v155, %v279
    %v285 = vxor.u32 %v284, 2147483648
    %v286 = vmul.f32 %v285, 1.442695
    %v287 = vpow.pop %v286
    %v288 = vadd.f32 %v287, 1.0
    %v289 = vrcp.pop %v288
    %v290 = vmul.f32 1.0, %v289
    %v299 = vunpack.c.l.b16 %v201
    %v300 = vunpack.c.l.b16 %v202
    %v301 = vunpack.c.l.b16 %v203
    %v302 = vunpack.c.l.b16 %v204
    %v303 = vunpack.c.l.b16 %v205
    %v304 = vunpack.c.l.b16 %v206
    %v305 = vunpack.c.l.b16 %v207
    %v306 = vunpack.c.l.b16 %v208
    %v307 = vpack.c.b16 %v300, %v299
    %v308 = vpack.c.b16 %v302, %v301
    %v309 = vpack.c.b16 %v304, %v303
    %v310 = vpack.c.b16 %v306, %v305
    %315 = vmatprep.subr.bf16.mxu0 0
    %316 = vmatpush1.bf16.msra.mxu0 0
    %317 = vmatprep.subr.bf16.mxu0 0
    %318 = vmatpush1.bf16.msra.mxu0 0
    %319 = vmatprep.subr.bf16.mxu0 0
    %320 = vmatpush1.bf16.msra.mxu0 0
    %321 = vmatprep.subr.bf16.mxu0 0
    %322 = vmatpush1.bf16.msra.mxu0 0
    %323 = vmatprep.subr.bf16.mxu0 0
    %324 = vmatpush1.bf16.msra.mxu0 %v310
    %325 = vmatprep.subr.bf16.mxu0 0
    %326 = vmatpush1.bf16.msra.mxu0 %v309
    %327 = vmatprep.subr.bf16.mxu0 0
    %328 = vmatpush1.bf16.msra.mxu0 %v308
    %329 = vmatprep.subr.bf16.mxu0 0
    %330 = vmatpush1.bf16.msra.mxu0 %v307
    %331 = vmatprep.subr.bf16.mxu0 0
    %332 = vmatpush2.bf16.msra.mxu0 0
    %333 = vmatprep.subr.bf16.mxu0 0
    %334 = vmatpush2.bf16.msra.mxu0 0
    %335 = vmatprep.subr.bf16.mxu0 0
    %336 = vmatpush2.bf16.msra.mxu0 0
    %337 = vmatprep.subr.bf16.mxu0 0
    %338 = vmatpush2.bf16.msra.mxu0 0
    %339 = vmatprep.subr.bf16.mxu0 0
    %340 = vmatpush2.bf16.msra.mxu0 0
    %341 = vmatprep.subr.bf16.mxu0 0
    %342 = vmatpush2.bf16.msra.mxu0 0
    %343 = vmatprep.subr.bf16.mxu0 0
    %344 = vmatpush2.bf16.msra.mxu0 0
    %345 = vmatprep.subr.bf16.mxu0 0
    %346 = vmatpush2.bf16.msra.mxu0 0
    %347 = vmatprep.mubr.bf16.mxu0 0
    %348 = vmatmul.mubr.bf16.gmra.mxu0 %v242
    %v349 = vpop.f32.mrf.mxu0
    %v350 = vadd.f32 %v214, %v349
    %v351 = vpop.f32.mrf.mxu0
    %v352 = vpop.f32.mrf.mxu0
    %v353 = vpop.f32.mrf.mxu0
    %354 = vdwg.mxu0
    %v355 = vmul.f32 %v290, %v350
    %v356 = vadd.f32 %v185, %v355
    %v357 = vtanh.pop %v356
    %v358 = vsub.f32 0.0, %v357
    %360 = vrot.lane.b32.xlu0 %v358, 64
    %v361 = vpop.permute.xlu0 %360
    %v363 = vmul.f32 %v290, %v361
    %365 = vrot.lane.b32.xlu0 %v363, 64
    %v366 = vpop.permute.xlu0 %365
    %v368 = vadd.f32 %v357, %v366
    %v369 = vpack.c.bf16 %v368, %v368
    %v371 = vsel %vm240, %v369, 0
    %373 = vmatprep.subr.bf16.mxu0 0
    %374 = vmatpush1.bf16.msra.mxu0 0
    %375 = vmatprep.subr.bf16.mxu0 0
    %376 = vmatpush1.bf16.msra.mxu0 0
    %377 = vmatprep.subr.bf16.mxu0 0
    %378 = vmatpush1.bf16.msra.mxu0 0
    %379 = vmatprep.subr.bf16.mxu0 0
    %380 = vmatpush1.bf16.msra.mxu0 0
    %381 = vmatprep.subr.bf16.mxu0 0
    %382 = vmatpush1.bf16.msra.mxu0 %v235
    %383 = vmatprep.subr.bf16.mxu0 0
    %384 = vmatpush1.bf16.msra.mxu0 %v234
    %385 = vmatprep.subr.bf16.mxu0 0
    %386 = vmatpush1.bf16.msra.mxu0 %v233
    %387 = vmatprep.subr.bf16.mxu0 0
    %388 = vmatpush1.bf16.msra.mxu0 %v232
    %389 = vmatprep.subr.bf16.mxu0 0
    %390 = vmatpush2.bf16.msra.mxu0 0
    %391 = vmatprep.subr.bf16.mxu0 0
    %392 = vmatpush2.bf16.msra.mxu0 0
    %393 = vmatprep.subr.bf16.mxu0 0
    %394 = vmatpush2.bf16.msra.mxu0 0
    %395 = vmatprep.subr.bf16.mxu0 0
    %396 = vmatpush2.bf16.msra.mxu0 0
    %397 = vmatprep.subr.bf16.mxu0 0
    %398 = vmatpush2.bf16.msra.mxu0 0
    %399 = vmatprep.subr.bf16.mxu0 0
    %400 = vmatpush2.bf16.msra.mxu0 0
    %401 = vmatprep.subr.bf16.mxu0 0
    %402 = vmatpush2.bf16.msra.mxu0 0
    %403 = vmatprep.subr.bf16.mxu0 0
    %404 = vmatpush2.bf16.msra.mxu0 0
    %405 = vmatprep.mubr.bf16.mxu0 0
    %406 = vmatmul.mubr.bf16.gmra.mxu0 %v371
    %v407 = vpop.f32.mrf.mxu0
    %v408 = vadd.f32 0.0, %v407
    %v409 = vpop.f32.mrf.mxu0
    %v410 = vpop.f32.mrf.mxu0
    %v411 = vpop.f32.mrf.mxu0
    %412 = vdwg.mxu0
    %v413 = vadd.f32 %v156, %v408
    %v414 = vxor.u32 %v413, 2147483648
    %v415 = vmul.f32 %v414, 1.442695
    %v416 = vpow.pop %v415
    %v417 = vadd.f32 %v416, 1.0
    %v418 = vrcp.pop %v417
    %v419 = vmul.f32 1.0, %v418
    %420 = vmatprep.subr.bf16.mxu0 0
    %421 = vmatpush1.bf16.msra.mxu0 0
    %422 = vmatprep.subr.bf16.mxu0 0
    %423 = vmatpush1.bf16.msra.mxu0 0
    %424 = vmatprep.subr.bf16.mxu0 0
    %425 = vmatpush1.bf16.msra.mxu0 0
    %426 = vmatprep.subr.bf16.mxu0 0
    %427 = vmatpush1.bf16.msra.mxu0 0
    %428 = vmatprep.subr.bf16.mxu0 0
    %429 = vmatpush1.bf16.msra.mxu0 %v310
    %430 = vmatprep.subr.bf16.mxu0 0
    %431 = vmatpush1.bf16.msra.mxu0 %v309
    %432 = vmatprep.subr.bf16.mxu0 0
    %433 = vmatpush1.bf16.msra.mxu0 %v308
    %434 = vmatprep.subr.bf16.mxu0 0
    %435 = vmatpush1.bf16.msra.mxu0 %v307
    %436 = vmatprep.subr.bf16.mxu0 0
    %437 = vmatpush2.bf16.msra.mxu0 0
    %438 = vmatprep.subr.bf16.mxu0 0
    %439 = vmatpush2.bf16.msra.mxu0 0
    %440 = vmatprep.subr.bf16.mxu0 0
    %441 = vmatpush2.bf16.msra.mxu0 0
    %442 = vmatprep.subr.bf16.mxu0 0
    %443 = vmatpush2.bf16.msra.mxu0 0
    %444 = vmatprep.subr.bf16.mxu0 0
    %445 = vmatpush2.bf16.msra.mxu0 0
    %446 = vmatprep.subr.bf16.mxu0 0
    %447 = vmatpush2.bf16.msra.mxu0 0
    %448 = vmatprep.subr.bf16.mxu0 0
    %449 = vmatpush2.bf16.msra.mxu0 0
    %450 = vmatprep.subr.bf16.mxu0 0
    %451 = vmatpush2.bf16.msra.mxu0 0
    %452 = vmatprep.mubr.bf16.mxu0 0
    %453 = vmatmul.mubr.bf16.gmra.mxu0 %v371
    %v454 = vpop.f32.mrf.mxu0
    %v455 = vadd.f32 %v214, %v454
    %v456 = vpop.f32.mrf.mxu0
    %v457 = vpop.f32.mrf.mxu0
    %v458 = vpop.f32.mrf.mxu0
    %459 = vdwg.mxu0
    %v460 = vmul.f32 %v419, %v455
    %v461 = vadd.f32 %v186, %v460
    %v462 = vtanh.pop %v461
    %v463 = vsub.f32 %v368, %v462
    %465 = vrot.lane.b32.xlu0 %v463, 64
    %v466 = vpop.permute.xlu0 %465
    %v468 = vmul.f32 %v419, %v466
    %470 = vrot.lane.b32.xlu0 %v468, 64
    %v471 = vpop.permute.xlu0 %470
    %v473 = vadd.f32 %v462, %v471
    %v474 = vpack.c.bf16 %v473, %v473
    %v476 = vsel %vm240, %v474, 0
    %478 = vmatprep.subr.bf16.mxu0 0
    %479 = vmatpush1.bf16.msra.mxu0 0
    %480 = vmatprep.subr.bf16.mxu0 0
    %481 = vmatpush1.bf16.msra.mxu0 0
    %482 = vmatprep.subr.bf16.mxu0 0
    %483 = vmatpush1.bf16.msra.mxu0 0
    %484 = vmatprep.subr.bf16.mxu0 0
    %485 = vmatpush1.bf16.msra.mxu0 0
    %486 = vmatprep.subr.bf16.mxu0 0
    %487 = vmatpush1.bf16.msra.mxu0 %v235
    %488 = vmatprep.subr.bf16.mxu0 0
    %489 = vmatpush1.bf16.msra.mxu0 %v234
    %490 = vmatprep.subr.bf16.mxu0 0
    %491 = vmatpush1.bf16.msra.mxu0 %v233
    %492 = vmatprep.subr.bf16.mxu0 0
    %493 = vmatpush1.bf16.msra.mxu0 %v232
    %494 = vmatprep.subr.bf16.mxu0 0
    %495 = vmatpush2.bf16.msra.mxu0 0
    %496 = vmatprep.subr.bf16.mxu0 0
    %497 = vmatpush2.bf16.msra.mxu0 0
    %498 = vmatprep.subr.bf16.mxu0 0
    %499 = vmatpush2.bf16.msra.mxu0 0
    %500 = vmatprep.subr.bf16.mxu0 0
    %501 = vmatpush2.bf16.msra.mxu0 0
    %502 = vmatprep.subr.bf16.mxu0 0
    %503 = vmatpush2.bf16.msra.mxu0 0
    %504 = vmatprep.subr.bf16.mxu0 0
    %505 = vmatpush2.bf16.msra.mxu0 0
    %506 = vmatprep.subr.bf16.mxu0 0
    %507 = vmatpush2.bf16.msra.mxu0 0
    %508 = vmatprep.subr.bf16.mxu0 0
    %509 = vmatpush2.bf16.msra.mxu0 0
    %510 = vmatprep.mubr.bf16.mxu0 0
    %511 = vmatmul.mubr.bf16.gmra.mxu0 %v476
    %v512 = vpop.f32.mrf.mxu0
    %v513 = vadd.f32 0.0, %v512
    %v514 = vpop.f32.mrf.mxu0
    %v515 = vpop.f32.mrf.mxu0
    %v516 = vpop.f32.mrf.mxu0
    %517 = vdwg.mxu0
    %v518 = vadd.f32 %v157, %v513
    %v519 = vxor.u32 %v518, 2147483648
    %v520 = vmul.f32 %v519, 1.442695
    %v521 = vpow.pop %v520
    %v522 = vadd.f32 %v521, 1.0
    %v523 = vrcp.pop %v522
    %v524 = vmul.f32 1.0, %v523
    %525 = vmatprep.subr.bf16.mxu0 0
    %526 = vmatpush1.bf16.msra.mxu0 0
    %527 = vmatprep.subr.bf16.mxu0 0
    %528 = vmatpush1.bf16.msra.mxu0 0
    %529 = vmatprep.subr.bf16.mxu0 0
    %530 = vmatpush1.bf16.msra.mxu0 0
    %531 = vmatprep.subr.bf16.mxu0 0
    %532 = vmatpush1.bf16.msra.mxu0 0
    %533 = vmatprep.subr.bf16.mxu0 0
    %534 = vmatpush1.bf16.msra.mxu0 %v310
    %535 = vmatprep.subr.bf16.mxu0 0
    %536 = vmatpush1.bf16.msra.mxu0 %v309
    %537 = vmatprep.subr.bf16.mxu0 0
    %538 = vmatpush1.bf16.msra.mxu0 %v308
    %539 = vmatprep.subr.bf16.mxu0 0
    %540 = vmatpush1.bf16.msra.mxu0 %v307
    %541 = vmatprep.subr.bf16.mxu0 0
    %542 = vmatpush2.bf16.msra.mxu0 0
    %543 = vmatprep.subr.bf16.mxu0 0
    %544 = vmatpush2.bf16.msra.mxu0 0
    %545 = vmatprep.subr.bf16.mxu0 0
    %546 = vmatpush2.bf16.msra.mxu0 0
    %547 = vmatprep.subr.bf16.mxu0 0
    %548 = vmatpush2.bf16.msra.mxu0 0
    %549 = vmatprep.subr.bf16.mxu0 0
    %550 = vmatpush2.bf16.msra.mxu0 0
    %551 = vmatprep.subr.bf16.mxu0 0
    %552 = vmatpush2.bf16.msra.mxu0 0
    %553 = vmatprep.subr.bf16.mxu0 0
    %554 = vmatpush2.bf16.msra.mxu0 0
    %555 = vmatprep.subr.bf16.mxu0 0
    %556 = vmatpush2.bf16.msra.mxu0 0
    %557 = vmatprep.mubr.bf16.mxu0 0
    %558 = vmatmul.mubr.bf16.gmra.mxu0 %v476
    %v559 = vpop.f32.mrf.mxu0
    %v560 = vadd.f32 %v214, %v559
    %v561 = vpop.f32.mrf.mxu0
    %v562 = vpop.f32.mrf.mxu0
    %v563 = vpop.f32.mrf.mxu0
    %564 = vdwg.mxu0
    %v565 = vmul.f32 %v524, %v560
    %v566 = vadd.f32 %v187, %v565
    %v567 = vtanh.pop %v566
    %v568 = vsub.f32 %v473, %v567
    %570 = vrot.lane.b32.xlu0 %v568, 64
    %v571 = vpop.permute.xlu0 %570
    %v573 = vmul.f32 %v524, %v571
    %575 = vrot.lane.b32.xlu0 %v573, 64
    %v576 = vpop.permute.xlu0 %575
    %v578 = vadd.f32 %v567, %v576
    %v579 = vpack.c.bf16 %v578, %v578
    %v581 = vsel %vm240, %v579, 0
    %583 = vmatprep.subr.bf16.mxu0 0
    %584 = vmatpush1.bf16.msra.mxu0 0
    %585 = vmatprep.subr.bf16.mxu0 0
    %586 = vmatpush1.bf16.msra.mxu0 0
    %587 = vmatprep.subr.bf16.mxu0 0
    %588 = vmatpush1.bf16.msra.mxu0 0
    %589 = vmatprep.subr.bf16.mxu0 0
    %590 = vmatpush1.bf16.msra.mxu0 0
    %591 = vmatprep.subr.bf16.mxu0 0
    %592 = vmatpush1.bf16.msra.mxu0 %v235
    %593 = vmatprep.subr.bf16.mxu0 0
    %594 = vmatpush1.bf16.msra.mxu0 %v234
    %595 = vmatprep.subr.bf16.mxu0 0
    %596 = vmatpush1.bf16.msra.mxu0 %v233
    %597 = vmatprep.subr.bf16.mxu0 0
    %598 = vmatpush1.bf16.msra.mxu0 %v232
    %599 = vmatprep.subr.bf16.mxu0 0
    %600 = vmatpush2.bf16.msra.mxu0 0
    %601 = vmatprep.subr.bf16.mxu0 0
    %602 = vmatpush2.bf16.msra.mxu0 0
    %603 = vmatprep.subr.bf16.mxu0 0
    %604 = vmatpush2.bf16.msra.mxu0 0
    %605 = vmatprep.subr.bf16.mxu0 0
    %606 = vmatpush2.bf16.msra.mxu0 0
    %607 = vmatprep.subr.bf16.mxu0 0
    %608 = vmatpush2.bf16.msra.mxu0 0
    %609 = vmatprep.subr.bf16.mxu0 0
    %610 = vmatpush2.bf16.msra.mxu0 0
    %611 = vmatprep.subr.bf16.mxu0 0
    %612 = vmatpush2.bf16.msra.mxu0 0
    %613 = vmatprep.subr.bf16.mxu0 0
    %614 = vmatpush2.bf16.msra.mxu0 0
    %615 = vmatprep.mubr.bf16.mxu0 0
    %616 = vmatmul.mubr.bf16.gmra.mxu0 %v581
    %v617 = vpop.f32.mrf.mxu0
    %v618 = vadd.f32 0.0, %v617
    %v619 = vpop.f32.mrf.mxu0
    %v620 = vpop.f32.mrf.mxu0
    %v621 = vpop.f32.mrf.mxu0
    %622 = vdwg.mxu0
    %v623 = vadd.f32 %v158, %v618
    %v624 = vxor.u32 %v623, 2147483648
    %v625 = vmul.f32 %v624, 1.442695
    %v626 = vpow.pop %v625
    %v627 = vadd.f32 %v626, 1.0
    %v628 = vrcp.pop %v627
    %v629 = vmul.f32 1.0, %v628
    %630 = vmatprep.subr.bf16.mxu0 0
    %631 = vmatpush1.bf16.msra.mxu0 0
    %632 = vmatprep.subr.bf16.mxu0 0
    %633 = vmatpush1.bf16.msra.mxu0 0
    %634 = vmatprep.subr.bf16.mxu0 0
    %635 = vmatpush1.bf16.msra.mxu0 0
    %636 = vmatprep.subr.bf16.mxu0 0
    %637 = vmatpush1.bf16.msra.mxu0 0
    %638 = vmatprep.subr.bf16.mxu0 0
    %639 = vmatpush1.bf16.msra.mxu0 %v310
    %640 = vmatprep.subr.bf16.mxu0 0
    %641 = vmatpush1.bf16.msra.mxu0 %v309
    %642 = vmatprep.subr.bf16.mxu0 0
    %643 = vmatpush1.bf16.msra.mxu0 %v308
    %644 = vmatprep.subr.bf16.mxu0 0
    %645 = vmatpush1.bf16.msra.mxu0 %v307
    %646 = vmatprep.subr.bf16.mxu0 0
    %647 = vmatpush2.bf16.msra.mxu0 0
    %648 = vmatprep.subr.bf16.mxu0 0
    %649 = vmatpush2.bf16.msra.mxu0 0
    %650 = vmatprep.subr.bf16.mxu0 0
    %651 = vmatpush2.bf16.msra.mxu0 0
    %652 = vmatprep.subr.bf16.mxu0 0
    %653 = vmatpush2.bf16.msra.mxu0 0
    %654 = vmatprep.subr.bf16.mxu0 0
    %655 = vmatpush2.bf16.msra.mxu0 0
    %656 = vmatprep.subr.bf16.mxu0 0
    %657 = vmatpush2.bf16.msra.mxu0 0
    %658 = vmatprep.subr.bf16.mxu0 0
    %659 = vmatpush2.bf16.msra.mxu0 0
    %660 = vmatprep.subr.bf16.mxu0 0
    %661 = vmatpush2.bf16.msra.mxu0 0
    %662 = vmatprep.mubr.bf16.mxu0 0
    %663 = vmatmul.mubr.bf16.gmra.mxu0 %v581
    %v664 = vpop.f32.mrf.mxu0
    %v665 = vadd.f32 %v214, %v664
    %v666 = vpop.f32.mrf.mxu0
    %v667 = vpop.f32.mrf.mxu0
    %v668 = vpop.f32.mrf.mxu0
    %669 = vdwg.mxu0
    %v670 = vmul.f32 %v629, %v665
    %v671 = vadd.f32 %v188, %v670
    %v672 = vtanh.pop %v671
    %v673 = vsub.f32 %v578, %v672
    %675 = vrot.lane.b32.xlu0 %v673, 64
    %v676 = vpop.permute.xlu0 %675
    %v678 = vmul.f32 %v629, %v676
    %680 = vrot.lane.b32.xlu0 %v678, 64
    %v681 = vpop.permute.xlu0 %680
    %v683 = vadd.f32 %v672, %v681
    %v684 = vpack.c.bf16 %v683, %v683
    %v686 = vsel %vm240, %v684, 0
    %688 = vmatprep.subr.bf16.mxu0 0
    %689 = vmatpush1.bf16.msra.mxu0 0
    %690 = vmatprep.subr.bf16.mxu0 0
    %691 = vmatpush1.bf16.msra.mxu0 0
    %692 = vmatprep.subr.bf16.mxu0 0
    %693 = vmatpush1.bf16.msra.mxu0 0
    %694 = vmatprep.subr.bf16.mxu0 0
    %695 = vmatpush1.bf16.msra.mxu0 0
    %696 = vmatprep.subr.bf16.mxu0 0
    %697 = vmatpush1.bf16.msra.mxu0 %v235
    %698 = vmatprep.subr.bf16.mxu0 0
    %699 = vmatpush1.bf16.msra.mxu0 %v234
    %700 = vmatprep.subr.bf16.mxu0 0
    %701 = vmatpush1.bf16.msra.mxu0 %v233
    %702 = vmatprep.subr.bf16.mxu0 0
    %703 = vmatpush1.bf16.msra.mxu0 %v232
    %704 = vmatprep.subr.bf16.mxu0 0
    %705 = vmatpush2.bf16.msra.mxu0 0
    %706 = vmatprep.subr.bf16.mxu0 0
    %707 = vmatpush2.bf16.msra.mxu0 0
    %708 = vmatprep.subr.bf16.mxu0 0
    %709 = vmatpush2.bf16.msra.mxu0 0
    %710 = vmatprep.subr.bf16.mxu0 0
    %711 = vmatpush2.bf16.msra.mxu0 0
    %712 = vmatprep.subr.bf16.mxu0 0
    %713 = vmatpush2.bf16.msra.mxu0 0
    %714 = vmatprep.subr.bf16.mxu0 0
    %715 = vmatpush2.bf16.msra.mxu0 0
    %716 = vmatprep.subr.bf16.mxu0 0
    %717 = vmatpush2.bf16.msra.mxu0 0
    %718 = vmatprep.subr.bf16.mxu0 0
    %719 = vmatpush2.bf16.msra.mxu0 0
    %720 = vmatprep.mubr.bf16.mxu0 0
    %721 = vmatmul.mubr.bf16.gmra.mxu0 %v686
    %v722 = vpop.f32.mrf.mxu0
    %v723 = vadd.f32 0.0, %v722
    %v724 = vpop.f32.mrf.mxu0
    %v725 = vpop.f32.mrf.mxu0
    %v726 = vpop.f32.mrf.mxu0
    %727 = vdwg.mxu0
    %v728 = vadd.f32 %v159, %v723
    %v729 = vxor.u32 %v728, 2147483648
    %v730 = vmul.f32 %v729, 1.442695
    %v731 = vpow.pop %v730
    %v732 = vadd.f32 %v731, 1.0
    %v733 = vrcp.pop %v732
    %v734 = vmul.f32 1.0, %v733
    %735 = vmatprep.subr.bf16.mxu0 0
    %736 = vmatpush1.bf16.msra.mxu0 0
    %737 = vmatprep.subr.bf16.mxu0 0
    %738 = vmatpush1.bf16.msra.mxu0 0
    %739 = vmatprep.subr.bf16.mxu0 0
    %740 = vmatpush1.bf16.msra.mxu0 0
    %741 = vmatprep.subr.bf16.mxu0 0
    %742 = vmatpush1.bf16.msra.mxu0 0
    %743 = vmatprep.subr.bf16.mxu0 0
    %744 = vmatpush1.bf16.msra.mxu0 %v310
    %745 = vmatprep.subr.bf16.mxu0 0
    %746 = vmatpush1.bf16.msra.mxu0 %v309
    %747 = vmatprep.subr.bf16.mxu0 0
    %748 = vmatpush1.bf16.msra.mxu0 %v308
    %749 = vmatprep.subr.bf16.mxu0 0
    %750 = vmatpush1.bf16.msra.mxu0 %v307
    %751 = vmatprep.subr.bf16.mxu0 0
    %752 = vmatpush2.bf16.msra.mxu0 0
    %753 = vmatprep.subr.bf16.mxu0 0
    %754 = vmatpush2.bf16.msra.mxu0 0
    %755 = vmatprep.subr.bf16.mxu0 0
    %756 = vmatpush2.bf16.msra.mxu0 0
    %757 = vmatprep.subr.bf16.mxu0 0
    %758 = vmatpush2.bf16.msra.mxu0 0
    %759 = vmatprep.subr.bf16.mxu0 0
    %760 = vmatpush2.bf16.msra.mxu0 0
    %761 = vmatprep.subr.bf16.mxu0 0
    %762 = vmatpush2.bf16.msra.mxu0 0
    %763 = vmatprep.subr.bf16.mxu0 0
    %764 = vmatpush2.bf16.msra.mxu0 0
    %765 = vmatprep.subr.bf16.mxu0 0
    %766 = vmatpush2.bf16.msra.mxu0 0
    %767 = vmatprep.mubr.bf16.mxu0 0
    %768 = vmatmul.mubr.bf16.gmra.mxu0 %v686
    %v769 = vpop.f32.mrf.mxu0
    %v770 = vadd.f32 %v214, %v769
    %v771 = vpop.f32.mrf.mxu0
    %v772 = vpop.f32.mrf.mxu0
    %v773 = vpop.f32.mrf.mxu0
    %774 = vdwg.mxu0
    %v775 = vmul.f32 %v734, %v770
    %v776 = vadd.f32 %v189, %v775
    %v777 = vtanh.pop %v776
    %v778 = vsub.f32 %v683, %v777
    %780 = vrot.lane.b32.xlu0 %v778, 64
    %v781 = vpop.permute.xlu0 %780
    %v783 = vmul.f32 %v734, %v781
    %785 = vrot.lane.b32.xlu0 %v783, 64
    %v786 = vpop.permute.xlu0 %785
    %v788 = vadd.f32 %v777, %v786
    %v789 = vpack.c.bf16 %v788, %v788
    %v791 = vsel %vm240, %v789, 0
    %793 = vmatprep.subr.bf16.mxu0 0
    %794 = vmatpush1.bf16.msra.mxu0 0
    %795 = vmatprep.subr.bf16.mxu0 0
    %796 = vmatpush1.bf16.msra.mxu0 0
    %797 = vmatprep.subr.bf16.mxu0 0
    %798 = vmatpush1.bf16.msra.mxu0 0
    %799 = vmatprep.subr.bf16.mxu0 0
    %800 = vmatpush1.bf16.msra.mxu0 0
    %801 = vmatprep.subr.bf16.mxu0 0
    %802 = vmatpush1.bf16.msra.mxu0 %v235
    %803 = vmatprep.subr.bf16.mxu0 0
    %804 = vmatpush1.bf16.msra.mxu0 %v234
    %805 = vmatprep.subr.bf16.mxu0 0
    %806 = vmatpush1.bf16.msra.mxu0 %v233
    %807 = vmatprep.subr.bf16.mxu0 0
    %808 = vmatpush1.bf16.msra.mxu0 %v232
    %809 = vmatprep.subr.bf16.mxu0 0
    %810 = vmatpush2.bf16.msra.mxu0 0
    %811 = vmatprep.subr.bf16.mxu0 0
    %812 = vmatpush2.bf16.msra.mxu0 0
    %813 = vmatprep.subr.bf16.mxu0 0
    %814 = vmatpush2.bf16.msra.mxu0 0
    %815 = vmatprep.subr.bf16.mxu0 0
    %816 = vmatpush2.bf16.msra.mxu0 0
    %817 = vmatprep.subr.bf16.mxu0 0
    %818 = vmatpush2.bf16.msra.mxu0 0
    %819 = vmatprep.subr.bf16.mxu0 0
    %820 = vmatpush2.bf16.msra.mxu0 0
    %821 = vmatprep.subr.bf16.mxu0 0
    %822 = vmatpush2.bf16.msra.mxu0 0
    %823 = vmatprep.subr.bf16.mxu0 0
    %824 = vmatpush2.bf16.msra.mxu0 0
    %825 = vmatprep.mubr.bf16.mxu0 0
    %826 = vmatmul.mubr.bf16.gmra.mxu0 %v791
    %v827 = vpop.f32.mrf.mxu0
    %v828 = vadd.f32 0.0, %v827
    %v829 = vpop.f32.mrf.mxu0
    %v830 = vpop.f32.mrf.mxu0
    %v831 = vpop.f32.mrf.mxu0
    %832 = vdwg.mxu0
    %v833 = vadd.f32 %v160, %v828
    %v834 = vxor.u32 %v833, 2147483648
    %v835 = vmul.f32 %v834, 1.442695
    %v836 = vpow.pop %v835
    %v837 = vadd.f32 %v836, 1.0
    %v838 = vrcp.pop %v837
    %v839 = vmul.f32 1.0, %v838
    %840 = vmatprep.subr.bf16.mxu0 0
    %841 = vmatpush1.bf16.msra.mxu0 0
    %842 = vmatprep.subr.bf16.mxu0 0
    %843 = vmatpush1.bf16.msra.mxu0 0
    %844 = vmatprep.subr.bf16.mxu0 0
    %845 = vmatpush1.bf16.msra.mxu0 0
    %846 = vmatprep.subr.bf16.mxu0 0
    %847 = vmatpush1.bf16.msra.mxu0 0
    %848 = vmatprep.subr.bf16.mxu0 0
    %849 = vmatpush1.bf16.msra.mxu0 %v310
    %850 = vmatprep.subr.bf16.mxu0 0
    %851 = vmatpush1.bf16.msra.mxu0 %v309
    %852 = vmatprep.subr.bf16.mxu0 0
    %853 = vmatpush1.bf16.msra.mxu0 %v308
    %854 = vmatprep.subr.bf16.mxu0 0
    %855 = vmatpush1.bf16.msra.mxu0 %v307
    %856 = vmatprep.subr.bf16.mxu0 0
    %857 = vmatpush2.bf16.msra.mxu0 0
    %858 = vmatprep.subr.bf16.mxu0 0
    %859 = vmatpush2.bf16.msra.mxu0 0
    %860 = vmatprep.subr.bf16.mxu0 0
    %861 = vmatpush2.bf16.msra.mxu0 0
    %862 = vmatprep.subr.bf16.mxu0 0
    %863 = vmatpush2.bf16.msra.mxu0 0
    %864 = vmatprep.subr.bf16.mxu0 0
    %865 = vmatpush2.bf16.msra.mxu0 0
    %866 = vmatprep.subr.bf16.mxu0 0
    %867 = vmatpush2.bf16.msra.mxu0 0
    %868 = vmatprep.subr.bf16.mxu0 0
    %869 = vmatpush2.bf16.msra.mxu0 0
    %870 = vmatprep.subr.bf16.mxu0 0
    %871 = vmatpush2.bf16.msra.mxu0 0
    %872 = vmatprep.mubr.bf16.mxu0 0
    %873 = vmatmul.mubr.bf16.gmra.mxu0 %v791
    %v874 = vpop.f32.mrf.mxu0
    %v875 = vadd.f32 %v214, %v874
    %v876 = vpop.f32.mrf.mxu0
    %v877 = vpop.f32.mrf.mxu0
    %v878 = vpop.f32.mrf.mxu0
    %879 = vdwg.mxu0
    %v880 = vmul.f32 %v839, %v875
    %v881 = vadd.f32 %v190, %v880
    %v882 = vtanh.pop %v881
    %v883 = vsub.f32 %v788, %v882
    %885 = vrot.lane.b32.xlu0 %v883, 64
    %v886 = vpop.permute.xlu0 %885
    %v888 = vmul.f32 %v839, %v886
    %890 = vrot.lane.b32.xlu0 %v888, 64
    %v891 = vpop.permute.xlu0 %890
    %v893 = vadd.f32 %v882, %v891
    %v894 = vpack.c.bf16 %v893, %v893
    %v896 = vsel %vm240, %v894, 0
    %898 = vmatprep.subr.bf16.mxu0 0
    %899 = vmatpush1.bf16.msra.mxu0 0
    %900 = vmatprep.subr.bf16.mxu0 0
    %901 = vmatpush1.bf16.msra.mxu0 0
    %902 = vmatprep.subr.bf16.mxu0 0
    %903 = vmatpush1.bf16.msra.mxu0 0
    %904 = vmatprep.subr.bf16.mxu0 0
    %905 = vmatpush1.bf16.msra.mxu0 0
    %906 = vmatprep.subr.bf16.mxu0 0
    %907 = vmatpush1.bf16.msra.mxu0 %v235
    %908 = vmatprep.subr.bf16.mxu0 0
    %909 = vmatpush1.bf16.msra.mxu0 %v234
    %910 = vmatprep.subr.bf16.mxu0 0
    %911 = vmatpush1.bf16.msra.mxu0 %v233
    %912 = vmatprep.subr.bf16.mxu0 0
    %913 = vmatpush1.bf16.msra.mxu0 %v232
    %914 = vmatprep.subr.bf16.mxu0 0
    %915 = vmatpush2.bf16.msra.mxu0 0
    %916 = vmatprep.subr.bf16.mxu0 0
    %917 = vmatpush2.bf16.msra.mxu0 0
    %918 = vmatprep.subr.bf16.mxu0 0
    %919 = vmatpush2.bf16.msra.mxu0 0
    %920 = vmatprep.subr.bf16.mxu0 0
    %921 = vmatpush2.bf16.msra.mxu0 0
    %922 = vmatprep.subr.bf16.mxu0 0
    %923 = vmatpush2.bf16.msra.mxu0 0
    %924 = vmatprep.subr.bf16.mxu0 0
    %925 = vmatpush2.bf16.msra.mxu0 0
    %926 = vmatprep.subr.bf16.mxu0 0
    %927 = vmatpush2.bf16.msra.mxu0 0
    %928 = vmatprep.subr.bf16.mxu0 0
    %929 = vmatpush2.bf16.msra.mxu0 0
    %930 = vmatprep.mubr.bf16.mxu0 0
    %931 = vmatmul.mubr.bf16.gmra.mxu0 %v896
    %v932 = vpop.f32.mrf.mxu0
    %v933 = vadd.f32 0.0, %v932
    %v934 = vpop.f32.mrf.mxu0
    %v935 = vpop.f32.mrf.mxu0
    %v936 = vpop.f32.mrf.mxu0
    %937 = vdwg.mxu0
    %v938 = vadd.f32 %v161, %v933
    %v939 = vxor.u32 %v938, 2147483648
    %v940 = vmul.f32 %v939, 1.442695
    %v941 = vpow.pop %v940
    %v942 = vadd.f32 %v941, 1.0
    %v943 = vrcp.pop %v942
    %v944 = vmul.f32 1.0, %v943
    %945 = vmatprep.subr.bf16.mxu0 0
    %946 = vmatpush1.bf16.msra.mxu0 0
    %947 = vmatprep.subr.bf16.mxu0 0
    %948 = vmatpush1.bf16.msra.mxu0 0
    %949 = vmatprep.subr.bf16.mxu0 0
    %950 = vmatpush1.bf16.msra.mxu0 0
    %951 = vmatprep.subr.bf16.mxu0 0
    %952 = vmatpush1.bf16.msra.mxu0 0
    %953 = vmatprep.subr.bf16.mxu0 0
    %954 = vmatpush1.bf16.msra.mxu0 %v310
    %955 = vmatprep.subr.bf16.mxu0 0
    %956 = vmatpush1.bf16.msra.mxu0 %v309
    %957 = vmatprep.subr.bf16.mxu0 0
    %958 = vmatpush1.bf16.msra.mxu0 %v308
    %959 = vmatprep.subr.bf16.mxu0 0
    %960 = vmatpush1.bf16.msra.mxu0 %v307
    %961 = vmatprep.subr.bf16.mxu0 0
    %962 = vmatpush2.bf16.msra.mxu0 0
    %963 = vmatprep.subr.bf16.mxu0 0
    %964 = vmatpush2.bf16.msra.mxu0 0
    %965 = vmatprep.subr.bf16.mxu0 0
    %966 = vmatpush2.bf16.msra.mxu0 0
    %967 = vmatprep.subr.bf16.mxu0 0
    %968 = vmatpush2.bf16.msra.mxu0 0
    %969 = vmatprep.subr.bf16.mxu0 0
    %970 = vmatpush2.bf16.msra.mxu0 0
    %971 = vmatprep.subr.bf16.mxu0 0
    %972 = vmatpush2.bf16.msra.mxu0 0
    %973 = vmatprep.subr.bf16.mxu0 0
    %974 = vmatpush2.bf16.msra.mxu0 0
    %975 = vmatprep.subr.bf16.mxu0 0
    %976 = vmatpush2.bf16.msra.mxu0 0
    %977 = vmatprep.mubr.bf16.mxu0 0
    %978 = vmatmul.mubr.bf16.gmra.mxu0 %v896
    %v979 = vpop.f32.mrf.mxu0
    %v980 = vadd.f32 %v214, %v979
    %v981 = vpop.f32.mrf.mxu0
    %v982 = vpop.f32.mrf.mxu0
    %v983 = vpop.f32.mrf.mxu0
    %984 = vdwg.mxu0
    %v985 = vmul.f32 %v944, %v980
    %v986 = vadd.f32 %v191, %v985
    %v987 = vtanh.pop %v986
    %v988 = vsub.f32 %v893, %v987
    %990 = vrot.lane.b32.xlu0 %v988, 64
    %v991 = vpop.permute.xlu0 %990
    %v993 = vmul.f32 %v944, %v991
    %995 = vrot.lane.b32.xlu0 %v993, 64
    %v996 = vpop.permute.xlu0 %995
    %v998 = vadd.f32 %v987, %v996
    %v999 = vpack.c.bf16 %v998, %v998
    %v1001 = vsel %vm240, %v999, 0
    %1003 = vmatprep.subr.bf16.mxu0 0
    %1004 = vmatpush1.bf16.msra.mxu0 0
    %1005 = vmatprep.subr.bf16.mxu0 0
    %1006 = vmatpush1.bf16.msra.mxu0 0
    %1007 = vmatprep.subr.bf16.mxu0 0
    %1008 = vmatpush1.bf16.msra.mxu0 0
    %1009 = vmatprep.subr.bf16.mxu0 0
    %1010 = vmatpush1.bf16.msra.mxu0 0
    %1011 = vmatprep.subr.bf16.mxu0 0
    %1012 = vmatpush1.bf16.msra.mxu0 %v235
    %1013 = vmatprep.subr.bf16.mxu0 0
    %1014 = vmatpush1.bf16.msra.mxu0 %v234
    %1015 = vmatprep.subr.bf16.mxu0 0
    %1016 = vmatpush1.bf16.msra.mxu0 %v233
    %1017 = vmatprep.subr.bf16.mxu0 0
    %1018 = vmatpush1.bf16.msra.mxu0 %v232
    %1019 = vmatprep.subr.bf16.mxu0 0
    %1020 = vmatpush2.bf16.msra.mxu0 0
    %1021 = vmatprep.subr.bf16.mxu0 0
    %1022 = vmatpush2.bf16.msra.mxu0 0
    %1023 = vmatprep.subr.bf16.mxu0 0
    %1024 = vmatpush2.bf16.msra.mxu0 0
    %1025 = vmatprep.subr.bf16.mxu0 0
    %1026 = vmatpush2.bf16.msra.mxu0 0
    %1027 = vmatprep.subr.bf16.mxu0 0
    %1028 = vmatpush2.bf16.msra.mxu0 0
    %1029 = vmatprep.subr.bf16.mxu0 0
    %1030 = vmatpush2.bf16.msra.mxu0 0
    %1031 = vmatprep.subr.bf16.mxu0 0
    %1032 = vmatpush2.bf16.msra.mxu0 0
    %1033 = vmatprep.subr.bf16.mxu0 0
    %1034 = vmatpush2.bf16.msra.mxu0 0
    %1035 = vmatprep.mubr.bf16.mxu0 0
    %1036 = vmatmul.mubr.bf16.gmra.mxu0 %v1001
    %v1037 = vpop.f32.mrf.mxu0
    %v1038 = vadd.f32 0.0, %v1037
    %v1039 = vpop.f32.mrf.mxu0
    %v1040 = vpop.f32.mrf.mxu0
    %v1041 = vpop.f32.mrf.mxu0
    %1042 = vdwg.mxu0
    %v1043 = vadd.f32 %v162, %v1038
    %v1044 = vxor.u32 %v1043, 2147483648
    %v1045 = vmul.f32 %v1044, 1.442695
    %v1046 = vpow.pop %v1045
    %v1047 = vadd.f32 %v1046, 1.0
    %v1048 = vrcp.pop %v1047
    %v1049 = vmul.f32 1.0, %v1048
    %1050 = vmatprep.subr.bf16.mxu0 0
    %1051 = vmatpush1.bf16.msra.mxu0 0
    %1052 = vmatprep.subr.bf16.mxu0 0
    %1053 = vmatpush1.bf16.msra.mxu0 0
    %1054 = vmatprep.subr.bf16.mxu0 0
    %1055 = vmatpush1.bf16.msra.mxu0 0
    %1056 = vmatprep.subr.bf16.mxu0 0
    %1057 = vmatpush1.bf16.msra.mxu0 0
    %1058 = vmatprep.subr.bf16.mxu0 0
    %1059 = vmatpush1.bf16.msra.mxu0 %v310
    %1060 = vmatprep.subr.bf16.mxu0 0
    %1061 = vmatpush1.bf16.msra.mxu0 %v309
    %1062 = vmatprep.subr.bf16.mxu0 0
    %1063 = vmatpush1.bf16.msra.mxu0 %v308
    %1064 = vmatprep.subr.bf16.mxu0 0
    %1065 = vmatpush1.bf16.msra.mxu0 %v307
    %1066 = vmatprep.subr.bf16.mxu0 0
    %1067 = vmatpush2.bf16.msra.mxu0 0
    %1068 = vmatprep.subr.bf16.mxu0 0
    %1069 = vmatpush2.bf16.msra.mxu0 0
    %1070 = vmatprep.subr.bf16.mxu0 0
    %1071 = vmatpush2.bf16.msra.mxu0 0
    %1072 = vmatprep.subr.bf16.mxu0 0
    %1073 = vmatpush2.bf16.msra.mxu0 0
    %1074 = vmatprep.subr.bf16.mxu0 0
    %1075 = vmatpush2.bf16.msra.mxu0 0
    %1076 = vmatprep.subr.bf16.mxu0 0
    %1077 = vmatpush2.bf16.msra.mxu0 0
    %1078 = vmatprep.subr.bf16.mxu0 0
    %1079 = vmatpush2.bf16.msra.mxu0 0
    %1080 = vmatprep.subr.bf16.mxu0 0
    %1081 = vmatpush2.bf16.msra.mxu0 0
    %1082 = vmatprep.mubr.bf16.mxu0 0
    %1083 = vmatmul.mubr.bf16.gmra.mxu0 %v1001
    %v1084 = vpop.f32.mrf.mxu0
    %v1085 = vadd.f32 %v214, %v1084
    %v1086 = vpop.f32.mrf.mxu0
    %v1087 = vpop.f32.mrf.mxu0
    %v1088 = vpop.f32.mrf.mxu0
    %1089 = vdwg.mxu0
    %v1090 = vmul.f32 %v1049, %v1085
    %v1091 = vadd.f32 %v192, %v1090
    %v1092 = vtanh.pop %v1091
    %v1093 = vsub.f32 %v998, %v1092
    %1095 = vrot.lane.b32.xlu0 %v1093, 64
    %v1096 = vpop.permute.xlu0 %1095
    %v1098 = vmul.f32 %v1049, %v1096
    %1100 = vrot.lane.b32.xlu0 %v1098, 64
    %v1101 = vpop.permute.xlu0 %1100
    %v1103 = vadd.f32 %v1092, %v1101
    %v1104 = vpack.c.bf16 %v473, %v368
    %v1105 = vpack.c.bf16 %v683, %v578
    %v1106 = vpack.c.bf16 %v893, %v788
    %v1107 = vpack.c.bf16 %v1103, %v998
    %v1108 = vld [vmem:[#allocation3] sm:$0xf]
    %v1109 = vld [vmem:[#allocation3 + $0x4] sm:$0xf]
    %v1110 = vld [vmem:[#allocation3 + $0x8] sm:$0xf]
    %v1111 = vld [vmem:[#allocation3 + $0xc] sm:$0xf]
    %v1112 = vld [vmem:[#allocation3 + $0x10] sm:$0xf]
    %v1113 = vld [vmem:[#allocation3 + $0x14] sm:$0xf]
    %v1114 = vld [vmem:[#allocation3 + $0x18] sm:$0xf]
    %v1115 = vld [vmem:[#allocation3 + $0x1c] sm:$0xf]
    %s1116 = scalar_lea.vmem %s7, 1
    %v1117 = vld [vmem:[%s1116] sm:$0x1]
    %v1119 = vlaneseq
    %v1120 = vshrl.u32 %v1119, 7
    %v1121 = vsub.s32 0, %v1120
    %v1122 = vrot.slane %v1117, %v1121
    %v1132 = vunpack.c.l.b16 %v1108
    %v1133 = vunpack.c.l.b16 %v1109
    %v1134 = vunpack.c.l.b16 %v1110
    %v1135 = vunpack.c.l.b16 %v1111
    %v1136 = vunpack.c.l.b16 %v1112
    %v1137 = vunpack.c.l.b16 %v1113
    %v1138 = vunpack.c.l.b16 %v1114
    %v1139 = vunpack.c.l.b16 %v1115
    %v1140 = vpack.c.b16 %v1133, %v1132
    %v1141 = vpack.c.b16 %v1135, %v1134
    %v1142 = vpack.c.b16 %v1137, %v1136
    %v1143 = vpack.c.b16 %v1139, %v1138
    %v1149 = vsel %vm240, %v1104, 0
    %v1152 = vsel %vm240, %v1105, 0
    %v1155 = vsel %vm240, %v1106, 0
    %v1158 = vsel %vm240, %v1107, 0
    %1160 = vmatprep.subr.bf16.mxu0 0
    %1161 = vmatpush1.bf16.msra.mxu0 0
    %1162 = vmatprep.subr.bf16.mxu0 0
    %1163 = vmatpush1.bf16.msra.mxu0 0
    %1164 = vmatprep.subr.bf16.mxu0 0
    %1165 = vmatpush1.bf16.msra.mxu0 0
    %1166 = vmatprep.subr.bf16.mxu0 0
    %1167 = vmatpush1.bf16.msra.mxu0 0
    %1168 = vmatprep.subr.bf16.mxu0 0
    %1169 = vmatpush1.bf16.msra.mxu0 %v1143
    %1170 = vmatprep.subr.bf16.mxu0 0
    %1171 = vmatpush1.bf16.msra.mxu0 %v1142
    %1172 = vmatprep.subr.bf16.mxu0 0
    %1173 = vmatpush1.bf16.msra.mxu0 %v1141
    %1174 = vmatprep.subr.bf16.mxu0 0
    %1175 = vmatpush1.bf16.msra.mxu0 %v1140
    %1176 = vmatprep.subr.bf16.mxu0 0
    %1177 = vmatpush2.bf16.msra.mxu0 0
    %1178 = vmatprep.subr.bf16.mxu0 0
    %1179 = vmatpush2.bf16.msra.mxu0 0
    %1180 = vmatprep.subr.bf16.mxu0 0
    %1181 = vmatpush2.bf16.msra.mxu0 0
    %1182 = vmatprep.subr.bf16.mxu0 0
    %1183 = vmatpush2.bf16.msra.mxu0 0
    %1184 = vmatprep.subr.bf16.mxu0 0
    %1185 = vmatpush2.bf16.msra.mxu0 0
    %1186 = vmatprep.subr.bf16.mxu0 0
    %1187 = vmatpush2.bf16.msra.mxu0 0
    %1188 = vmatprep.subr.bf16.mxu0 0
    %1189 = vmatpush2.bf16.msra.mxu0 0
    %1190 = vmatprep.subr.bf16.mxu0 0
    %1191 = vmatpush2.bf16.msra.mxu0 0
    %1192 = vmatprep.mubr.bf16.mxu0 0
    %1193 = vmatmul.mubr.bf16.gmra.mxu0 %v1149
    %v1194 = vpop.f32.mrf.mxu0
    %v1195 = vadd.f32 %v1122, %v1194
    %v1196 = vpop.f32.mrf.mxu0
    %v1197 = vpop.f32.mrf.mxu0
    %v1198 = vadd.f32 %v1122, %v1197
    %v1199 = vpop.f32.mrf.mxu0
    %1200 = vmatprep.mubr.bf16.mxu0 0
    %1201 = vmatmul.mubr.bf16.gmra.mxu0 %v1152
    %v1202 = vpop.f32.mrf.mxu0
    %v1203 = vadd.f32 %v1122, %v1202
    %v1204 = vpop.f32.mrf.mxu0
    %v1205 = vpop.f32.mrf.mxu0
    %v1206 = vadd.f32 %v1122, %v1205
    %v1207 = vpop.f32.mrf.mxu0
    %1208 = vmatprep.mubr.bf16.mxu0 0
    %1209 = vmatmul.mubr.bf16.gmra.mxu0 %v1155
    %v1210 = vpop.f32.mrf.mxu0
    %v1211 = vadd.f32 %v1122, %v1210
    %v1212 = vpop.f32.mrf.mxu0
    %v1213 = vpop.f32.mrf.mxu0
    %v1214 = vadd.f32 %v1122, %v1213
    %v1215 = vpop.f32.mrf.mxu0
    %1216 = vmatprep.mubr.bf16.mxu0 0
    %1217 = vmatmul.mubr.bf16.gmra.mxu0 %v1158
    %v1218 = vpop.f32.mrf.mxu0
    %v1219 = vadd.f32 %v1122, %v1218
    %v1220 = vpop.f32.mrf.mxu0
    %v1221 = vpop.f32.mrf.mxu0
    %v1222 = vadd.f32 %v1122, %v1221
    %v1223 = vpop.f32.mrf.mxu0
    %1224 = vdwg.mxu0
    %v1225 = vld [vmem:[#allocation5] sm:$0xf]
    %v1226 = vld [vmem:[#allocation5 + $0x4] sm:$0xf]
    %v1227 = vld [vmem:[#allocation5 + $0x8] sm:$0xf]
    %v1228 = vld [vmem:[#allocation5 + $0xc] sm:$0xf]
    %v1229 = vld [vmem:[#allocation5 + $0x10] sm:$0xf]
    %v1230 = vld [vmem:[#allocation5 + $0x14] sm:$0xf]
    %v1231 = vld [vmem:[#allocation5 + $0x18] sm:$0xf]
    %v1232 = vld [vmem:[#allocation5 + $0x1c] sm:$0xf]
    %s1233 = scalar_lea.vmem %s8, 1
    %v1234 = vld [vmem:[%s1233] sm:$0x1]
    %v1236 = vlaneseq
    %v1237 = vshrl.u32 %v1236, 7
    %v1238 = vsub.s32 0, %v1237
    %v1239 = vrot.slane %v1234, %v1238
    %v1249 = vunpack.c.l.b16 %v1225
    %v1250 = vunpack.c.l.b16 %v1226
    %v1251 = vunpack.c.l.b16 %v1227
    %v1252 = vunpack.c.l.b16 %v1228
    %v1253 = vunpack.c.l.b16 %v1229
    %v1254 = vunpack.c.l.b16 %v1230
    %v1255 = vunpack.c.l.b16 %v1231
    %v1256 = vunpack.c.l.b16 %v1232
    %v1257 = vpack.c.b16 %v1250, %v1249
    %v1258 = vpack.c.b16 %v1252, %v1251
    %v1259 = vpack.c.b16 %v1254, %v1253
    %v1260 = vpack.c.b16 %v1256, %v1255
    %1265 = vmatprep.subr.bf16.mxu0 0
    %1266 = vmatpush1.bf16.msra.mxu0 0
    %1267 = vmatprep.subr.bf16.mxu0 0
    %1268 = vmatpush1.bf16.msra.mxu0 0
    %1269 = vmatprep.subr.bf16.mxu0 0
    %1270 = vmatpush1.bf16.msra.mxu0 0
    %1271 = vmatprep.subr.bf16.mxu0 0
    %1272 = vmatpush1.bf16.msra.mxu0 0
    %1273 = vmatprep.subr.bf16.mxu0 0
    %1274 = vmatpush1.bf16.msra.mxu0 %v1260
    %1275 = vmatprep.subr.bf16.mxu0 0
    %1276 = vmatpush1.bf16.msra.mxu0 %v1259
    %1277 = vmatprep.subr.bf16.mxu0 0
    %1278 = vmatpush1.bf16.msra.mxu0 %v1258
    %1279 = vmatprep.subr.bf16.mxu0 0
    %1280 = vmatpush1.bf16.msra.mxu0 %v1257
    %1281 = vmatprep.subr.bf16.mxu0 0
    %1282 = vmatpush2.bf16.msra.mxu0 0
    %1283 = vmatprep.subr.bf16.mxu0 0
    %1284 = vmatpush2.bf16.msra.mxu0 0
    %1285 = vmatprep.subr.bf16.mxu0 0
    %1286 = vmatpush2.bf16.msra.mxu0 0
    %1287 = vmatprep.subr.bf16.mxu0 0
    %1288 = vmatpush2.bf16.msra.mxu0 0
    %1289 = vmatprep.subr.bf16.mxu0 0
    %1290 = vmatpush2.bf16.msra.mxu0 0
    %1291 = vmatprep.subr.bf16.mxu0 0
    %1292 = vmatpush2.bf16.msra.mxu0 0
    %1293 = vmatprep.subr.bf16.mxu0 0
    %1294 = vmatpush2.bf16.msra.mxu0 0
    %1295 = vmatprep.subr.bf16.mxu0 0
    %1296 = vmatpush2.bf16.msra.mxu0 0
    %1297 = vmatprep.mubr.bf16.mxu0 0
    %1298 = vmatmul.mubr.bf16.gmra.mxu0 %v1149
    %v1299 = vpop.f32.mrf.mxu0
    %v1300 = vadd.f32 %v1239, %v1299
    %v1301 = vpop.f32.mrf.mxu0
    %v1302 = vpop.f32.mrf.mxu0
    %v1303 = vadd.f32 %v1239, %v1302
    %v1304 = vpop.f32.mrf.mxu0
    %1305 = vmatprep.mubr.bf16.mxu0 0
    %1306 = vmatmul.mubr.bf16.gmra.mxu0 %v1152
    %v1307 = vpop.f32.mrf.mxu0
    %v1308 = vadd.f32 %v1239, %v1307
    %v1309 = vpop.f32.mrf.mxu0
    %v1310 = vpop.f32.mrf.mxu0
    %v1311 = vadd.f32 %v1239, %v1310
    %v1312 = vpop.f32.mrf.mxu0
    %1313 = vmatprep.mubr.bf16.mxu0 0
    %1314 = vmatmul.mubr.bf16.gmra.mxu0 %v1155
    %v1315 = vpop.f32.mrf.mxu0
    %v1316 = vadd.f32 %v1239, %v1315
    %v1317 = vpop.f32.mrf.mxu0
    %v1318 = vpop.f32.mrf.mxu0
    %v1319 = vadd.f32 %v1239, %v1318
    %v1320 = vpop.f32.mrf.mxu0
    %1321 = vmatprep.mubr.bf16.mxu0 0
    %1322 = vmatmul.mubr.bf16.gmra.mxu0 %v1158
    %v1323 = vpop.f32.mrf.mxu0
    %v1324 = vadd.f32 %v1239, %v1323
    %v1325 = vpop.f32.mrf.mxu0
    %v1326 = vpop.f32.mrf.mxu0
    %v1327 = vadd.f32 %v1239, %v1326
    %v1328 = vpop.f32.mrf.mxu0
    %1329 = vdwg.mxu0
    %s1330 = scalar_lea.vmem %s5, 32
    %v1331 = vld [vmem:[%s1330] sm:$0xf]
    %v1332 = vld [vmem:[%s1330 + $0x4] sm:$0xf]
    %v1333 = vld [vmem:[%s1330 + $0x8] sm:$0xf]
    %v1334 = vld [vmem:[%s1330 + $0xc] sm:$0xf]
    %v1335 = vld [vmem:[%s1330 + $0x10] sm:$0xf]
    %v1336 = vld [vmem:[%s1330 + $0x14] sm:$0xf]
    %v1337 = vld [vmem:[%s1330 + $0x18] sm:$0xf]
    %v1338 = vld [vmem:[%s1330 + $0x1c] sm:$0xf]
    %s1339 = scalar_lea.vmem [#allocation7], 32
    %v1340 = vld [vmem:[%s1339] sm:$0xf]
    %v1341 = vld [vmem:[%s1339 + $0x4] sm:$0xf]
    %v1342 = vld [vmem:[%s1339 + $0x8] sm:$0xf]
    %v1343 = vld [vmem:[%s1339 + $0xc] sm:$0xf]
    %v1344 = vld [vmem:[%s1339 + $0x10] sm:$0xf]
    %v1345 = vld [vmem:[%s1339 + $0x14] sm:$0xf]
    %v1346 = vld [vmem:[%s1339 + $0x18] sm:$0xf]
    %v1347 = vld [vmem:[%s1339 + $0x1c] sm:$0xf]
    %s1348 = scalar_lea.vmem %s9, 1
    %v1349 = vld [vmem:[%s1348] sm:$0x1]
    %v1351 = vlaneseq
    %v1352 = vshrl.u32 %v1351, 7
    %v1353 = vsub.s32 0, %v1352
    %v1354 = vrot.slane %v1349, %v1353
    %v1364 = vunpack.c.l.b16 %v1331
    %v1365 = vunpack.c.l.b16 %v1332
    %v1366 = vunpack.c.l.b16 %v1333
    %v1367 = vunpack.c.l.b16 %v1334
    %v1368 = vunpack.c.l.b16 %v1335
    %v1369 = vunpack.c.l.b16 %v1336
    %v1370 = vunpack.c.l.b16 %v1337
    %v1371 = vunpack.c.l.b16 %v1338
    %v1372 = vpack.c.b16 %v1365, %v1364
    %v1373 = vpack.c.b16 %v1367, %v1366
    %v1374 = vpack.c.b16 %v1369, %v1368
    %v1375 = vpack.c.b16 %v1371, %v1370
    %1380 = vmatprep.subr.bf16.mxu0 0
    %1381 = vmatpush1.bf16.msra.mxu0 0
    %1382 = vmatprep.subr.bf16.mxu0 0
    %1383 = vmatpush1.bf16.msra.mxu0 0
    %1384 = vmatprep.subr.bf16.mxu0 0
    %1385 = vmatpush1.bf16.msra.mxu0 0
    %1386 = vmatprep.subr.bf16.mxu0 0
    %1387 = vmatpush1.bf16.msra.mxu0 0
    %1388 = vmatprep.subr.bf16.mxu0 0
    %1389 = vmatpush1.bf16.msra.mxu0 %v1375
    %1390 = vmatprep.subr.bf16.mxu0 0
    %1391 = vmatpush1.bf16.msra.mxu0 %v1374
    %1392 = vmatprep.subr.bf16.mxu0 0
    %1393 = vmatpush1.bf16.msra.mxu0 %v1373
    %1394 = vmatprep.subr.bf16.mxu0 0
    %1395 = vmatpush1.bf16.msra.mxu0 %v1372
    %1396 = vmatprep.subr.bf16.mxu0 0
    %1397 = vmatpush2.bf16.msra.mxu0 0
    %1398 = vmatprep.subr.bf16.mxu0 0
    %1399 = vmatpush2.bf16.msra.mxu0 0
    %1400 = vmatprep.subr.bf16.mxu0 0
    %1401 = vmatpush2.bf16.msra.mxu0 0
    %1402 = vmatprep.subr.bf16.mxu0 0
    %1403 = vmatpush2.bf16.msra.mxu0 0
    %1404 = vmatprep.subr.bf16.mxu0 0
    %1405 = vmatpush2.bf16.msra.mxu0 0
    %1406 = vmatprep.subr.bf16.mxu0 0
    %1407 = vmatpush2.bf16.msra.mxu0 0
    %1408 = vmatprep.subr.bf16.mxu0 0
    %1409 = vmatpush2.bf16.msra.mxu0 0
    %1410 = vmatprep.subr.bf16.mxu0 0
    %1411 = vmatpush2.bf16.msra.mxu0 0
    %1412 = vmatprep.mubr.bf16.mxu0 0
    %1413 = vmatmul.mubr.bf16.gmra.mxu0 %v242
    %v1414 = vpop.f32.mrf.mxu0
    %v1415 = vadd.f32 0.0, %v1414
    %v1416 = vpop.f32.mrf.mxu0
    %v1417 = vpop.f32.mrf.mxu0
    %v1418 = vpop.f32.mrf.mxu0
    %1419 = vdwg.mxu0
    %v1420 = vadd.f32 %v1195, %v1415
    %v1421 = vxor.u32 %v1420, 2147483648
    %v1422 = vmul.f32 %v1421, 1.442695
    %v1423 = vpow.pop %v1422
    %v1424 = vadd.f32 %v1423, 1.0
    %v1425 = vrcp.pop %v1424
    %v1426 = vmul.f32 1.0, %v1425
    %v1435 = vunpack.c.l.b16 %v1340
    %v1436 = vunpack.c.l.b16 %v1341
    %v1437 = vunpack.c.l.b16 %v1342
    %v1438 = vunpack.c.l.b16 %v1343
    %v1439 = vunpack.c.l.b16 %v1344
    %v1440 = vunpack.c.l.b16 %v1345
    %v1441 = vunpack.c.l.b16 %v1346
    %v1442 = vunpack.c.l.b16 %v1347
    %v1443 = vpack.c.b16 %v1436, %v1435
    %v1444 = vpack.c.b16 %v1438, %v1437
    %v1445 = vpack.c.b16 %v1440, %v1439
    %v1446 = vpack.c.b16 %v1442, %v1441
    %1451 = vmatprep.subr.bf16.mxu0 0
    %1452 = vmatpush1.bf16.msra.mxu0 0
    %1453 = vmatprep.subr.bf16.mxu0 0
    %1454 = vmatpush1.bf16.msra.mxu0 0
    %1455 = vmatprep.subr.bf16.mxu0 0
    %1456 = vmatpush1.bf16.msra.mxu0 0
    %1457 = vmatprep.subr.bf16.mxu0 0
    %1458 = vmatpush1.bf16.msra.mxu0 0
    %1459 = vmatprep.subr.bf16.mxu0 0
    %1460 = vmatpush1.bf16.msra.mxu0 %v1446
    %1461 = vmatprep.subr.bf16.mxu0 0
    %1462 = vmatpush1.bf16.msra.mxu0 %v1445
    %1463 = vmatprep.subr.bf16.mxu0 0
    %1464 = vmatpush1.bf16.msra.mxu0 %v1444
    %1465 = vmatprep.subr.bf16.mxu0 0
    %1466 = vmatpush1.bf16.msra.mxu0 %v1443
    %1467 = vmatprep.subr.bf16.mxu0 0
    %1468 = vmatpush2.bf16.msra.mxu0 0
    %1469 = vmatprep.subr.bf16.mxu0 0
    %1470 = vmatpush2.bf16.msra.mxu0 0
    %1471 = vmatprep.subr.bf16.mxu0 0
    %1472 = vmatpush2.bf16.msra.mxu0 0
    %1473 = vmatprep.subr.bf16.mxu0 0
    %1474 = vmatpush2.bf16.msra.mxu0 0
    %1475 = vmatprep.subr.bf16.mxu0 0
    %1476 = vmatpush2.bf16.msra.mxu0 0
    %1477 = vmatprep.subr.bf16.mxu0 0
    %1478 = vmatpush2.bf16.msra.mxu0 0
    %1479 = vmatprep.subr.bf16.mxu0 0
    %1480 = vmatpush2.bf16.msra.mxu0 0
    %1481 = vmatprep.subr.bf16.mxu0 0
    %1482 = vmatpush2.bf16.msra.mxu0 0
    %1483 = vmatprep.mubr.bf16.mxu0 0
    %1484 = vmatmul.mubr.bf16.gmra.mxu0 %v242
    %v1485 = vpop.f32.mrf.mxu0
    %v1486 = vadd.f32 %v1354, %v1485
    %v1487 = vpop.f32.mrf.mxu0
    %v1488 = vpop.f32.mrf.mxu0
    %v1489 = vpop.f32.mrf.mxu0
    %1490 = vdwg.mxu0
    %v1491 = vmul.f32 %v1426, %v1486
    %v1492 = vadd.f32 %v1300, %v1491
    %v1493 = vtanh.pop %v1492
    %v1494 = vsub.f32 0.0, %v1493
    %1496 = vrot.lane.b32.xlu0 %v1494, 64
    %v1497 = vpop.permute.xlu0 %1496
    %v1499 = vmul.f32 %v1426, %v1497
    %1501 = vrot.lane.b32.xlu0 %v1499, 64
    %v1502 = vpop.permute.xlu0 %1501
    %v1504 = vadd.f32 %v1493, %v1502
    %v1505 = vpack.c.bf16 %v1504, %v1504
    %v1507 = vsel %vm240, %v1505, 0
    %1509 = vmatprep.subr.bf16.mxu0 0
    %1510 = vmatpush1.bf16.msra.mxu0 0
    %1511 = vmatprep.subr.bf16.mxu0 0
    %1512 = vmatpush1.bf16.msra.mxu0 0
    %1513 = vmatprep.subr.bf16.mxu0 0
    %1514 = vmatpush1.bf16.msra.mxu0 0
    %1515 = vmatprep.subr.bf16.mxu0 0
    %1516 = vmatpush1.bf16.msra.mxu0 0
    %1517 = vmatprep.subr.bf16.mxu0 0
    %1518 = vmatpush1.bf16.msra.mxu0 %v1375
    %1519 = vmatprep.subr.bf16.mxu0 0
    %1520 = vmatpush1.bf16.msra.mxu0 %v1374
    %1521 = vmatprep.subr.bf16.mxu0 0
    %1522 = vmatpush1.bf16.msra.mxu0 %v1373
    %1523 = vmatprep.subr.bf16.mxu0 0
    %1524 = vmatpush1.bf16.msra.mxu0 %v1372
    %1525 = vmatprep.subr.bf16.mxu0 0
    %1526 = vmatpush2.bf16.msra.mxu0 0
    %1527 = vmatprep.subr.bf16.mxu0 0
    %1528 = vmatpush2.bf16.msra.mxu0 0
    %1529 = vmatprep.subr.bf16.mxu0 0
    %1530 = vmatpush2.bf16.msra.mxu0 0
    %1531 = vmatprep.subr.bf16.mxu0 0
    %1532 = vmatpush2.bf16.msra.mxu0 0
    %1533 = vmatprep.subr.bf16.mxu0 0
    %1534 = vmatpush2.bf16.msra.mxu0 0
    %1535 = vmatprep.subr.bf16.mxu0 0
    %1536 = vmatpush2.bf16.msra.mxu0 0
    %1537 = vmatprep.subr.bf16.mxu0 0
    %1538 = vmatpush2.bf16.msra.mxu0 0
    %1539 = vmatprep.subr.bf16.mxu0 0
    %1540 = vmatpush2.bf16.msra.mxu0 0
    %1541 = vmatprep.mubr.bf16.mxu0 0
    %1542 = vmatmul.mubr.bf16.gmra.mxu0 %v1507
    %v1543 = vpop.f32.mrf.mxu0
    %v1544 = vadd.f32 0.0, %v1543
    %v1545 = vpop.f32.mrf.mxu0
    %v1546 = vpop.f32.mrf.mxu0
    %v1547 = vpop.f32.mrf.mxu0
    %1548 = vdwg.mxu0
    %v1549 = vadd.f32 %v1198, %v1544
    %v1550 = vxor.u32 %v1549, 2147483648
    %v1551 = vmul.f32 %v1550, 1.442695
    %v1552 = vpow.pop %v1551
    %v1553 = vadd.f32 %v1552, 1.0
    %v1554 = vrcp.pop %v1553
    %v1555 = vmul.f32 1.0, %v1554
    %1556 = vmatprep.subr.bf16.mxu0 0
    %1557 = vmatpush1.bf16.msra.mxu0 0
    %1558 = vmatprep.subr.bf16.mxu0 0
    %1559 = vmatpush1.bf16.msra.mxu0 0
    %1560 = vmatprep.subr.bf16.mxu0 0
    %1561 = vmatpush1.bf16.msra.mxu0 0
    %1562 = vmatprep.subr.bf16.mxu0 0
    %1563 = vmatpush1.bf16.msra.mxu0 0
    %1564 = vmatprep.subr.bf16.mxu0 0
    %1565 = vmatpush1.bf16.msra.mxu0 %v1446
    %1566 = vmatprep.subr.bf16.mxu0 0
    %1567 = vmatpush1.bf16.msra.mxu0 %v1445
    %1568 = vmatprep.subr.bf16.mxu0 0
    %1569 = vmatpush1.bf16.msra.mxu0 %v1444
    %1570 = vmatprep.subr.bf16.mxu0 0
    %1571 = vmatpush1.bf16.msra.mxu0 %v1443
    %1572 = vmatprep.subr.bf16.mxu0 0
    %1573 = vmatpush2.bf16.msra.mxu0 0
    %1574 = vmatprep.subr.bf16.mxu0 0
    %1575 = vmatpush2.bf16.msra.mxu0 0
    %1576 = vmatprep.subr.bf16.mxu0 0
    %1577 = vmatpush2.bf16.msra.mxu0 0
    %1578 = vmatprep.subr.bf16.mxu0 0
    %1579 = vmatpush2.bf16.msra.mxu0 0
    %1580 = vmatprep.subr.bf16.mxu0 0
    %1581 = vmatpush2.bf16.msra.mxu0 0
    %1582 = vmatprep.subr.bf16.mxu0 0
    %1583 = vmatpush2.bf16.msra.mxu0 0
    %1584 = vmatprep.subr.bf16.mxu0 0
    %1585 = vmatpush2.bf16.msra.mxu0 0
    %1586 = vmatprep.subr.bf16.mxu0 0
    %1587 = vmatpush2.bf16.msra.mxu0 0
    %1588 = vmatprep.mubr.bf16.mxu0 0
    %1589 = vmatmul.mubr.bf16.gmra.mxu0 %v1507
    %v1590 = vpop.f32.mrf.mxu0
    %v1591 = vadd.f32 %v1354, %v1590
    %v1592 = vpop.f32.mrf.mxu0
    %v1593 = vpop.f32.mrf.mxu0
    %v1594 = vpop.f32.mrf.mxu0
    %1595 = vdwg.mxu0
    %v1596 = vmul.f32 %v1555, %v1591
    %v1597 = vadd.f32 %v1303, %v1596
    %v1598 = vtanh.pop %v1597
    %v1599 = vsub.f32 %v1504, %v1598
    %1601 = vrot.lane.b32.xlu0 %v1599, 64
    %v1602 = vpop.permute.xlu0 %1601
    %v1604 = vmul.f32 %v1555, %v1602
    %1606 = vrot.lane.b32.xlu0 %v1604, 64
    %v1607 = vpop.permute.xlu0 %1606
    %v1609 = vadd.f32 %v1598, %v1607
    %v1610 = vpack.c.bf16 %v1609, %v1609
    %v1612 = vsel %vm240, %v1610, 0
    %1614 = vmatprep.subr.bf16.mxu0 0
    %1615 = vmatpush1.bf16.msra.mxu0 0
    %1616 = vmatprep.subr.bf16.mxu0 0
    %1617 = vmatpush1.bf16.msra.mxu0 0
    %1618 = vmatprep.subr.bf16.mxu0 0
    %1619 = vmatpush1.bf16.msra.mxu0 0
    %1620 = vmatprep.subr.bf16.mxu0 0
    %1621 = vmatpush1.bf16.msra.mxu0 0
    %1622 = vmatprep.subr.bf16.mxu0 0
    %1623 = vmatpush1.bf16.msra.mxu0 %v1375
    %1624 = vmatprep.subr.bf16.mxu0 0
    %1625 = vmatpush1.bf16.msra.mxu0 %v1374
    %1626 = vmatprep.subr.bf16.mxu0 0
    %1627 = vmatpush1.bf16.msra.mxu0 %v1373
    %1628 = vmatprep.subr.bf16.mxu0 0
    %1629 = vmatpush1.bf16.msra.mxu0 %v1372
    %1630 = vmatprep.subr.bf16.mxu0 0
    %1631 = vmatpush2.bf16.msra.mxu0 0
    %1632 = vmatprep.subr.bf16.mxu0 0
    %1633 = vmatpush2.bf16.msra.mxu0 0
    %1634 = vmatprep.subr.bf16.mxu0 0
    %1635 = vmatpush2.bf16.msra.mxu0 0
    %1636 = vmatprep.subr.bf16.mxu0 0
    %1637 = vmatpush2.bf16.msra.mxu0 0
    %1638 = vmatprep.subr.bf16.mxu0 0
    %1639 = vmatpush2.bf16.msra.mxu0 0
    %1640 = vmatprep.subr.bf16.mxu0 0
    %1641 = vmatpush2.bf16.msra.mxu0 0
    %1642 = vmatprep.subr.bf16.mxu0 0
    %1643 = vmatpush2.bf16.msra.mxu0 0
    %1644 = vmatprep.subr.bf16.mxu0 0
    %1645 = vmatpush2.bf16.msra.mxu0 0
    %1646 = vmatprep.mubr.bf16.mxu0 0
    %1647 = vmatmul.mubr.bf16.gmra.mxu0 %v1612
    %v1648 = vpop.f32.mrf.mxu0
    %v1649 = vadd.f32 0.0, %v1648
    %v1650 = vpop.f32.mrf.mxu0
    %v1651 = vpop.f32.mrf.mxu0
    %v1652 = vpop.f32.mrf.mxu0
    %1653 = vdwg.mxu0
    %v1654 = vadd.f32 %v1203, %v1649
    %v1655 = vxor.u32 %v1654, 2147483648
    %v1656 = vmul.f32 %v1655, 1.442695
    %v1657 = vpow.pop %v1656
    %v1658 = vadd.f32 %v1657, 1.0
    %v1659 = vrcp.pop %v1658
    %v1660 = vmul.f32 1.0, %v1659
    %1661 = vmatprep.subr.bf16.mxu0 0
    %1662 = vmatpush1.bf16.msra.mxu0 0
    %1663 = vmatprep.subr.bf16.mxu0 0
    %1664 = vmatpush1.bf16.msra.mxu0 0
    %1665 = vmatprep.subr.bf16.mxu0 0
    %1666 = vmatpush1.bf16.msra.mxu0 0
    %1667 = vmatprep.subr.bf16.mxu0 0
    %1668 = vmatpush1.bf16.msra.mxu0 0
    %1669 = vmatprep.subr.bf16.mxu0 0
    %1670 = vmatpush1.bf16.msra.mxu0 %v1446
    %1671 = vmatprep.subr.bf16.mxu0 0
    %1672 = vmatpush1.bf16.msra.mxu0 %v1445
    %1673 = vmatprep.subr.bf16.mxu0 0
    %1674 = vmatpush1.bf16.msra.mxu0 %v1444
    %1675 = vmatprep.subr.bf16.mxu0 0
    %1676 = vmatpush1.bf16.msra.mxu0 %v1443
    %1677 = vmatprep.subr.bf16.mxu0 0
    %1678 = vmatpush2.bf16.msra.mxu0 0
    %1679 = vmatprep.subr.bf16.mxu0 0
    %1680 = vmatpush2.bf16.msra.mxu0 0
    %1681 = vmatprep.subr.bf16.mxu0 0
    %1682 = vmatpush2.bf16.msra.mxu0 0
    %1683 = vmatprep.subr.bf16.mxu0 0
    %1684 = vmatpush2.bf16.msra.mxu0 0
    %1685 = vmatprep.subr.bf16.mxu0 0
    %1686 = vmatpush2.bf16.msra.mxu0 0
    %1687 = vmatprep.subr.bf16.mxu0 0
    %1688 = vmatpush2.bf16.msra.mxu0 0
    %1689 = vmatprep.subr.bf16.mxu0 0
    %1690 = vmatpush2.bf16.msra.mxu0 0
    %1691 = vmatprep.subr.bf16.mxu0 0
    %1692 = vmatpush2.bf16.msra.mxu0 0
    %1693 = vmatprep.mubr.bf16.mxu0 0
    %1694 = vmatmul.mubr.bf16.gmra.mxu0 %v1612
    %v1695 = vpop.f32.mrf.mxu0
    %v1696 = vadd.f32 %v1354, %v1695
    %v1697 = vpop.f32.mrf.mxu0
    %v1698 = vpop.f32.mrf.mxu0
    %v1699 = vpop.f32.mrf.mxu0
    %1700 = vdwg.mxu0
    %v1701 = vmul.f32 %v1660, %v1696
    %v1702 = vadd.f32 %v1308, %v1701
    %v1703 = vtanh.pop %v1702
    %v1704 = vsub.f32 %v1609, %v1703
    %1706 = vrot.lane.b32.xlu0 %v1704, 64
    %v1707 = vpop.permute.xlu0 %1706
    %v1709 = vmul.f32 %v1660, %v1707
    %1711 = vrot.lane.b32.xlu0 %v1709, 64
    %v1712 = vpop.permute.xlu0 %1711
    %v1714 = vadd.f32 %v1703, %v1712
    %v1715 = vpack.c.bf16 %v1714, %v1714
    %v1717 = vsel %vm240, %v1715, 0
    %1719 = vmatprep.subr.bf16.mxu0 0
    %1720 = vmatpush1.bf16.msra.mxu0 0
    %1721 = vmatprep.subr.bf16.mxu0 0
    %1722 = vmatpush1.bf16.msra.mxu0 0
    %1723 = vmatprep.subr.bf16.mxu0 0
    %1724 = vmatpush1.bf16.msra.mxu0 0
    %1725 = vmatprep.subr.bf16.mxu0 0
    %1726 = vmatpush1.bf16.msra.mxu0 0
    %1727 = vmatprep.subr.bf16.mxu0 0
    %1728 = vmatpush1.bf16.msra.mxu0 %v1375
    %1729 = vmatprep.subr.bf16.mxu0 0
    %1730 = vmatpush1.bf16.msra.mxu0 %v1374
    %1731 = vmatprep.subr.bf16.mxu0 0
    %1732 = vmatpush1.bf16.msra.mxu0 %v1373
    %1733 = vmatprep.subr.bf16.mxu0 0
    %1734 = vmatpush1.bf16.msra.mxu0 %v1372
    %1735 = vmatprep.subr.bf16.mxu0 0
    %1736 = vmatpush2.bf16.msra.mxu0 0
    %1737 = vmatprep.subr.bf16.mxu0 0
    %1738 = vmatpush2.bf16.msra.mxu0 0
    %1739 = vmatprep.subr.bf16.mxu0 0
    %1740 = vmatpush2.bf16.msra.mxu0 0
    %1741 = vmatprep.subr.bf16.mxu0 0
    %1742 = vmatpush2.bf16.msra.mxu0 0
    %1743 = vmatprep.subr.bf16.mxu0 0
    %1744 = vmatpush2.bf16.msra.mxu0 0
    %1745 = vmatprep.subr.bf16.mxu0 0
    %1746 = vmatpush2.bf16.msra.mxu0 0
    %1747 = vmatprep.subr.bf16.mxu0 0
    %1748 = vmatpush2.bf16.msra.mxu0 0
    %1749 = vmatprep.subr.bf16.mxu0 0
    %1750 = vmatpush2.bf16.msra.mxu0 0
    %1751 = vmatprep.mubr.bf16.mxu0 0
    %1752 = vmatmul.mubr.bf16.gmra.mxu0 %v1717
    %v1753 = vpop.f32.mrf.mxu0
    %v1754 = vadd.f32 0.0, %v1753
    %v1755 = vpop.f32.mrf.mxu0
    %v1756 = vpop.f32.mrf.mxu0
    %v1757 = vpop.f32.mrf.mxu0
    %1758 = vdwg.mxu0
    %v1759 = vadd.f32 %v1206, %v1754
    %v1760 = vxor.u32 %v1759, 2147483648
    %v1761 = vmul.f32 %v1760, 1.442695
    %v1762 = vpow.pop %v1761
    %v1763 = vadd.f32 %v1762, 1.0
    %v1764 = vrcp.pop %v1763
    %v1765 = vmul.f32 1.0, %v1764
    %1766 = vmatprep.subr.bf16.mxu0 0
    %1767 = vmatpush1.bf16.msra.mxu0 0
    %1768 = vmatprep.subr.bf16.mxu0 0
    %1769 = vmatpush1.bf16.msra.mxu0 0
    %1770 = vmatprep.subr.bf16.mxu0 0
    %1771 = vmatpush1.bf16.msra.mxu0 0
    %1772 = vmatprep.subr.bf16.mxu0 0
    %1773 = vmatpush1.bf16.msra.mxu0 0
    %1774 = vmatprep.subr.bf16.mxu0 0
    %1775 = vmatpush1.bf16.msra.mxu0 %v1446
    %1776 = vmatprep.subr.bf16.mxu0 0
    %1777 = vmatpush1.bf16.msra.mxu0 %v1445
    %1778 = vmatprep.subr.bf16.mxu0 0
    %1779 = vmatpush1.bf16.msra.mxu0 %v1444
    %1780 = vmatprep.subr.bf16.mxu0 0
    %1781 = vmatpush1.bf16.msra.mxu0 %v1443
    %1782 = vmatprep.subr.bf16.mxu0 0
    %1783 = vmatpush2.bf16.msra.mxu0 0
    %1784 = vmatprep.subr.bf16.mxu0 0
    %1785 = vmatpush2.bf16.msra.mxu0 0
    %1786 = vmatprep.subr.bf16.mxu0 0
    %1787 = vmatpush2.bf16.msra.mxu0 0
    %1788 = vmatprep.subr.bf16.mxu0 0
    %1789 = vmatpush2.bf16.msra.mxu0 0
    %1790 = vmatprep.subr.bf16.mxu0 0
    %1791 = vmatpush2.bf16.msra.mxu0 0
    %1792 = vmatprep.subr.bf16.mxu0 0
    %1793 = vmatpush2.bf16.msra.mxu0 0
    %1794 = vmatprep.subr.bf16.mxu0 0
    %1795 = vmatpush2.bf16.msra.mxu0 0
    %1796 = vmatprep.subr.bf16.mxu0 0
    %1797 = vmatpush2.bf16.msra.mxu0 0
    %1798 = vmatprep.mubr.bf16.mxu0 0
    %1799 = vmatmul.mubr.bf16.gmra.mxu0 %v1717
    %v1800 = vpop.f32.mrf.mxu0
    %v1801 = vadd.f32 %v1354, %v1800
    %v1802 = vpop.f32.mrf.mxu0
    %v1803 = vpop.f32.mrf.mxu0
    %v1804 = vpop.f32.mrf.mxu0
    %1805 = vdwg.mxu0
    %v1806 = vmul.f32 %v1765, %v1801
    %v1807 = vadd.f32 %v1311, %v1806
    %v1808 = vtanh.pop %v1807
    %v1809 = vsub.f32 %v1714, %v1808
    %1811 = vrot.lane.b32.xlu0 %v1809, 64
    %v1812 = vpop.permute.xlu0 %1811
    %v1814 = vmul.f32 %v1765, %v1812
    %1816 = vrot.lane.b32.xlu0 %v1814, 64
    %v1817 = vpop.permute.xlu0 %1816
    %v1819 = vadd.f32 %v1808, %v1817
    %v1820 = vpack.c.bf16 %v1819, %v1819
    %v1822 = vsel %vm240, %v1820, 0
    %1824 = vmatprep.subr.bf16.mxu0 0
    %1825 = vmatpush1.bf16.msra.mxu0 0
    %1826 = vmatprep.subr.bf16.mxu0 0
    %1827 = vmatpush1.bf16.msra.mxu0 0
    %1828 = vmatprep.subr.bf16.mxu0 0
    %1829 = vmatpush1.bf16.msra.mxu0 0
    %1830 = vmatprep.subr.bf16.mxu0 0
    %1831 = vmatpush1.bf16.msra.mxu0 0
    %1832 = vmatprep.subr.bf16.mxu0 0
    %1833 = vmatpush1.bf16.msra.mxu0 %v1375
    %1834 = vmatprep.subr.bf16.mxu0 0
    %1835 = vmatpush1.bf16.msra.mxu0 %v1374
    %1836 = vmatprep.subr.bf16.mxu0 0
    %1837 = vmatpush1.bf16.msra.mxu0 %v1373
    %1838 = vmatprep.subr.bf16.mxu0 0
    %1839 = vmatpush1.bf16.msra.mxu0 %v1372
    %1840 = vmatprep.subr.bf16.mxu0 0
    %1841 = vmatpush2.bf16.msra.mxu0 0
    %1842 = vmatprep.subr.bf16.mxu0 0
    %1843 = vmatpush2.bf16.msra.mxu0 0
    %1844 = vmatprep.subr.bf16.mxu0 0
    %1845 = vmatpush2.bf16.msra.mxu0 0
    %1846 = vmatprep.subr.bf16.mxu0 0
    %1847 = vmatpush2.bf16.msra.mxu0 0
    %1848 = vmatprep.subr.bf16.mxu0 0
    %1849 = vmatpush2.bf16.msra.mxu0 0
    %1850 = vmatprep.subr.bf16.mxu0 0
    %1851 = vmatpush2.bf16.msra.mxu0 0
    %1852 = vmatprep.subr.bf16.mxu0 0
    %1853 = vmatpush2.bf16.msra.mxu0 0
    %1854 = vmatprep.subr.bf16.mxu0 0
    %1855 = vmatpush2.bf16.msra.mxu0 0
    %1856 = vmatprep.mubr.bf16.mxu0 0
    %1857 = vmatmul.mubr.bf16.gmra.mxu0 %v1822
    %v1858 = vpop.f32.mrf.mxu0
    %v1859 = vadd.f32 0.0, %v1858
    %v1860 = vpop.f32.mrf.mxu0
    %v1861 = vpop.f32.mrf.mxu0
    %v1862 = vpop.f32.mrf.mxu0
    %1863 = vdwg.mxu0
    %v1864 = vadd.f32 %v1211, %v1859
    %v1865 = vxor.u32 %v1864, 2147483648
    %v1866 = vmul.f32 %v1865, 1.442695
    %v1867 = vpow.pop %v1866
    %v1868 = vadd.f32 %v1867, 1.0
    %v1869 = vrcp.pop %v1868
    %v1870 = vmul.f32 1.0, %v1869
    %1871 = vmatprep.subr.bf16.mxu0 0
    %1872 = vmatpush1.bf16.msra.mxu0 0
    %1873 = vmatprep.subr.bf16.mxu0 0
    %1874 = vmatpush1.bf16.msra.mxu0 0
    %1875 = vmatprep.subr.bf16.mxu0 0
    %1876 = vmatpush1.bf16.msra.mxu0 0
    %1877 = vmatprep.subr.bf16.mxu0 0
    %1878 = vmatpush1.bf16.msra.mxu0 0
    %1879 = vmatprep.subr.bf16.mxu0 0
    %1880 = vmatpush1.bf16.msra.mxu0 %v1446
    %1881 = vmatprep.subr.bf16.mxu0 0
    %1882 = vmatpush1.bf16.msra.mxu0 %v1445
    %1883 = vmatprep.subr.bf16.mxu0 0
    %1884 = vmatpush1.bf16.msra.mxu0 %v1444
    %1885 = vmatprep.subr.bf16.mxu0 0
    %1886 = vmatpush1.bf16.msra.mxu0 %v1443
    %1887 = vmatprep.subr.bf16.mxu0 0
    %1888 = vmatpush2.bf16.msra.mxu0 0
    %1889 = vmatprep.subr.bf16.mxu0 0
    %1890 = vmatpush2.bf16.msra.mxu0 0
    %1891 = vmatprep.subr.bf16.mxu0 0
    %1892 = vmatpush2.bf16.msra.mxu0 0
    %1893 = vmatprep.subr.bf16.mxu0 0
    %1894 = vmatpush2.bf16.msra.mxu0 0
    %1895 = vmatprep.subr.bf16.mxu0 0
    %1896 = vmatpush2.bf16.msra.mxu0 0
    %1897 = vmatprep.subr.bf16.mxu0 0
    %1898 = vmatpush2.bf16.msra.mxu0 0
    %1899 = vmatprep.subr.bf16.mxu0 0
    %1900 = vmatpush2.bf16.msra.mxu0 0
    %1901 = vmatprep.subr.bf16.mxu0 0
    %1902 = vmatpush2.bf16.msra.mxu0 0
    %1903 = vmatprep.mubr.bf16.mxu0 0
    %1904 = vmatmul.mubr.bf16.gmra.mxu0 %v1822
    %v1905 = vpop.f32.mrf.mxu0
    %v1906 = vadd.f32 %v1354, %v1905
    %v1907 = vpop.f32.mrf.mxu0
    %v1908 = vpop.f32.mrf.mxu0
    %v1909 = vpop.f32.mrf.mxu0
    %1910 = vdwg.mxu0
    %v1911 = vmul.f32 %v1870, %v1906
    %v1912 = vadd.f32 %v1316, %v1911
    %v1913 = vtanh.pop %v1912
    %v1914 = vsub.f32 %v1819, %v1913
    %1916 = vrot.lane.b32.xlu0 %v1914, 64
    %v1917 = vpop.permute.xlu0 %1916
    %v1919 = vmul.f32 %v1870, %v1917
    %1921 = vrot.lane.b32.xlu0 %v1919, 64
    %v1922 = vpop.permute.xlu0 %1921
    %v1924 = vadd.f32 %v1913, %v1922
    %v1925 = vpack.c.bf16 %v1924, %v1924
    %v1927 = vsel %vm240, %v1925, 0
    %1929 = vmatprep.subr.bf16.mxu0 0
    %1930 = vmatpush1.bf16.msra.mxu0 0
    %1931 = vmatprep.subr.bf16.mxu0 0
    %1932 = vmatpush1.bf16.msra.mxu0 0
    %1933 = vmatprep.subr.bf16.mxu0 0
    %1934 = vmatpush1.bf16.msra.mxu0 0
    %1935 = vmatprep.subr.bf16.mxu0 0
    %1936 = vmatpush1.bf16.msra.mxu0 0
    %1937 = vmatprep.subr.bf16.mxu0 0
    %1938 = vmatpush1.bf16.msra.mxu0 %v1375
    %1939 = vmatprep.subr.bf16.mxu0 0
    %1940 = vmatpush1.bf16.msra.mxu0 %v1374
    %1941 = vmatprep.subr.bf16.mxu0 0
    %1942 = vmatpush1.bf16.msra.mxu0 %v1373
    %1943 = vmatprep.subr.bf16.mxu0 0
    %1944 = vmatpush1.bf16.msra.mxu0 %v1372
    %1945 = vmatprep.subr.bf16.mxu0 0
    %1946 = vmatpush2.bf16.msra.mxu0 0
    %1947 = vmatprep.subr.bf16.mxu0 0
    %1948 = vmatpush2.bf16.msra.mxu0 0
    %1949 = vmatprep.subr.bf16.mxu0 0
    %1950 = vmatpush2.bf16.msra.mxu0 0
    %1951 = vmatprep.subr.bf16.mxu0 0
    %1952 = vmatpush2.bf16.msra.mxu0 0
    %1953 = vmatprep.subr.bf16.mxu0 0
    %1954 = vmatpush2.bf16.msra.mxu0 0
    %1955 = vmatprep.subr.bf16.mxu0 0
    %1956 = vmatpush2.bf16.msra.mxu0 0
    %1957 = vmatprep.subr.bf16.mxu0 0
    %1958 = vmatpush2.bf16.msra.mxu0 0
    %1959 = vmatprep.subr.bf16.mxu0 0
    %1960 = vmatpush2.bf16.msra.mxu0 0
    %1961 = vmatprep.mubr.bf16.mxu0 0
    %1962 = vmatmul.mubr.bf16.gmra.mxu0 %v1927
    %v1963 = vpop.f32.mrf.mxu0
    %v1964 = vadd.f32 0.0, %v1963
    %v1965 = vpop.f32.mrf.mxu0
    %v1966 = vpop.f32.mrf.mxu0
    %v1967 = vpop.f32.mrf.mxu0
    %1968 = vdwg.mxu0
    %v1969 = vadd.f32 %v1214, %v1964
    %v1970 = vxor.u32 %v1969, 2147483648
    %v1971 = vmul.f32 %v1970, 1.442695
    %v1972 = vpow.pop %v1971
    %v1973 = vadd.f32 %v1972, 1.0
    %v1974 = vrcp.pop %v1973
    %v1975 = vmul.f32 1.0, %v1974
    %1976 = vmatprep.subr.bf16.mxu0 0
    %1977 = vmatpush1.bf16.msra.mxu0 0
    %1978 = vmatprep.subr.bf16.mxu0 0
    %1979 = vmatpush1.bf16.msra.mxu0 0
    %1980 = vmatprep.subr.bf16.mxu0 0
    %1981 = vmatpush1.bf16.msra.mxu0 0
    %1982 = vmatprep.subr.bf16.mxu0 0
    %1983 = vmatpush1.bf16.msra.mxu0 0
    %1984 = vmatprep.subr.bf16.mxu0 0
    %1985 = vmatpush1.bf16.msra.mxu0 %v1446
    %1986 = vmatprep.subr.bf16.mxu0 0
    %1987 = vmatpush1.bf16.msra.mxu0 %v1445
    %1988 = vmatprep.subr.bf16.mxu0 0
    %1989 = vmatpush1.bf16.msra.mxu0 %v1444
    %1990 = vmatprep.subr.bf16.mxu0 0
    %1991 = vmatpush1.bf16.msra.mxu0 %v1443
    %1992 = vmatprep.subr.bf16.mxu0 0
    %1993 = vmatpush2.bf16.msra.mxu0 0
    %1994 = vmatprep.subr.bf16.mxu0 0
    %1995 = vmatpush2.bf16.msra.mxu0 0
    %1996 = vmatprep.subr.bf16.mxu0 0
    %1997 = vmatpush2.bf16.msra.mxu0 0
    %1998 = vmatprep.subr.bf16.mxu0 0
    %1999 = vmatpush2.bf16.msra.mxu0 0
    %2000 = vmatprep.subr.bf16.mxu0 0
    %2001 = vmatpush2.bf16.msra.mxu0 0
    %2002 = vmatprep.subr.bf16.mxu0 0
    %2003 = vmatpush2.bf16.msra.mxu0 0
    %2004 = vmatprep.subr.bf16.mxu0 0
    %2005 = vmatpush2.bf16.msra.mxu0 0
    %2006 = vmatprep.subr.bf16.mxu0 0
    %2007 = vmatpush2.bf16.msra.mxu0 0
    %2008 = vmatprep.mubr.bf16.mxu0 0
    %2009 = vmatmul.mubr.bf16.gmra.mxu0 %v1927
    %v2010 = vpop.f32.mrf.mxu0
    %v2011 = vadd.f32 %v1354, %v2010
    %v2012 = vpop.f32.mrf.mxu0
    %v2013 = vpop.f32.mrf.mxu0
    %v2014 = vpop.f32.mrf.mxu0
    %2015 = vdwg.mxu0
    %v2016 = vmul.f32 %v1975, %v2011
    %v2017 = vadd.f32 %v1319, %v2016
    %v2018 = vtanh.pop %v2017
    %v2019 = vsub.f32 %v1924, %v2018
    %2021 = vrot.lane.b32.xlu0 %v2019, 64
    %v2022 = vpop.permute.xlu0 %2021
    %v2024 = vmul.f32 %v1975, %v2022
    %2026 = vrot.lane.b32.xlu0 %v2024, 64
    %v2027 = vpop.permute.xlu0 %2026
    %v2029 = vadd.f32 %v2018, %v2027
    %v2030 = vpack.c.bf16 %v2029, %v2029
    %v2032 = vsel %vm240, %v2030, 0
    %2034 = vmatprep.subr.bf16.mxu0 0
    %2035 = vmatpush1.bf16.msra.mxu0 0
    %2036 = vmatprep.subr.bf16.mxu0 0
    %2037 = vmatpush1.bf16.msra.mxu0 0
    %2038 = vmatprep.subr.bf16.mxu0 0
    %2039 = vmatpush1.bf16.msra.mxu0 0
    %2040 = vmatprep.subr.bf16.mxu0 0
    %2041 = vmatpush1.bf16.msra.mxu0 0
    %2042 = vmatprep.subr.bf16.mxu0 0
    %2043 = vmatpush1.bf16.msra.mxu0 %v1375
    %2044 = vmatprep.subr.bf16.mxu0 0
    %2045 = vmatpush1.bf16.msra.mxu0 %v1374
    %2046 = vmatprep.subr.bf16.mxu0 0
    %2047 = vmatpush1.bf16.msra.mxu0 %v1373
    %2048 = vmatprep.subr.bf16.mxu0 0
    %2049 = vmatpush1.bf16.msra.mxu0 %v1372
    %2050 = vmatprep.subr.bf16.mxu0 0
    %2051 = vmatpush2.bf16.msra.mxu0 0
    %2052 = vmatprep.subr.bf16.mxu0 0
    %2053 = vmatpush2.bf16.msra.mxu0 0
    %2054 = vmatprep.subr.bf16.mxu0 0
    %2055 = vmatpush2.bf16.msra.mxu0 0
    %2056 = vmatprep.subr.bf16.mxu0 0
    %2057 = vmatpush2.bf16.msra.mxu0 0
    %2058 = vmatprep.subr.bf16.mxu0 0
    %2059 = vmatpush2.bf16.msra.mxu0 0
    %2060 = vmatprep.subr.bf16.mxu0 0
    %2061 = vmatpush2.bf16.msra.mxu0 0
    %2062 = vmatprep.subr.bf16.mxu0 0
    %2063 = vmatpush2.bf16.msra.mxu0 0
    %2064 = vmatprep.subr.bf16.mxu0 0
    %2065 = vmatpush2.bf16.msra.mxu0 0
    %2066 = vmatprep.mubr.bf16.mxu0 0
    %2067 = vmatmul.mubr.bf16.gmra.mxu0 %v2032
    %v2068 = vpop.f32.mrf.mxu0
    %v2069 = vadd.f32 0.0, %v2068
    %v2070 = vpop.f32.mrf.mxu0
    %v2071 = vpop.f32.mrf.mxu0
    %v2072 = vpop.f32.mrf.mxu0
    %2073 = vdwg.mxu0
    %v2074 = vadd.f32 %v1219, %v2069
    %v2075 = vxor.u32 %v2074, 2147483648
    %v2076 = vmul.f32 %v2075, 1.442695
    %v2077 = vpow.pop %v2076
    %v2078 = vadd.f32 %v2077, 1.0
    %v2079 = vrcp.pop %v2078
    %v2080 = vmul.f32 1.0, %v2079
    %2081 = vmatprep.subr.bf16.mxu0 0
    %2082 = vmatpush1.bf16.msra.mxu0 0
    %2083 = vmatprep.subr.bf16.mxu0 0
    %2084 = vmatpush1.bf16.msra.mxu0 0
    %2085 = vmatprep.subr.bf16.mxu0 0
    %2086 = vmatpush1.bf16.msra.mxu0 0
    %2087 = vmatprep.subr.bf16.mxu0 0
    %2088 = vmatpush1.bf16.msra.mxu0 0
    %2089 = vmatprep.subr.bf16.mxu0 0
    %2090 = vmatpush1.bf16.msra.mxu0 %v1446
    %2091 = vmatprep.subr.bf16.mxu0 0
    %2092 = vmatpush1.bf16.msra.mxu0 %v1445
    %2093 = vmatprep.subr.bf16.mxu0 0
    %2094 = vmatpush1.bf16.msra.mxu0 %v1444
    %2095 = vmatprep.subr.bf16.mxu0 0
    %2096 = vmatpush1.bf16.msra.mxu0 %v1443
    %2097 = vmatprep.subr.bf16.mxu0 0
    %2098 = vmatpush2.bf16.msra.mxu0 0
    %2099 = vmatprep.subr.bf16.mxu0 0
    %2100 = vmatpush2.bf16.msra.mxu0 0
    %2101 = vmatprep.subr.bf16.mxu0 0
    %2102 = vmatpush2.bf16.msra.mxu0 0
    %2103 = vmatprep.subr.bf16.mxu0 0
    %2104 = vmatpush2.bf16.msra.mxu0 0
    %2105 = vmatprep.subr.bf16.mxu0 0
    %2106 = vmatpush2.bf16.msra.mxu0 0
    %2107 = vmatprep.subr.bf16.mxu0 0
    %2108 = vmatpush2.bf16.msra.mxu0 0
    %2109 = vmatprep.subr.bf16.mxu0 0
    %2110 = vmatpush2.bf16.msra.mxu0 0
    %2111 = vmatprep.subr.bf16.mxu0 0
    %2112 = vmatpush2.bf16.msra.mxu0 0
    %2113 = vmatprep.mubr.bf16.mxu0 0
    %2114 = vmatmul.mubr.bf16.gmra.mxu0 %v2032
    %v2115 = vpop.f32.mrf.mxu0
    %v2116 = vadd.f32 %v1354, %v2115
    %v2117 = vpop.f32.mrf.mxu0
    %v2118 = vpop.f32.mrf.mxu0
    %v2119 = vpop.f32.mrf.mxu0
    %2120 = vdwg.mxu0
    %v2121 = vmul.f32 %v2080, %v2116
    %v2122 = vadd.f32 %v1324, %v2121
    %v2123 = vtanh.pop %v2122
    %v2124 = vsub.f32 %v2029, %v2123
    %2126 = vrot.lane.b32.xlu0 %v2124, 64
    %v2127 = vpop.permute.xlu0 %2126
    %v2129 = vmul.f32 %v2080, %v2127
    %2131 = vrot.lane.b32.xlu0 %v2129, 64
    %v2132 = vpop.permute.xlu0 %2131
    %v2134 = vadd.f32 %v2123, %v2132
    %v2135 = vpack.c.bf16 %v2134, %v2134
    %v2137 = vsel %vm240, %v2135, 0
    %2139 = vmatprep.subr.bf16.mxu0 0
    %2140 = vmatpush1.bf16.msra.mxu0 0
    %2141 = vmatprep.subr.bf16.mxu0 0
    %2142 = vmatpush1.bf16.msra.mxu0 0
    %2143 = vmatprep.subr.bf16.mxu0 0
    %2144 = vmatpush1.bf16.msra.mxu0 0
    %2145 = vmatprep.subr.bf16.mxu0 0
    %2146 = vmatpush1.bf16.msra.mxu0 0
    %2147 = vmatprep.subr.bf16.mxu0 0
    %2148 = vmatpush1.bf16.msra.mxu0 %v1375
    %2149 = vmatprep.subr.bf16.mxu0 0
    %2150 = vmatpush1.bf16.msra.mxu0 %v1374
    %2151 = vmatprep.subr.bf16.mxu0 0
    %2152 = vmatpush1.bf16.msra.mxu0 %v1373
    %2153 = vmatprep.subr.bf16.mxu0 0
    %2154 = vmatpush1.bf16.msra.mxu0 %v1372
    %2155 = vmatprep.subr.bf16.mxu0 0
    %2156 = vmatpush2.bf16.msra.mxu0 0
    %2157 = vmatprep.subr.bf16.mxu0 0
    %2158 = vmatpush2.bf16.msra.mxu0 0
    %2159 = vmatprep.subr.bf16.mxu0 0
    %2160 = vmatpush2.bf16.msra.mxu0 0
    %2161 = vmatprep.subr.bf16.mxu0 0
    %2162 = vmatpush2.bf16.msra.mxu0 0
    %2163 = vmatprep.subr.bf16.mxu0 0
    %2164 = vmatpush2.bf16.msra.mxu0 0
    %2165 = vmatprep.subr.bf16.mxu0 0
    %2166 = vmatpush2.bf16.msra.mxu0 0
    %2167 = vmatprep.subr.bf16.mxu0 0
    %2168 = vmatpush2.bf16.msra.mxu0 0
    %2169 = vmatprep.subr.bf16.mxu0 0
    %2170 = vmatpush2.bf16.msra.mxu0 0
    %2171 = vmatprep.mubr.bf16.mxu0 0
    %2172 = vmatmul.mubr.bf16.gmra.mxu0 %v2137
    %v2173 = vpop.f32.mrf.mxu0
    %v2174 = vadd.f32 0.0, %v2173
    %v2175 = vpop.f32.mrf.mxu0
    %v2176 = vpop.f32.mrf.mxu0
    %v2177 = vpop.f32.mrf.mxu0
    %2178 = vdwg.mxu0
    %v2179 = vadd.f32 %v1222, %v2174
    %v2180 = vxor.u32 %v2179, 2147483648
    %v2181 = vmul.f32 %v2180, 1.442695
    %v2182 = vpow.pop %v2181
    %v2183 = vadd.f32 %v2182, 1.0
    %v2184 = vrcp.pop %v2183
    %v2185 = vmul.f32 1.0, %v2184
    %2186 = vmatprep.subr.bf16.mxu0 0
    %2187 = vmatpush1.bf16.msra.mxu0 0
    %2188 = vmatprep.subr.bf16.mxu0 0
    %2189 = vmatpush1.bf16.msra.mxu0 0
    %2190 = vmatprep.subr.bf16.mxu0 0
    %2191 = vmatpush1.bf16.msra.mxu0 0
    %2192 = vmatprep.subr.bf16.mxu0 0
    %2193 = vmatpush1.bf16.msra.mxu0 0
    %2194 = vmatprep.subr.bf16.mxu0 0
    %2195 = vmatpush1.bf16.msra.mxu0 %v1446
    %2196 = vmatprep.subr.bf16.mxu0 0
    %2197 = vmatpush1.bf16.msra.mxu0 %v1445
    %2198 = vmatprep.subr.bf16.mxu0 0
    %2199 = vmatpush1.bf16.msra.mxu0 %v1444
    %2200 = vmatprep.subr.bf16.mxu0 0
    %2201 = vmatpush1.bf16.msra.mxu0 %v1443
    %2202 = vmatprep.subr.bf16.mxu0 0
    %2203 = vmatpush2.bf16.msra.mxu0 0
    %2204 = vmatprep.subr.bf16.mxu0 0
    %2205 = vmatpush2.bf16.msra.mxu0 0
    %2206 = vmatprep.subr.bf16.mxu0 0
    %2207 = vmatpush2.bf16.msra.mxu0 0
    %2208 = vmatprep.subr.bf16.mxu0 0
    %2209 = vmatpush2.bf16.msra.mxu0 0
    %2210 = vmatprep.subr.bf16.mxu0 0
    %2211 = vmatpush2.bf16.msra.mxu0 0
    %2212 = vmatprep.subr.bf16.mxu0 0
    %2213 = vmatpush2.bf16.msra.mxu0 0
    %2214 = vmatprep.subr.bf16.mxu0 0
    %2215 = vmatpush2.bf16.msra.mxu0 0
    %2216 = vmatprep.subr.bf16.mxu0 0
    %2217 = vmatpush2.bf16.msra.mxu0 0
    %2218 = vmatprep.mubr.bf16.mxu0 0
    %2219 = vmatmul.mubr.bf16.gmra.mxu0 %v2137
    %v2220 = vpop.f32.mrf.mxu0
    %v2221 = vadd.f32 %v1354, %v2220
    %v2222 = vpop.f32.mrf.mxu0
    %v2223 = vpop.f32.mrf.mxu0
    %v2224 = vpop.f32.mrf.mxu0
    %2225 = vdwg.mxu0
    %v2226 = vmul.f32 %v2185, %v2221
    %v2227 = vadd.f32 %v1327, %v2226
    %v2228 = vtanh.pop %v2227
    %v2229 = vsub.f32 %v2134, %v2228
    %2231 = vrot.lane.b32.xlu0 %v2229, 64
    %v2232 = vpop.permute.xlu0 %2231
    %v2234 = vmul.f32 %v2185, %v2232
    %2236 = vrot.lane.b32.xlu0 %v2234, 64
    %v2237 = vpop.permute.xlu0 %2236
    %v2239 = vadd.f32 %v2228, %v2237
    %v2240 = vpack.c.bf16 %v1609, %v1504
    %v2241 = vpack.c.bf16 %v1819, %v1714
    %v2242 = vpack.c.bf16 %v2029, %v1924
    %v2243 = vpack.c.bf16 %v2239, %v2134
    %s2244 = scalar_lea.vmem [#allocation3], 32
    %v2245 = vld [vmem:[%s2244] sm:$0xf]
    %v2246 = vld [vmem:[%s2244 + $0x4] sm:$0xf]
    %v2247 = vld [vmem:[%s2244 + $0x8] sm:$0xf]
    %v2248 = vld [vmem:[%s2244 + $0xc] sm:$0xf]
    %v2249 = vld [vmem:[%s2244 + $0x10] sm:$0xf]
    %v2250 = vld [vmem:[%s2244 + $0x14] sm:$0xf]
    %v2251 = vld [vmem:[%s2244 + $0x18] sm:$0xf]
    %v2252 = vld [vmem:[%s2244 + $0x1c] sm:$0xf]
    %s2253 = scalar_lea.vmem %s7, 2
    %v2254 = vld [vmem:[%s2253] sm:$0x1]
    %v2256 = vlaneseq
    %v2257 = vshrl.u32 %v2256, 7
    %v2258 = vsub.s32 0, %v2257
    %v2259 = vrot.slane %v2254, %v2258
    %v2269 = vunpack.c.l.b16 %v2245
    %v2270 = vunpack.c.l.b16 %v2246
    %v2271 = vunpack.c.l.b16 %v2247
    %v2272 = vunpack.c.l.b16 %v2248
    %v2273 = vunpack.c.l.b16 %v2249
    %v2274 = vunpack.c.l.b16 %v2250
    %v2275 = vunpack.c.l.b16 %v2251
    %v2276 = vunpack.c.l.b16 %v2252
    %v2277 = vpack.c.b16 %v2270, %v2269
    %v2278 = vpack.c.b16 %v2272, %v2271
    %v2279 = vpack.c.b16 %v2274, %v2273
    %v2280 = vpack.c.b16 %v2276, %v2275
    %v2286 = vsel %vm240, %v2240, 0
    %v2289 = vsel %vm240, %v2241, 0
    %v2292 = vsel %vm240, %v2242, 0
    %v2295 = vsel %vm240, %v2243, 0
    %2297 = vmatprep.subr.bf16.mxu0 0
    %2298 = vmatpush1.bf16.msra.mxu0 0
    %2299 = vmatprep.subr.bf16.mxu0 0
    %2300 = vmatpush1.bf16.msra.mxu0 0
    %2301 = vmatprep.subr.bf16.mxu0 0
    %2302 = vmatpush1.bf16.msra.mxu0 0
    %2303 = vmatprep.subr.bf16.mxu0 0
    %2304 = vmatpush1.bf16.msra.mxu0 0
    %2305 = vmatprep.subr.bf16.mxu0 0
    %2306 = vmatpush1.bf16.msra.mxu0 %v2280
    %2307 = vmatprep.subr.bf16.mxu0 0
    %2308 = vmatpush1.bf16.msra.mxu0 %v2279
    %2309 = vmatprep.subr.bf16.mxu0 0
    %2310 = vmatpush1.bf16.msra.mxu0 %v2278
    %2311 = vmatprep.subr.bf16.mxu0 0
    %2312 = vmatpush1.bf16.msra.mxu0 %v2277
    %2313 = vmatprep.subr.bf16.mxu0 0
    %2314 = vmatpush2.bf16.msra.mxu0 0
    %2315 = vmatprep.subr.bf16.mxu0 0
    %2316 = vmatpush2.bf16.msra.mxu0 0
    %2317 = vmatprep.subr.bf16.mxu0 0
    %2318 = vmatpush2.bf16.msra.mxu0 0
    %2319 = vmatprep.subr.bf16.mxu0 0
    %2320 = vmatpush2.bf16.msra.mxu0 0
    %2321 = vmatprep.subr.bf16.mxu0 0
    %2322 = vmatpush2.bf16.msra.mxu0 0
    %2323 = vmatprep.subr.bf16.mxu0 0
    %2324 = vmatpush2.bf16.msra.mxu0 0
    %2325 = vmatprep.subr.bf16.mxu0 0
    %2326 = vmatpush2.bf16.msra.mxu0 0
    %2327 = vmatprep.subr.bf16.mxu0 0
    %2328 = vmatpush2.bf16.msra.mxu0 0
    %2329 = vmatprep.mubr.bf16.mxu0 0
    %2330 = vmatmul.mubr.bf16.gmra.mxu0 %v2286
    %v2331 = vpop.f32.mrf.mxu0
    %v2332 = vadd.f32 %v2259, %v2331
    %v2333 = vpop.f32.mrf.mxu0
    %v2334 = vpop.f32.mrf.mxu0
    %v2335 = vadd.f32 %v2259, %v2334
    %v2336 = vpop.f32.mrf.mxu0
    %2337 = vmatprep.mubr.bf16.mxu0 0
    %2338 = vmatmul.mubr.bf16.gmra.mxu0 %v2289
    %v2339 = vpop.f32.mrf.mxu0
    %v2340 = vadd.f32 %v2259, %v2339
    %v2341 = vpop.f32.mrf.mxu0
    %v2342 = vpop.f32.mrf.mxu0
    %v2343 = vadd.f32 %v2259, %v2342
    %v2344 = vpop.f32.mrf.mxu0
    %2345 = vmatprep.mubr.bf16.mxu0 0
    %2346 = vmatmul.mubr.bf16.gmra.mxu0 %v2292
    %v2347 = vpop.f32.mrf.mxu0
    %v2348 = vadd.f32 %v2259, %v2347
    %v2349 = vpop.f32.mrf.mxu0
    %v2350 = vpop.f32.mrf.mxu0
    %v2351 = vadd.f32 %v2259, %v2350
    %v2352 = vpop.f32.mrf.mxu0
    %2353 = vmatprep.mubr.bf16.mxu0 0
    %2354 = vmatmul.mubr.bf16.gmra.mxu0 %v2295
    %v2355 = vpop.f32.mrf.mxu0
    %v2356 = vadd.f32 %v2259, %v2355
    %v2357 = vpop.f32.mrf.mxu0
    %v2358 = vpop.f32.mrf.mxu0
    %v2359 = vadd.f32 %v2259, %v2358
    %v2360 = vpop.f32.mrf.mxu0
    %2361 = vdwg.mxu0
    %s2362 = scalar_lea.vmem [#allocation5], 32
    %v2363 = vld [vmem:[%s2362] sm:$0xf]
    %v2364 = vld [vmem:[%s2362 + $0x4] sm:$0xf]
    %v2365 = vld [vmem:[%s2362 + $0x8] sm:$0xf]
    %v2366 = vld [vmem:[%s2362 + $0xc] sm:$0xf]
    %v2367 = vld [vmem:[%s2362 + $0x10] sm:$0xf]
    %v2368 = vld [vmem:[%s2362 + $0x14] sm:$0xf]
    %v2369 = vld [vmem:[%s2362 + $0x18] sm:$0xf]
    %v2370 = vld [vmem:[%s2362 + $0x1c] sm:$0xf]
    %s2371 = scalar_lea.vmem %s8, 2
    %v2372 = vld [vmem:[%s2371] sm:$0x1]
    %v2374 = vlaneseq
    %v2375 = vshrl.u32 %v2374, 7
    %v2376 = vsub.s32 0, %v2375
    %v2377 = vrot.slane %v2372, %v2376
    %v2387 = vunpack.c.l.b16 %v2363
    %v2388 = vunpack.c.l.b16 %v2364
    %v2389 = vunpack.c.l.b16 %v2365
    %v2390 = vunpack.c.l.b16 %v2366
    %v2391 = vunpack.c.l.b16 %v2367
    %v2392 = vunpack.c.l.b16 %v2368
    %v2393 = vunpack.c.l.b16 %v2369
    %v2394 = vunpack.c.l.b16 %v2370
    %v2395 = vpack.c.b16 %v2388, %v2387
    %v2396 = vpack.c.b16 %v2390, %v2389
    %v2397 = vpack.c.b16 %v2392, %v2391
    %v2398 = vpack.c.b16 %v2394, %v2393
    %2403 = vmatprep.subr.bf16.mxu0 0
    %2404 = vmatpush1.bf16.msra.mxu0 0
    %2405 = vmatprep.subr.bf16.mxu0 0
    %2406 = vmatpush1.bf16.msra.mxu0 0
    %2407 = vmatprep.subr.bf16.mxu0 0
    %2408 = vmatpush1.bf16.msra.mxu0 0
    %2409 = vmatprep.subr.bf16.mxu0 0
    %2410 = vmatpush1.bf16.msra.mxu0 0
    %2411 = vmatprep.subr.bf16.mxu0 0
    %2412 = vmatpush1.bf16.msra.mxu0 %v2398
    %2413 = vmatprep.subr.bf16.mxu0 0
    %2414 = vmatpush1.bf16.msra.mxu0 %v2397
    %2415 = vmatprep.subr.bf16.mxu0 0
    %2416 = vmatpush1.bf16.msra.mxu0 %v2396
    %2417 = vmatprep.subr.bf16.mxu0 0
    %2418 = vmatpush1.bf16.msra.mxu0 %v2395
    %2419 = vmatprep.subr.bf16.mxu0 0
    %2420 = vmatpush2.bf16.msra.mxu0 0
    %2421 = vmatprep.subr.bf16.mxu0 0
    %2422 = vmatpush2.bf16.msra.mxu0 0
    %2423 = vmatprep.subr.bf16.mxu0 0
    %2424 = vmatpush2.bf16.msra.mxu0 0
    %2425 = vmatprep.subr.bf16.mxu0 0
    %2426 = vmatpush2.bf16.msra.mxu0 0
    %2427 = vmatprep.subr.bf16.mxu0 0
    %2428 = vmatpush2.bf16.msra.mxu0 0
    %2429 = vmatprep.subr.bf16.mxu0 0
    %2430 = vmatpush2.bf16.msra.mxu0 0
    %2431 = vmatprep.subr.bf16.mxu0 0
    %2432 = vmatpush2.bf16.msra.mxu0 0
    %2433 = vmatprep.subr.bf16.mxu0 0
    %2434 = vmatpush2.bf16.msra.mxu0 0
    %2435 = vmatprep.mubr.bf16.mxu0 0
    %2436 = vmatmul.mubr.bf16.gmra.mxu0 %v2286
    %v2437 = vpop.f32.mrf.mxu0
    %v2438 = vadd.f32 %v2377, %v2437
    %v2439 = vpop.f32.mrf.mxu0
    %v2440 = vpop.f32.mrf.mxu0
    %v2441 = vadd.f32 %v2377, %v2440
    %v2442 = vpop.f32.mrf.mxu0
    %2443 = vmatprep.mubr.bf16.mxu0 0
    %2444 = vmatmul.mubr.bf16.gmra.mxu0 %v2289
    %v2445 = vpop.f32.mrf.mxu0
    %v2446 = vadd.f32 %v2377, %v2445
    %v2447 = vpop.f32.mrf.mxu0
    %v2448 = vpop.f32.mrf.mxu0
    %v2449 = vadd.f32 %v2377, %v2448
    %v2450 = vpop.f32.mrf.mxu0
    %2451 = vmatprep.mubr.bf16.mxu0 0
    %2452 = vmatmul.mubr.bf16.gmra.mxu0 %v2292
    %v2453 = vpop.f32.mrf.mxu0
    %v2454 = vadd.f32 %v2377, %v2453
    %v2455 = vpop.f32.mrf.mxu0
    %v2456 = vpop.f32.mrf.mxu0
    %v2457 = vadd.f32 %v2377, %v2456
    %v2458 = vpop.f32.mrf.mxu0
    %2459 = vmatprep.mubr.bf16.mxu0 0
    %2460 = vmatmul.mubr.bf16.gmra.mxu0 %v2295
    %v2461 = vpop.f32.mrf.mxu0
    %v2462 = vadd.f32 %v2377, %v2461
    %v2463 = vpop.f32.mrf.mxu0
    %v2464 = vpop.f32.mrf.mxu0
    %v2465 = vadd.f32 %v2377, %v2464
    %v2466 = vpop.f32.mrf.mxu0
    %2467 = vdwg.mxu0
    %s2468 = scalar_lea.vmem %s5, 64
    %v2469 = vld [vmem:[%s2468] sm:$0xf]
    %v2470 = vld [vmem:[%s2468 + $0x4] sm:$0xf]
    %v2471 = vld [vmem:[%s2468 + $0x8] sm:$0xf]
    %v2472 = vld [vmem:[%s2468 + $0xc] sm:$0xf]
    %v2473 = vld [vmem:[%s2468 + $0x10] sm:$0xf]
    %v2474 = vld [vmem:[%s2468 + $0x14] sm:$0xf]
    %v2475 = vld [vmem:[%s2468 + $0x18] sm:$0xf]
    %v2476 = vld [vmem:[%s2468 + $0x1c] sm:$0xf]
    %s2477 = scalar_lea.vmem [#allocation7], 64
    %v2478 = vld [vmem:[%s2477] sm:$0xf]
    %v2479 = vld [vmem:[%s2477 + $0x4] sm:$0xf]
    %v2480 = vld [vmem:[%s2477 + $0x8] sm:$0xf]
    %v2481 = vld [vmem:[%s2477 + $0xc] sm:$0xf]
    %v2482 = vld [vmem:[%s2477 + $0x10] sm:$0xf]
    %v2483 = vld [vmem:[%s2477 + $0x14] sm:$0xf]
    %v2484 = vld [vmem:[%s2477 + $0x18] sm:$0xf]
    %v2485 = vld [vmem:[%s2477 + $0x1c] sm:$0xf]
    %s2486 = scalar_lea.vmem %s9, 2
    %v2487 = vld [vmem:[%s2486] sm:$0x1]
    %v2489 = vlaneseq
    %v2490 = vshrl.u32 %v2489, 7
    %v2491 = vsub.s32 0, %v2490
    %v2492 = vrot.slane %v2487, %v2491
    %v2502 = vunpack.c.l.b16 %v2469
    %v2503 = vunpack.c.l.b16 %v2470
    %v2504 = vunpack.c.l.b16 %v2471
    %v2505 = vunpack.c.l.b16 %v2472
    %v2506 = vunpack.c.l.b16 %v2473
    %v2507 = vunpack.c.l.b16 %v2474
    %v2508 = vunpack.c.l.b16 %v2475
    %v2509 = vunpack.c.l.b16 %v2476
    %v2510 = vpack.c.b16 %v2503, %v2502
    %v2511 = vpack.c.b16 %v2505, %v2504
    %v2512 = vpack.c.b16 %v2507, %v2506
    %v2513 = vpack.c.b16 %v2509, %v2508
    %2518 = vmatprep.subr.bf16.mxu0 0
    %2519 = vmatpush1.bf16.msra.mxu0 0
    %2520 = vmatprep.subr.bf16.mxu0 0
    %2521 = vmatpush1.bf16.msra.mxu0 0
    %2522 = vmatprep.subr.bf16.mxu0 0
    %2523 = vmatpush1.bf16.msra.mxu0 0
    %2524 = vmatprep.subr.bf16.mxu0 0
    %2525 = vmatpush1.bf16.msra.mxu0 0
    %2526 = vmatprep.subr.bf16.mxu0 0
    %2527 = vmatpush1.bf16.msra.mxu0 %v2513
    %2528 = vmatprep.subr.bf16.mxu0 0
    %2529 = vmatpush1.bf16.msra.mxu0 %v2512
    %2530 = vmatprep.subr.bf16.mxu0 0
    %2531 = vmatpush1.bf16.msra.mxu0 %v2511
    %2532 = vmatprep.subr.bf16.mxu0 0
    %2533 = vmatpush1.bf16.msra.mxu0 %v2510
    %2534 = vmatprep.subr.bf16.mxu0 0
    %2535 = vmatpush2.bf16.msra.mxu0 0
    %2536 = vmatprep.subr.bf16.mxu0 0
    %2537 = vmatpush2.bf16.msra.mxu0 0
    %2538 = vmatprep.subr.bf16.mxu0 0
    %2539 = vmatpush2.bf16.msra.mxu0 0
    %2540 = vmatprep.subr.bf16.mxu0 0
    %2541 = vmatpush2.bf16.msra.mxu0 0
    %2542 = vmatprep.subr.bf16.mxu0 0
    %2543 = vmatpush2.bf16.msra.mxu0 0
    %2544 = vmatprep.subr.bf16.mxu0 0
    %2545 = vmatpush2.bf16.msra.mxu0 0
    %2546 = vmatprep.subr.bf16.mxu0 0
    %2547 = vmatpush2.bf16.msra.mxu0 0
    %2548 = vmatprep.subr.bf16.mxu0 0
    %2549 = vmatpush2.bf16.msra.mxu0 0
    %2550 = vmatprep.mubr.bf16.mxu0 0
    %2551 = vmatmul.mubr.bf16.gmra.mxu0 %v242
    %v2552 = vpop.f32.mrf.mxu0
    %v2553 = vadd.f32 0.0, %v2552
    %v2554 = vpop.f32.mrf.mxu0
    %v2555 = vpop.f32.mrf.mxu0
    %v2556 = vpop.f32.mrf.mxu0
    %2557 = vdwg.mxu0
    %v2558 = vadd.f32 %v2332, %v2553
    %v2559 = vxor.u32 %v2558, 2147483648
    %v2560 = vmul.f32 %v2559, 1.442695
    %v2561 = vpow.pop %v2560
    %v2562 = vadd.f32 %v2561, 1.0
    %v2563 = vrcp.pop %v2562
    %v2564 = vmul.f32 1.0, %v2563
    %v2573 = vunpack.c.l.b16 %v2478
    %v2574 = vunpack.c.l.b16 %v2479
    %v2575 = vunpack.c.l.b16 %v2480
    %v2576 = vunpack.c.l.b16 %v2481
    %v2577 = vunpack.c.l.b16 %v2482
    %v2578 = vunpack.c.l.b16 %v2483
    %v2579 = vunpack.c.l.b16 %v2484
    %v2580 = vunpack.c.l.b16 %v2485
    %v2581 = vpack.c.b16 %v2574, %v2573
    %v2582 = vpack.c.b16 %v2576, %v2575
    %v2583 = vpack.c.b16 %v2578, %v2577
    %v2584 = vpack.c.b16 %v2580, %v2579
    %2589 = vmatprep.subr.bf16.mxu0 0
    %2590 = vmatpush1.bf16.msra.mxu0 0
    %2591 = vmatprep.subr.bf16.mxu0 0
    %2592 = vmatpush1.bf16.msra.mxu0 0
    %2593 = vmatprep.subr.bf16.mxu0 0
    %2594 = vmatpush1.bf16.msra.mxu0 0
    %2595 = vmatprep.subr.bf16.mxu0 0
    %2596 = vmatpush1.bf16.msra.mxu0 0
    %2597 = vmatprep.subr.bf16.mxu0 0
    %2598 = vmatpush1.bf16.msra.mxu0 %v2584
    %2599 = vmatprep.subr.bf16.mxu0 0
    %2600 = vmatpush1.bf16.msra.mxu0 %v2583
    %2601 = vmatprep.subr.bf16.mxu0 0
    %2602 = vmatpush1.bf16.msra.mxu0 %v2582
    %2603 = vmatprep.subr.bf16.mxu0 0
    %2604 = vmatpush1.bf16.msra.mxu0 %v2581
    %2605 = vmatprep.subr.bf16.mxu0 0
    %2606 = vmatpush2.bf16.msra.mxu0 0
    %2607 = vmatprep.subr.bf16.mxu0 0
    %2608 = vmatpush2.bf16.msra.mxu0 0
    %2609 = vmatprep.subr.bf16.mxu0 0
    %2610 = vmatpush2.bf16.msra.mxu0 0
    %2611 = vmatprep.subr.bf16.mxu0 0
    %2612 = vmatpush2.bf16.msra.mxu0 0
    %2613 = vmatprep.subr.bf16.mxu0 0
    %2614 = vmatpush2.bf16.msra.mxu0 0
    %2615 = vmatprep.subr.bf16.mxu0 0
    %2616 = vmatpush2.bf16.msra.mxu0 0
    %2617 = vmatprep.subr.bf16.mxu0 0
    %2618 = vmatpush2.bf16.msra.mxu0 0
    %2619 = vmatprep.subr.bf16.mxu0 0
    %2620 = vmatpush2.bf16.msra.mxu0 0
    %2621 = vmatprep.mubr.bf16.mxu0 0
    %2622 = vmatmul.mubr.bf16.gmra.mxu0 %v242
    %v2623 = vpop.f32.mrf.mxu0
    %v2624 = vadd.f32 %v2492, %v2623
    %v2625 = vpop.f32.mrf.mxu0
    %v2626 = vpop.f32.mrf.mxu0
    %v2627 = vpop.f32.mrf.mxu0
    %2628 = vdwg.mxu0
    %v2629 = vmul.f32 %v2564, %v2624
    %v2630 = vadd.f32 %v2438, %v2629
    %v2631 = vtanh.pop %v2630
    %v2632 = vsub.f32 0.0, %v2631
    %2634 = vrot.lane.b32.xlu0 %v2632, 64
    %v2635 = vpop.permute.xlu0 %2634
    %v2637 = vmul.f32 %v2564, %v2635
    %2639 = vrot.lane.b32.xlu0 %v2637, 64
    %v2640 = vpop.permute.xlu0 %2639
    %v2642 = vadd.f32 %v2631, %v2640
    %v2643 = vpack.c.bf16 %v2642, %v2642
    %v2645 = vsel %vm240, %v2643, 0
    %2647 = vmatprep.subr.bf16.mxu0 0
    %2648 = vmatpush1.bf16.msra.mxu0 0
    %2649 = vmatprep.subr.bf16.mxu0 0
    %2650 = vmatpush1.bf16.msra.mxu0 0
    %2651 = vmatprep.subr.bf16.mxu0 0
    %2652 = vmatpush1.bf16.msra.mxu0 0
    %2653 = vmatprep.subr.bf16.mxu0 0
    %2654 = vmatpush1.bf16.msra.mxu0 0
    %2655 = vmatprep.subr.bf16.mxu0 0
    %2656 = vmatpush1.bf16.msra.mxu0 %v2513
    %2657 = vmatprep.subr.bf16.mxu0 0
    %2658 = vmatpush1.bf16.msra.mxu0 %v2512
    %2659 = vmatprep.subr.bf16.mxu0 0
    %2660 = vmatpush1.bf16.msra.mxu0 %v2511
    %2661 = vmatprep.subr.bf16.mxu0 0
    %2662 = vmatpush1.bf16.msra.mxu0 %v2510
    %2663 = vmatprep.subr.bf16.mxu0 0
    %2664 = vmatpush2.bf16.msra.mxu0 0
    %2665 = vmatprep.subr.bf16.mxu0 0
    %2666 = vmatpush2.bf16.msra.mxu0 0
    %2667 = vmatprep.subr.bf16.mxu0 0
    %2668 = vmatpush2.bf16.msra.mxu0 0
    %2669 = vmatprep.subr.bf16.mxu0 0
    %2670 = vmatpush2.bf16.msra.mxu0 0
    %2671 = vmatprep.subr.bf16.mxu0 0
    %2672 = vmatpush2.bf16.msra.mxu0 0
    %2673 = vmatprep.subr.bf16.mxu0 0
    %2674 = vmatpush2.bf16.msra.mxu0 0
    %2675 = vmatprep.subr.bf16.mxu0 0
    %2676 = vmatpush2.bf16.msra.mxu0 0
    %2677 = vmatprep.subr.bf16.mxu0 0
    %2678 = vmatpush2.bf16.msra.mxu0 0
    %2679 = vmatprep.mubr.bf16.mxu0 0
    %2680 = vmatmul.mubr.bf16.gmra.mxu0 %v2645
    %v2681 = vpop.f32.mrf.mxu0
    %v2682 = vadd.f32 0.0, %v2681
    %v2683 = vpop.f32.mrf.mxu0
    %v2684 = vpop.f32.mrf.mxu0
    %v2685 = vpop.f32.mrf.mxu0
    %2686 = vdwg.mxu0
    %v2687 = vadd.f32 %v2335, %v2682
    %v2688 = vxor.u32 %v2687, 2147483648
    %v2689 = vmul.f32 %v2688, 1.442695
    %v2690 = vpow.pop %v2689
    %v2691 = vadd.f32 %v2690, 1.0
    %v2692 = vrcp.pop %v2691
    %v2693 = vmul.f32 1.0, %v2692
    %2694 = vmatprep.subr.bf16.mxu0 0
    %2695 = vmatpush1.bf16.msra.mxu0 0
    %2696 = vmatprep.subr.bf16.mxu0 0
    %2697 = vmatpush1.bf16.msra.mxu0 0
    %2698 = vmatprep.subr.bf16.mxu0 0
    %2699 = vmatpush1.bf16.msra.mxu0 0
    %2700 = vmatprep.subr.bf16.mxu0 0
    %2701 = vmatpush1.bf16.msra.mxu0 0
    %2702 = vmatprep.subr.bf16.mxu0 0
    %2703 = vmatpush1.bf16.msra.mxu0 %v2584
    %2704 = vmatprep.subr.bf16.mxu0 0
    %2705 = vmatpush1.bf16.msra.mxu0 %v2583
    %2706 = vmatprep.subr.bf16.mxu0 0
    %2707 = vmatpush1.bf16.msra.mxu0 %v2582
    %2708 = vmatprep.subr.bf16.mxu0 0
    %2709 = vmatpush1.bf16.msra.mxu0 %v2581
    %2710 = vmatprep.subr.bf16.mxu0 0
    %2711 = vmatpush2.bf16.msra.mxu0 0
    %2712 = vmatprep.subr.bf16.mxu0 0
    %2713 = vmatpush2.bf16.msra.mxu0 0
    %2714 = vmatprep.subr.bf16.mxu0 0
    %2715 = vmatpush2.bf16.msra.mxu0 0
    %2716 = vmatprep.subr.bf16.mxu0 0
    %2717 = vmatpush2.bf16.msra.mxu0 0
    %2718 = vmatprep.subr.bf16.mxu0 0
    %2719 = vmatpush2.bf16.msra.mxu0 0
    %2720 = vmatprep.subr.bf16.mxu0 0
    %2721 = vmatpush2.bf16.msra.mxu0 0
    %2722 = vmatprep.subr.bf16.mxu0 0
    %2723 = vmatpush2.bf16.msra.mxu0 0
    %2724 = vmatprep.subr.bf16.mxu0 0
    %2725 = vmatpush2.bf16.msra.mxu0 0
    %2726 = vmatprep.mubr.bf16.mxu0 0
    %2727 = vmatmul.mubr.bf16.gmra.mxu0 %v2645
    %v2728 = vpop.f32.mrf.mxu0
    %v2729 = vadd.f32 %v2492, %v2728
    %v2730 = vpop.f32.mrf.mxu0
    %v2731 = vpop.f32.mrf.mxu0
    %v2732 = vpop.f32.mrf.mxu0
    %2733 = vdwg.mxu0
    %v2734 = vmul.f32 %v2693, %v2729
    %v2735 = vadd.f32 %v2441, %v2734
    %v2736 = vtanh.pop %v2735
    %v2737 = vsub.f32 %v2642, %v2736
    %2739 = vrot.lane.b32.xlu0 %v2737, 64
    %v2740 = vpop.permute.xlu0 %2739
    %v2742 = vmul.f32 %v2693, %v2740
    %2744 = vrot.lane.b32.xlu0 %v2742, 64
    %v2745 = vpop.permute.xlu0 %2744
    %v2747 = vadd.f32 %v2736, %v2745
    %v2748 = vpack.c.bf16 %v2747, %v2747
    %v2750 = vsel %vm240, %v2748, 0
    %2752 = vmatprep.subr.bf16.mxu0 0
    %2753 = vmatpush1.bf16.msra.mxu0 0
    %2754 = vmatprep.subr.bf16.mxu0 0
    %2755 = vmatpush1.bf16.msra.mxu0 0
    %2756 = vmatprep.subr.bf16.mxu0 0
    %2757 = vmatpush1.bf16.msra.mxu0 0
    %2758 = vmatprep.subr.bf16.mxu0 0
    %2759 = vmatpush1.bf16.msra.mxu0 0
    %2760 = vmatprep.subr.bf16.mxu0 0
    %2761 = vmatpush1.bf16.msra.mxu0 %v2513
    %2762 = vmatprep.subr.bf16.mxu0 0
    %2763 = vmatpush1.bf16.msra.mxu0 %v2512
    %2764 = vmatprep.subr.bf16.mxu0 0
    %2765 = vmatpush1.bf16.msra.mxu0 %v2511
    %2766 = vmatprep.subr.bf16.mxu0 0
    %2767 = vmatpush1.bf16.msra.mxu0 %v2510
    %2768 = vmatprep.subr.bf16.mxu0 0
    %2769 = vmatpush2.bf16.msra.mxu0 0
    %2770 = vmatprep.subr.bf16.mxu0 0
    %2771 = vmatpush2.bf16.msra.mxu0 0
    %2772 = vmatprep.subr.bf16.mxu0 0
    %2773 = vmatpush2.bf16.msra.mxu0 0
    %2774 = vmatprep.subr.bf16.mxu0 0
    %2775 = vmatpush2.bf16.msra.mxu0 0
    %2776 = vmatprep.subr.bf16.mxu0 0
    %2777 = vmatpush2.bf16.msra.mxu0 0
    %2778 = vmatprep.subr.bf16.mxu0 0
    %2779 = vmatpush2.bf16.msra.mxu0 0
    %2780 = vmatprep.subr.bf16.mxu0 0
    %2781 = vmatpush2.bf16.msra.mxu0 0
    %2782 = vmatprep.subr.bf16.mxu0 0
    %2783 = vmatpush2.bf16.msra.mxu0 0
    %2784 = vmatprep.mubr.bf16.mxu0 0
    %2785 = vmatmul.mubr.bf16.gmra.mxu0 %v2750
    %v2786 = vpop.f32.mrf.mxu0
    %v2787 = vadd.f32 0.0, %v2786
    %v2788 = vpop.f32.mrf.mxu0
    %v2789 = vpop.f32.mrf.mxu0
    %v2790 = vpop.f32.mrf.mxu0
    %2791 = vdwg.mxu0
    %v2792 = vadd.f32 %v2340, %v2787
    %v2793 = vxor.u32 %v2792, 2147483648
    %v2794 = vmul.f32 %v2793, 1.442695
    %v2795 = vpow.pop %v2794
    %v2796 = vadd.f32 %v2795, 1.0
    %v2797 = vrcp.pop %v2796
    %v2798 = vmul.f32 1.0, %v2797
    %2799 = vmatprep.subr.bf16.mxu0 0
    %2800 = vmatpush1.bf16.msra.mxu0 0
    %2801 = vmatprep.subr.bf16.mxu0 0
    %2802 = vmatpush1.bf16.msra.mxu0 0
    %2803 = vmatprep.subr.bf16.mxu0 0
    %2804 = vmatpush1.bf16.msra.mxu0 0
    %2805 = vmatprep.subr.bf16.mxu0 0
    %2806 = vmatpush1.bf16.msra.mxu0 0
    %2807 = vmatprep.subr.bf16.mxu0 0
    %2808 = vmatpush1.bf16.msra.mxu0 %v2584
    %2809 = vmatprep.subr.bf16.mxu0 0
    %2810 = vmatpush1.bf16.msra.mxu0 %v2583
    %2811 = vmatprep.subr.bf16.mxu0 0
    %2812 = vmatpush1.bf16.msra.mxu0 %v2582
    %2813 = vmatprep.subr.bf16.mxu0 0
    %2814 = vmatpush1.bf16.msra.mxu0 %v2581
    %2815 = vmatprep.subr.bf16.mxu0 0
    %2816 = vmatpush2.bf16.msra.mxu0 0
    %2817 = vmatprep.subr.bf16.mxu0 0
    %2818 = vmatpush2.bf16.msra.mxu0 0
    %2819 = vmatprep.subr.bf16.mxu0 0
    %2820 = vmatpush2.bf16.msra.mxu0 0
    %2821 = vmatprep.subr.bf16.mxu0 0
    %2822 = vmatpush2.bf16.msra.mxu0 0
    %2823 = vmatprep.subr.bf16.mxu0 0
    %2824 = vmatpush2.bf16.msra.mxu0 0
    %2825 = vmatprep.subr.bf16.mxu0 0
    %2826 = vmatpush2.bf16.msra.mxu0 0
    %2827 = vmatprep.subr.bf16.mxu0 0
    %2828 = vmatpush2.bf16.msra.mxu0 0
    %2829 = vmatprep.subr.bf16.mxu0 0
    %2830 = vmatpush2.bf16.msra.mxu0 0
    %2831 = vmatprep.mubr.bf16.mxu0 0
    %2832 = vmatmul.mubr.bf16.gmra.mxu0 %v2750
    %v2833 = vpop.f32.mrf.mxu0
    %v2834 = vadd.f32 %v2492, %v2833
    %v2835 = vpop.f32.mrf.mxu0
    %v2836 = vpop.f32.mrf.mxu0
    %v2837 = vpop.f32.mrf.mxu0
    %2838 = vdwg.mxu0
    %v2839 = vmul.f32 %v2798, %v2834
    %v2840 = vadd.f32 %v2446, %v2839
    %v2841 = vtanh.pop %v2840
    %v2842 = vsub.f32 %v2747, %v2841
    %2844 = vrot.lane.b32.xlu0 %v2842, 64
    %v2845 = vpop.permute.xlu0 %2844
    %v2847 = vmul.f32 %v2798, %v2845
    %2849 = vrot.lane.b32.xlu0 %v2847, 64
    %v2850 = vpop.permute.xlu0 %2849
    %v2852 = vadd.f32 %v2841, %v2850
    %v2853 = vpack.c.bf16 %v2852, %v2852
    %v2855 = vsel %vm240, %v2853, 0
    %2857 = vmatprep.subr.bf16.mxu0 0
    %2858 = vmatpush1.bf16.msra.mxu0 0
    %2859 = vmatprep.subr.bf16.mxu0 0
    %2860 = vmatpush1.bf16.msra.mxu0 0
    %2861 = vmatprep.subr.bf16.mxu0 0
    %2862 = vmatpush1.bf16.msra.mxu0 0
    %2863 = vmatprep.subr.bf16.mxu0 0
    %2864 = vmatpush1.bf16.msra.mxu0 0
    %2865 = vmatprep.subr.bf16.mxu0 0
    %2866 = vmatpush1.bf16.msra.mxu0 %v2513
    %2867 = vmatprep.subr.bf16.mxu0 0
    %2868 = vmatpush1.bf16.msra.mxu0 %v2512
    %2869 = vmatprep.subr.bf16.mxu0 0
    %2870 = vmatpush1.bf16.msra.mxu0 %v2511
    %2871 = vmatprep.subr.bf16.mxu0 0
    %2872 = vmatpush1.bf16.msra.mxu0 %v2510
    %2873 = vmatprep.subr.bf16.mxu0 0
    %2874 = vmatpush2.bf16.msra.mxu0 0
    %2875 = vmatprep.subr.bf16.mxu0 0
    %2876 = vmatpush2.bf16.msra.mxu0 0
    %2877 = vmatprep.subr.bf16.mxu0 0
    %2878 = vmatpush2.bf16.msra.mxu0 0
    %2879 = vmatprep.subr.bf16.mxu0 0
    %2880 = vmatpush2.bf16.msra.mxu0 0
    %2881 = vmatprep.subr.bf16.mxu0 0
    %2882 = vmatpush2.bf16.msra.mxu0 0
    %2883 = vmatprep.subr.bf16.mxu0 0
    %2884 = vmatpush2.bf16.msra.mxu0 0
    %2885 = vmatprep.subr.bf16.mxu0 0
    %2886 = vmatpush2.bf16.msra.mxu0 0
    %2887 = vmatprep.subr.bf16.mxu0 0
    %2888 = vmatpush2.bf16.msra.mxu0 0
    %2889 = vmatprep.mubr.bf16.mxu0 0
    %2890 = vmatmul.mubr.bf16.gmra.mxu0 %v2855
    %v2891 = vpop.f32.mrf.mxu0
    %v2892 = vadd.f32 0.0, %v2891
    %v2893 = vpop.f32.mrf.mxu0
    %v2894 = vpop.f32.mrf.mxu0
    %v2895 = vpop.f32.mrf.mxu0
    %2896 = vdwg.mxu0
    %v2897 = vadd.f32 %v2343, %v2892
    %v2898 = vxor.u32 %v2897, 2147483648
    %v2899 = vmul.f32 %v2898, 1.442695
    %v2900 = vpow.pop %v2899
    %v2901 = vadd.f32 %v2900, 1.0
    %v2902 = vrcp.pop %v2901
    %v2903 = vmul.f32 1.0, %v2902
    %2904 = vmatprep.subr.bf16.mxu0 0
    %2905 = vmatpush1.bf16.msra.mxu0 0
    %2906 = vmatprep.subr.bf16.mxu0 0
    %2907 = vmatpush1.bf16.msra.mxu0 0
    %2908 = vmatprep.subr.bf16.mxu0 0
    %2909 = vmatpush1.bf16.msra.mxu0 0
    %2910 = vmatprep.subr.bf16.mxu0 0
    %2911 = vmatpush1.bf16.msra.mxu0 0
    %2912 = vmatprep.subr.bf16.mxu0 0
    %2913 = vmatpush1.bf16.msra.mxu0 %v2584
    %2914 = vmatprep.subr.bf16.mxu0 0
    %2915 = vmatpush1.bf16.msra.mxu0 %v2583
    %2916 = vmatprep.subr.bf16.mxu0 0
    %2917 = vmatpush1.bf16.msra.mxu0 %v2582
    %2918 = vmatprep.subr.bf16.mxu0 0
    %2919 = vmatpush1.bf16.msra.mxu0 %v2581
    %2920 = vmatprep.subr.bf16.mxu0 0
    %2921 = vmatpush2.bf16.msra.mxu0 0
    %2922 = vmatprep.subr.bf16.mxu0 0
    %2923 = vmatpush2.bf16.msra.mxu0 0
    %2924 = vmatprep.subr.bf16.mxu0 0
    %2925 = vmatpush2.bf16.msra.mxu0 0
    %2926 = vmatprep.subr.bf16.mxu0 0
    %2927 = vmatpush2.bf16.msra.mxu0 0
    %2928 = vmatprep.subr.bf16.mxu0 0
    %2929 = vmatpush2.bf16.msra.mxu0 0
    %2930 = vmatprep.subr.bf16.mxu0 0
    %2931 = vmatpush2.bf16.msra.mxu0 0
    %2932 = vmatprep.subr.bf16.mxu0 0
    %2933 = vmatpush2.bf16.msra.mxu0 0
    %2934 = vmatprep.subr.bf16.mxu0 0
    %2935 = vmatpush2.bf16.msra.mxu0 0
    %2936 = vmatprep.mubr.bf16.mxu0 0
    %2937 = vmatmul.mubr.bf16.gmra.mxu0 %v2855
    %v2938 = vpop.f32.mrf.mxu0
    %v2939 = vadd.f32 %v2492, %v2938
    %v2940 = vpop.f32.mrf.mxu0
    %v2941 = vpop.f32.mrf.mxu0
    %v2942 = vpop.f32.mrf.mxu0
    %2943 = vdwg.mxu0
    %v2944 = vmul.f32 %v2903, %v2939
    %v2945 = vadd.f32 %v2449, %v2944
    %v2946 = vtanh.pop %v2945
    %v2947 = vsub.f32 %v2852, %v2946
    %2949 = vrot.lane.b32.xlu0 %v2947, 64
    %v2950 = vpop.permute.xlu0 %2949
    %v2952 = vmul.f32 %v2903, %v2950
    %2954 = vrot.lane.b32.xlu0 %v2952, 64
    %v2955 = vpop.permute.xlu0 %2954
    %v2957 = vadd.f32 %v2946, %v2955
    %v2958 = vpack.c.bf16 %v2957, %v2957
    %v2960 = vsel %vm240, %v2958, 0
    %2962 = vmatprep.subr.bf16.mxu0 0
    %2963 = vmatpush1.bf16.msra.mxu0 0
    %2964 = vmatprep.subr.bf16.mxu0 0
    %2965 = vmatpush1.bf16.msra.mxu0 0
    %2966 = vmatprep.subr.bf16.mxu0 0
    %2967 = vmatpush1.bf16.msra.mxu0 0
    %2968 = vmatprep.subr.bf16.mxu0 0
    %2969 = vmatpush1.bf16.msra.mxu0 0
    %2970 = vmatprep.subr.bf16.mxu0 0
    %2971 = vmatpush1.bf16.msra.mxu0 %v2513
    %2972 = vmatprep.subr.bf16.mxu0 0
    %2973 = vmatpush1.bf16.msra.mxu0 %v2512
    %2974 = vmatprep.subr.bf16.mxu0 0
    %2975 = vmatpush1.bf16.msra.mxu0 %v2511
    %2976 = vmatprep.subr.bf16.mxu0 0
    %2977 = vmatpush1.bf16.msra.mxu0 %v2510
    %2978 = vmatprep.subr.bf16.mxu0 0
    %2979 = vmatpush2.bf16.msra.mxu0 0
    %2980 = vmatprep.subr.bf16.mxu0 0
    %2981 = vmatpush2.bf16.msra.mxu0 0
    %2982 = vmatprep.subr.bf16.mxu0 0
    %2983 = vmatpush2.bf16.msra.mxu0 0
    %2984 = vmatprep.subr.bf16.mxu0 0
    %2985 = vmatpush2.bf16.msra.mxu0 0
    %2986 = vmatprep.subr.bf16.mxu0 0
    %2987 = vmatpush2.bf16.msra.mxu0 0
    %2988 = vmatprep.subr.bf16.mxu0 0
    %2989 = vmatpush2.bf16.msra.mxu0 0
    %2990 = vmatprep.subr.bf16.mxu0 0
    %2991 = vmatpush2.bf16.msra.mxu0 0
    %2992 = vmatprep.subr.bf16.mxu0 0
    %2993 = vmatpush2.bf16.msra.mxu0 0
    %2994 = vmatprep.mubr.bf16.mxu0 0
    %2995 = vmatmul.mubr.bf16.gmra.mxu0 %v2960
    %v2996 = vpop.f32.mrf.mxu0
    %v2997 = vadd.f32 0.0, %v2996
    %v2998 = vpop.f32.mrf.mxu0
    %v2999 = vpop.f32.mrf.mxu0
    %v3000 = vpop.f32.mrf.mxu0
    %3001 = vdwg.mxu0
    %v3002 = vadd.f32 %v2348, %v2997
    %v3003 = vxor.u32 %v3002, 2147483648
    %v3004 = vmul.f32 %v3003, 1.442695
    %v3005 = vpow.pop %v3004
    %v3006 = vadd.f32 %v3005, 1.0
    %v3007 = vrcp.pop %v3006
    %v3008 = vmul.f32 1.0, %v3007
    %3009 = vmatprep.subr.bf16.mxu0 0
    %3010 = vmatpush1.bf16.msra.mxu0 0
    %3011 = vmatprep.subr.bf16.mxu0 0
    %3012 = vmatpush1.bf16.msra.mxu0 0
    %3013 = vmatprep.subr.bf16.mxu0 0
    %3014 = vmatpush1.bf16.msra.mxu0 0
    %3015 = vmatprep.subr.bf16.mxu0 0
    %3016 = vmatpush1.bf16.msra.mxu0 0
    %3017 = vmatprep.subr.bf16.mxu0 0
    %3018 = vmatpush1.bf16.msra.mxu0 %v2584
    %3019 = vmatprep.subr.bf16.mxu0 0
    %3020 = vmatpush1.bf16.msra.mxu0 %v2583
    %3021 = vmatprep.subr.bf16.mxu0 0
    %3022 = vmatpush1.bf16.msra.mxu0 %v2582
    %3023 = vmatprep.subr.bf16.mxu0 0
    %3024 = vmatpush1.bf16.msra.mxu0 %v2581
    %3025 = vmatprep.subr.bf16.mxu0 0
    %3026 = vmatpush2.bf16.msra.mxu0 0
    %3027 = vmatprep.subr.bf16.mxu0 0
    %3028 = vmatpush2.bf16.msra.mxu0 0
    %3029 = vmatprep.subr.bf16.mxu0 0
    %3030 = vmatpush2.bf16.msra.mxu0 0
    %3031 = vmatprep.subr.bf16.mxu0 0
    %3032 = vmatpush2.bf16.msra.mxu0 0
    %3033 = vmatprep.subr.bf16.mxu0 0
    %3034 = vmatpush2.bf16.msra.mxu0 0
    %3035 = vmatprep.subr.bf16.mxu0 0
    %3036 = vmatpush2.bf16.msra.mxu0 0
    %3037 = vmatprep.subr.bf16.mxu0 0
    %3038 = vmatpush2.bf16.msra.mxu0 0
    %3039 = vmatprep.subr.bf16.mxu0 0
    %3040 = vmatpush2.bf16.msra.mxu0 0
    %3041 = vmatprep.mubr.bf16.mxu0 0
    %3042 = vmatmul.mubr.bf16.gmra.mxu0 %v2960
    %v3043 = vpop.f32.mrf.mxu0
    %v3044 = vadd.f32 %v2492, %v3043
    %v3045 = vpop.f32.mrf.mxu0
    %v3046 = vpop.f32.mrf.mxu0
    %v3047 = vpop.f32.mrf.mxu0
    %3048 = vdwg.mxu0
    %v3049 = vmul.f32 %v3008, %v3044
    %v3050 = vadd.f32 %v2454, %v3049
    %v3051 = vtanh.pop %v3050
    %v3052 = vsub.f32 %v2957, %v3051
    %3054 = vrot.lane.b32.xlu0 %v3052, 64
    %v3055 = vpop.permute.xlu0 %3054
    %v3057 = vmul.f32 %v3008, %v3055
    %3059 = vrot.lane.b32.xlu0 %v3057, 64
    %v3060 = vpop.permute.xlu0 %3059
    %v3062 = vadd.f32 %v3051, %v3060
    %v3063 = vpack.c.bf16 %v3062, %v3062
    %v3065 = vsel %vm240, %v3063, 0
    %3067 = vmatprep.subr.bf16.mxu0 0
    %3068 = vmatpush1.bf16.msra.mxu0 0
    %3069 = vmatprep.subr.bf16.mxu0 0
    %3070 = vmatpush1.bf16.msra.mxu0 0
    %3071 = vmatprep.subr.bf16.mxu0 0
    %3072 = vmatpush1.bf16.msra.mxu0 0
    %3073 = vmatprep.subr.bf16.mxu0 0
    %3074 = vmatpush1.bf16.msra.mxu0 0
    %3075 = vmatprep.subr.bf16.mxu0 0
    %3076 = vmatpush1.bf16.msra.mxu0 %v2513
    %3077 = vmatprep.subr.bf16.mxu0 0
    %3078 = vmatpush1.bf16.msra.mxu0 %v2512
    %3079 = vmatprep.subr.bf16.mxu0 0
    %3080 = vmatpush1.bf16.msra.mxu0 %v2511
    %3081 = vmatprep.subr.bf16.mxu0 0
    %3082 = vmatpush1.bf16.msra.mxu0 %v2510
    %3083 = vmatprep.subr.bf16.mxu0 0
    %3084 = vmatpush2.bf16.msra.mxu0 0
    %3085 = vmatprep.subr.bf16.mxu0 0
    %3086 = vmatpush2.bf16.msra.mxu0 0
    %3087 = vmatprep.subr.bf16.mxu0 0
    %3088 = vmatpush2.bf16.msra.mxu0 0
    %3089 = vmatprep.subr.bf16.mxu0 0
    %3090 = vmatpush2.bf16.msra.mxu0 0
    %3091 = vmatprep.subr.bf16.mxu0 0
    %3092 = vmatpush2.bf16.msra.mxu0 0
    %3093 = vmatprep.subr.bf16.mxu0 0
    %3094 = vmatpush2.bf16.msra.mxu0 0
    %3095 = vmatprep.subr.bf16.mxu0 0
    %3096 = vmatpush2.bf16.msra.mxu0 0
    %3097 = vmatprep.subr.bf16.mxu0 0
    %3098 = vmatpush2.bf16.msra.mxu0 0
    %3099 = vmatprep.mubr.bf16.mxu0 0
    %3100 = vmatmul.mubr.bf16.gmra.mxu0 %v3065
    %v3101 = vpop.f32.mrf.mxu0
    %v3102 = vadd.f32 0.0, %v3101
    %v3103 = vpop.f32.mrf.mxu0
    %v3104 = vpop.f32.mrf.mxu0
    %v3105 = vpop.f32.mrf.mxu0
    %3106 = vdwg.mxu0
    %v3107 = vadd.f32 %v2351, %v3102
    %v3108 = vxor.u32 %v3107, 2147483648
    %v3109 = vmul.f32 %v3108, 1.442695
    %v3110 = vpow.pop %v3109
    %v3111 = vadd.f32 %v3110, 1.0
    %v3112 = vrcp.pop %v3111
    %v3113 = vmul.f32 1.0, %v3112
    %3114 = vmatprep.subr.bf16.mxu0 0
    %3115 = vmatpush1.bf16.msra.mxu0 0
    %3116 = vmatprep.subr.bf16.mxu0 0
    %3117 = vmatpush1.bf16.msra.mxu0 0
    %3118 = vmatprep.subr.bf16.mxu0 0
    %3119 = vmatpush1.bf16.msra.mxu0 0
    %3120 = vmatprep.subr.bf16.mxu0 0
    %3121 = vmatpush1.bf16.msra.mxu0 0
    %3122 = vmatprep.subr.bf16.mxu0 0
    %3123 = vmatpush1.bf16.msra.mxu0 %v2584
    %3124 = vmatprep.subr.bf16.mxu0 0
    %3125 = vmatpush1.bf16.msra.mxu0 %v2583
    %3126 = vmatprep.subr.bf16.mxu0 0
    %3127 = vmatpush1.bf16.msra.mxu0 %v2582
    %3128 = vmatprep.subr.bf16.mxu0 0
    %3129 = vmatpush1.bf16.msra.mxu0 %v2581
    %3130 = vmatprep.subr.bf16.mxu0 0
    %3131 = vmatpush2.bf16.msra.mxu0 0
    %3132 = vmatprep.subr.bf16.mxu0 0
    %3133 = vmatpush2.bf16.msra.mxu0 0
    %3134 = vmatprep.subr.bf16.mxu0 0
    %3135 = vmatpush2.bf16.msra.mxu0 0
    %3136 = vmatprep.subr.bf16.mxu0 0
    %3137 = vmatpush2.bf16.msra.mxu0 0
    %3138 = vmatprep.subr.bf16.mxu0 0
    %3139 = vmatpush2.bf16.msra.mxu0 0
    %3140 = vmatprep.subr.bf16.mxu0 0
    %3141 = vmatpush2.bf16.msra.mxu0 0
    %3142 = vmatprep.subr.bf16.mxu0 0
    %3143 = vmatpush2.bf16.msra.mxu0 0
    %3144 = vmatprep.subr.bf16.mxu0 0
    %3145 = vmatpush2.bf16.msra.mxu0 0
    %3146 = vmatprep.mubr.bf16.mxu0 0
    %3147 = vmatmul.mubr.bf16.gmra.mxu0 %v3065
    %v3148 = vpop.f32.mrf.mxu0
    %v3149 = vadd.f32 %v2492, %v3148
    %v3150 = vpop.f32.mrf.mxu0
    %v3151 = vpop.f32.mrf.mxu0
    %v3152 = vpop.f32.mrf.mxu0
    %3153 = vdwg.mxu0
    %v3154 = vmul.f32 %v3113, %v3149
    %v3155 = vadd.f32 %v2457, %v3154
    %v3156 = vtanh.pop %v3155
    %v3157 = vsub.f32 %v3062, %v3156
    %3159 = vrot.lane.b32.xlu0 %v3157, 64
    %v3160 = vpop.permute.xlu0 %3159
    %v3162 = vmul.f32 %v3113, %v3160
    %3164 = vrot.lane.b32.xlu0 %v3162, 64
    %v3165 = vpop.permute.xlu0 %3164
    %v3167 = vadd.f32 %v3156, %v3165
    %v3168 = vpack.c.bf16 %v3167, %v3167
    %v3170 = vsel %vm240, %v3168, 0
    %3172 = vmatprep.subr.bf16.mxu0 0
    %3173 = vmatpush1.bf16.msra.mxu0 0
    %3174 = vmatprep.subr.bf16.mxu0 0
    %3175 = vmatpush1.bf16.msra.mxu0 0
    %3176 = vmatprep.subr.bf16.mxu0 0
    %3177 = vmatpush1.bf16.msra.mxu0 0
    %3178 = vmatprep.subr.bf16.mxu0 0
    %3179 = vmatpush1.bf16.msra.mxu0 0
    %3180 = vmatprep.subr.bf16.mxu0 0
    %3181 = vmatpush1.bf16.msra.mxu0 %v2513
    %3182 = vmatprep.subr.bf16.mxu0 0
    %3183 = vmatpush1.bf16.msra.mxu0 %v2512
    %3184 = vmatprep.subr.bf16.mxu0 0
    %3185 = vmatpush1.bf16.msra.mxu0 %v2511
    %3186 = vmatprep.subr.bf16.mxu0 0
    %3187 = vmatpush1.bf16.msra.mxu0 %v2510
    %3188 = vmatprep.subr.bf16.mxu0 0
    %3189 = vmatpush2.bf16.msra.mxu0 0
    %3190 = vmatprep.subr.bf16.mxu0 0
    %3191 = vmatpush2.bf16.msra.mxu0 0
    %3192 = vmatprep.subr.bf16.mxu0 0
    %3193 = vmatpush2.bf16.msra.mxu0 0
    %3194 = vmatprep.subr.bf16.mxu0 0
    %3195 = vmatpush2.bf16.msra.mxu0 0
    %3196 = vmatprep.subr.bf16.mxu0 0
    %3197 = vmatpush2.bf16.msra.mxu0 0
    %3198 = vmatprep.subr.bf16.mxu0 0
    %3199 = vmatpush2.bf16.msra.mxu0 0
    %3200 = vmatprep.subr.bf16.mxu0 0
    %3201 = vmatpush2.bf16.msra.mxu0 0
    %3202 = vmatprep.subr.bf16.mxu0 0
    %3203 = vmatpush2.bf16.msra.mxu0 0
    %3204 = vmatprep.mubr.bf16.mxu0 0
    %3205 = vmatmul.mubr.bf16.gmra.mxu0 %v3170
    %v3206 = vpop.f32.mrf.mxu0
    %v3207 = vadd.f32 0.0, %v3206
    %v3208 = vpop.f32.mrf.mxu0
    %v3209 = vpop.f32.mrf.mxu0
    %v3210 = vpop.f32.mrf.mxu0
    %3211 = vdwg.mxu0
    %v3212 = vadd.f32 %v2356, %v3207
    %v3213 = vxor.u32 %v3212, 2147483648
    %v3214 = vmul.f32 %v3213, 1.442695
    %v3215 = vpow.pop %v3214
    %v3216 = vadd.f32 %v3215, 1.0
    %v3217 = vrcp.pop %v3216
    %v3218 = vmul.f32 1.0, %v3217
    %3219 = vmatprep.subr.bf16.mxu0 0
    %3220 = vmatpush1.bf16.msra.mxu0 0
    %3221 = vmatprep.subr.bf16.mxu0 0
    %3222 = vmatpush1.bf16.msra.mxu0 0
    %3223 = vmatprep.subr.bf16.mxu0 0
    %3224 = vmatpush1.bf16.msra.mxu0 0
    %3225 = vmatprep.subr.bf16.mxu0 0
    %3226 = vmatpush1.bf16.msra.mxu0 0
    %3227 = vmatprep.subr.bf16.mxu0 0
    %3228 = vmatpush1.bf16.msra.mxu0 %v2584
    %3229 = vmatprep.subr.bf16.mxu0 0
    %3230 = vmatpush1.bf16.msra.mxu0 %v2583
    %3231 = vmatprep.subr.bf16.mxu0 0
    %3232 = vmatpush1.bf16.msra.mxu0 %v2582
    %3233 = vmatprep.subr.bf16.mxu0 0
    %3234 = vmatpush1.bf16.msra.mxu0 %v2581
    %3235 = vmatprep.subr.bf16.mxu0 0
    %3236 = vmatpush2.bf16.msra.mxu0 0
    %3237 = vmatprep.subr.bf16.mxu0 0
    %3238 = vmatpush2.bf16.msra.mxu0 0
    %3239 = vmatprep.subr.bf16.mxu0 0
    %3240 = vmatpush2.bf16.msra.mxu0 0
    %3241 = vmatprep.subr.bf16.mxu0 0
    %3242 = vmatpush2.bf16.msra.mxu0 0
    %3243 = vmatprep.subr.bf16.mxu0 0
    %3244 = vmatpush2.bf16.msra.mxu0 0
    %3245 = vmatprep.subr.bf16.mxu0 0
    %3246 = vmatpush2.bf16.msra.mxu0 0
    %3247 = vmatprep.subr.bf16.mxu0 0
    %3248 = vmatpush2.bf16.msra.mxu0 0
    %3249 = vmatprep.subr.bf16.mxu0 0
    %3250 = vmatpush2.bf16.msra.mxu0 0
    %3251 = vmatprep.mubr.bf16.mxu0 0
    %3252 = vmatmul.mubr.bf16.gmra.mxu0 %v3170
    %v3253 = vpop.f32.mrf.mxu0
    %v3254 = vadd.f32 %v2492, %v3253
    %v3255 = vpop.f32.mrf.mxu0
    %v3256 = vpop.f32.mrf.mxu0
    %v3257 = vpop.f32.mrf.mxu0
    %3258 = vdwg.mxu0
    %v3259 = vmul.f32 %v3218, %v3254
    %v3260 = vadd.f32 %v2462, %v3259
    %v3261 = vtanh.pop %v3260
    %v3262 = vsub.f32 %v3167, %v3261
    %3264 = vrot.lane.b32.xlu0 %v3262, 64
    %v3265 = vpop.permute.xlu0 %3264
    %v3267 = vmul.f32 %v3218, %v3265
    %3269 = vrot.lane.b32.xlu0 %v3267, 64
    %v3270 = vpop.permute.xlu0 %3269
    %v3272 = vadd.f32 %v3261, %v3270
    %v3273 = vpack.c.bf16 %v3272, %v3272
    %v3275 = vsel %vm240, %v3273, 0
    %3277 = vmatprep.subr.bf16.mxu0 0
    %3278 = vmatpush1.bf16.msra.mxu0 0
    %3279 = vmatprep.subr.bf16.mxu0 0
    %3280 = vmatpush1.bf16.msra.mxu0 0
    %3281 = vmatprep.subr.bf16.mxu0 0
    %3282 = vmatpush1.bf16.msra.mxu0 0
    %3283 = vmatprep.subr.bf16.mxu0 0
    %3284 = vmatpush1.bf16.msra.mxu0 0
    %3285 = vmatprep.subr.bf16.mxu0 0
    %3286 = vmatpush1.bf16.msra.mxu0 %v2513
    %3287 = vmatprep.subr.bf16.mxu0 0
    %3288 = vmatpush1.bf16.msra.mxu0 %v2512
    %3289 = vmatprep.subr.bf16.mxu0 0
    %3290 = vmatpush1.bf16.msra.mxu0 %v2511
    %3291 = vmatprep.subr.bf16.mxu0 0
    %3292 = vmatpush1.bf16.msra.mxu0 %v2510
    %3293 = vmatprep.subr.bf16.mxu0 0
    %3294 = vmatpush2.bf16.msra.mxu0 0
    %3295 = vmatprep.subr.bf16.mxu0 0
    %3296 = vmatpush2.bf16.msra.mxu0 0
    %3297 = vmatprep.subr.bf16.mxu0 0
    %3298 = vmatpush2.bf16.msra.mxu0 0
    %3299 = vmatprep.subr.bf16.mxu0 0
    %3300 = vmatpush2.bf16.msra.mxu0 0
    %3301 = vmatprep.subr.bf16.mxu0 0
    %3302 = vmatpush2.bf16.msra.mxu0 0
    %3303 = vmatprep.subr.bf16.mxu0 0
    %3304 = vmatpush2.bf16.msra.mxu0 0
    %3305 = vmatprep.subr.bf16.mxu0 0
    %3306 = vmatpush2.bf16.msra.mxu0 0
    %3307 = vmatprep.subr.bf16.mxu0 0
    %3308 = vmatpush2.bf16.msra.mxu0 0
    %3309 = vmatprep.mubr.bf16.mxu0 0
    %3310 = vmatmul.mubr.bf16.gmra.mxu0 %v3275
    %v3311 = vpop.f32.mrf.mxu0
    %v3312 = vadd.f32 0.0, %v3311
    %v3313 = vpop.f32.mrf.mxu0
    %v3314 = vpop.f32.mrf.mxu0
    %v3315 = vpop.f32.mrf.mxu0
    %3316 = vdwg.mxu0
    %v3317 = vadd.f32 %v2359, %v3312
    %v3318 = vxor.u32 %v3317, 2147483648
    %v3319 = vmul.f32 %v3318, 1.442695
    %v3320 = vpow.pop %v3319
    %v3321 = vadd.f32 %v3320, 1.0
    %v3322 = vrcp.pop %v3321
    %v3323 = vmul.f32 1.0, %v3322
    %3324 = vmatprep.subr.bf16.mxu0 0
    %3325 = vmatpush1.bf16.msra.mxu0 0
    %3326 = vmatprep.subr.bf16.mxu0 0
    %3327 = vmatpush1.bf16.msra.mxu0 0
    %3328 = vmatprep.subr.bf16.mxu0 0
    %3329 = vmatpush1.bf16.msra.mxu0 0
    %3330 = vmatprep.subr.bf16.mxu0 0
    %3331 = vmatpush1.bf16.msra.mxu0 0
    %3332 = vmatprep.subr.bf16.mxu0 0
    %3333 = vmatpush1.bf16.msra.mxu0 %v2584
    %3334 = vmatprep.subr.bf16.mxu0 0
    %3335 = vmatpush1.bf16.msra.mxu0 %v2583
    %3336 = vmatprep.subr.bf16.mxu0 0
    %3337 = vmatpush1.bf16.msra.mxu0 %v2582
    %3338 = vmatprep.subr.bf16.mxu0 0
    %3339 = vmatpush1.bf16.msra.mxu0 %v2581
    %3340 = vmatprep.subr.bf16.mxu0 0
    %3341 = vmatpush2.bf16.msra.mxu0 0
    %3342 = vmatprep.subr.bf16.mxu0 0
    %3343 = vmatpush2.bf16.msra.mxu0 0
    %3344 = vmatprep.subr.bf16.mxu0 0
    %3345 = vmatpush2.bf16.msra.mxu0 0
    %3346 = vmatprep.subr.bf16.mxu0 0
    %3347 = vmatpush2.bf16.msra.mxu0 0
    %3348 = vmatprep.subr.bf16.mxu0 0
    %3349 = vmatpush2.bf16.msra.mxu0 0
    %3350 = vmatprep.subr.bf16.mxu0 0
    %3351 = vmatpush2.bf16.msra.mxu0 0
    %3352 = vmatprep.subr.bf16.mxu0 0
    %3353 = vmatpush2.bf16.msra.mxu0 0
    %3354 = vmatprep.subr.bf16.mxu0 0
    %3355 = vmatpush2.bf16.msra.mxu0 0
    %3356 = vmatprep.mubr.bf16.mxu0 0
    %3357 = vmatmul.mubr.bf16.gmra.mxu0 %v3275
    %v3358 = vpop.f32.mrf.mxu0
    %v3359 = vadd.f32 %v2492, %v3358
    %v3360 = vpop.f32.mrf.mxu0
    %v3361 = vpop.f32.mrf.mxu0
    %v3362 = vpop.f32.mrf.mxu0
    %3363 = vdwg.mxu0
    %v3364 = vmul.f32 %v3323, %v3359
    %v3365 = vadd.f32 %v2465, %v3364
    %v3366 = vtanh.pop %v3365
    %v3367 = vsub.f32 %v3272, %v3366
    %3369 = vrot.lane.b32.xlu0 %v3367, 64
    %v3370 = vpop.permute.xlu0 %3369
    %v3372 = vmul.f32 %v3323, %v3370
    %3374 = vrot.lane.b32.xlu0 %v3372, 64
    %v3375 = vpop.permute.xlu0 %3374
    %v3377 = vadd.f32 %v3366, %v3375
    %v3378 = vld [vmem:[%s10] sm:$0x1]
    %v3380 = vlaneseq
    %v3381 = vshrl.u32 %v3380, 7
    %v3382 = vsub.s32 0, %v3381
    %v3383 = vrot.slane %v3378, %v3382
    %v3385 = vmul.f32 %v3377, %v3383
    %v3386 = vsel %vm240, %v3385, 0.0
    %3387 = vadd.xlane.f32.xlu0 %v3386
    %v3388 = vpop.xlane.xlu0 %3387
    %v3389 = vld [vmem:[#allocation2] sm:$0x1]
    %v3391 = vlaneseq
    %v3392 = vshrl.u32 %v3391, 7
    %v3393 = vsub.s32 0, %v3392
    %v3394 = vrot.slane %v3389, %v3393
    %v3396 = vadd.f32 %v3388, %v3394
    %vm3397 = vcmask 7168
    %3398 = vst.msk [vmem:[%s12] sm:$0xff] %vm3397, %v3396
    // Predicated region
    $region62: #{gru_model_forward.1} parent=1 // pred_check
      _
    $region63: #{gru_model_forward.1} parent=1 // pred_check_branch
      %3400 = sbr.rel (0) target = $region65
    $region64: #{gru_model_forward.1} parent=1 // pred_region
      _
    $region65: #{gru_model_forward.1} parent=1 // pred_fallthru
      _
    // Predicated region
    $region66: #{gru_model_forward.1} parent=1 // pred_check
      _
    $region67: #{gru_model_forward.1} parent=1 // pred_check_branch
      %3402 = sbr.rel (0) target = $region69
    $region68: #{gru_model_forward.1} parent=1 // pred_region
      _
    $region69: #{gru_model_forward.1} parent=1 // pred_fallthru
      _
    %3403 = vsyncpa [#allocation4], 1
    %3404 = vsyncpa [#allocation6], 1

</llo_original>
